<compile_context>
chip_gen: v6e
topology: v6e:2x2x1
jax: 0.10.0
libtpu: 0.0.40
codegen_flags: <defaults>
</compile_context>

<pallas_src>
import functools
import math

import numpy as np
import jax
import jax.numpy as jnp
from jax.experimental import pallas as pl
from jax.experimental.pallas import tpu as pltpu


# ---------------------------------------------------------------------------
# In-kernel helpers (all f32)
# ---------------------------------------------------------------------------
def _layernorm(v, gamma, beta, eps=1e-5):
    # PyTorch nn.LayerNorm semantics (biased variance, eps inside sqrt).
    mu = jnp.mean(v, axis=-1, keepdims=True)
    var = jnp.mean((v - mu) ** 2, axis=-1, keepdims=True)
    return (v - mu) * jax.lax.rsqrt(var + eps) * gamma + beta


def _gelu_exact(h):
    # nn.GELU() default is the exact erf formulation.
    return 0.5 * h * (1.0 + jax.lax.erf(h / math.sqrt(2.0)))


# ---------------------------------------------------------------------------
# Fully fused ViT forward kernel (one grid step, everything resident in VMEM)
# ---------------------------------------------------------------------------
def make_vit_kernel(*, B, N, S, E, D, Dh, H, dk, F, L, C):
    M = B * S                       # batch flattened into matmul rows
    inv_scale = 1.0 / math.sqrt(dk)
    f32 = jnp.float32
    bf16 = jnp.bfloat16

    def kernel(patches_ref, wp_ref, bp_ref, cls_ref, pos_ref,
               gamma_ref, beta_ref,
               wq_ref, bq_ref, wk_ref, bk_ref, wv_ref, bv_ref,
               wo_ref, bo_ref, w1_ref, b1_ref, w2_ref, b2_ref,
               hg_ref, hb_ref, wc_ref, bc_ref,
               logits_ref, attn_ref, tok_ref):
        # ---- patch embedding: one (B*N, E) @ (E, D) bf16 GEMM --------------
        proj = jnp.dot(patches_ref[...].astype(bf16), wp_ref[...],
                       preferred_element_type=f32) + bp_ref[...]      # (B*N, D)
        pos = pos_ref[...]                                            # (S, D)
        cls_row = cls_ref[...] + pos[0:1, :]                          # (1, D)
        # Assemble tokens with direct slice stores (no concatenate).
        for b in range(B):
            tok_ref[b * S:b * S + 1, :] = cls_row
            tok_ref[b * S + 1:(b + 1) * S, :] = proj[b * N:(b + 1) * N, :] + pos[1:, :]

        x = tok_ref[...]                                              # (M, D) f32

        # ---- encoder layers (static unrolled; L is small) ------------------
        for l in range(L):
            gamma = gamma_ref[l]                                      # (1, D)
            beta = beta_ref[l]
            n1 = _layernorm(x, gamma, beta)
            n1b = n1.astype(bf16)

            mha = jnp.zeros((M, D), f32)
            for h in range(H):
                lh = l * H + h
                # Per-head projections on the FULL flattened row block.
                q = jnp.dot(n1b, wq_ref[lh], preferred_element_type=f32) + bq_ref[lh]
                k = jnp.dot(n1b, wk_ref[lh], preferred_element_type=f32) + bk_ref[lh]
                v = jnp.dot(n1b, wv_ref[lh], preferred_element_type=f32) + bv_ref[lh]
                qb, kb, vb = q.astype(bf16), k.astype(bf16), v.astype(bf16)

                head_vals = []
                for b in range(B):                    # only SxS work is per-batch
                    rs = slice(b * S, (b + 1) * S)
                    sc = jnp.einsum('qd,kd->qk', qb[rs], kb[rs],
                                    preferred_element_type=f32) * inv_scale
                    sc = sc - jnp.max(sc, axis=-1, keepdims=True)
                    e = jnp.exp(sc)
                    a = e * pl.reciprocal(jnp.sum(e, axis=-1, keepdims=True),
                                          approx=True)
                    attn_ref[(l * B + b) * H + h] = a                 # (S, S) f32
                    head_vals.append(jnp.dot(a.astype(bf16), vb[rs],
                                             preferred_element_type=f32))
                head_rows = jnp.concatenate(head_vals, axis=0)        # (M, dk)
                # Per-head slice of Wo, accumulated -> identical to concat + Wo.
                mha = mha + jnp.dot(head_rows.astype(bf16), wo_ref[lh],
                                    preferred_element_type=f32)
            o1 = mha + bo_ref[l] + x

            # Same LayerNorm weights reused (matches the reference Encoder).
            n2 = _layernorm(o1, gamma, beta)
            h1 = jnp.dot(n2.astype(bf16), w1_ref[l],
                         preferred_element_type=f32) + b1_ref[l]
            g = _gelu_exact(h1)
            mlp = jnp.dot(g.astype(bf16), w2_ref[l],
                          preferred_element_type=f32) + b2_ref[l]
            x = mlp + o1

        # ---- MLP head on the cls rows (row b*S of each batch block) --------
        cls_rows = jnp.concatenate([x[b * S:b * S + 1, :] for b in range(B)], axis=0)
        nh = _layernorm(cls_rows, hg_ref[...], hb_ref[...])
        logits_ref[...] = jnp.dot(nh.astype(bf16), wc_ref[...],
                                  preferred_element_type=f32) + bc_ref[...]

    return kernel


# ---------------------------------------------------------------------------
# Wrapper-side parameter packing (layout plumbing, all plain JAX)
# ---------------------------------------------------------------------------
def _pack_params(params, *, num_heads):
    layers = params["layers"]
    L = len(layers)
    H = num_heads
    D = params["wp"].shape[1]
    Dh = layers[0]["wq"].shape[1]
    dk = Dh // H
    bf16 = jnp.bfloat16

    def split_w(w):        # (D, Dh) -> (H, D, dk); head h <-> cols h*dk:(h+1)*dk
        return jnp.transpose(w.reshape(D, H, dk), (1, 0, 2))

    def split_b(b):        # (1, Dh) -> (H, 1, dk)
        return jnp.transpose(b.reshape(1, H, dk), (1, 0, 2))

    def split_wo(w):       # (Dh, D) -> (H, dk, D); head h <-> rows h*dk:(h+1)*dk
        return w.reshape(H, dk, D)

    stack = lambda name: jnp.stack([lp[name] for lp in layers], axis=0)
    stack_heads_w = lambda name: jnp.stack(
        [split_w(lp[name]) for lp in layers], 0).reshape(L * H, D, dk).astype(bf16)
    stack_heads_b = lambda name: jnp.stack(
        [split_b(lp[name]) for lp in layers], 0).reshape(L * H, 1, dk)

    return {
        "wp": params["wp"].astype(bf16), "bp": params["bp"],
        "cls": params["cls"], "pos": params["pos"],
        "gamma": stack("gamma"), "beta": stack("beta"),               # (L, 1, D)
        "wq": stack_heads_w("wq"), "bq": stack_heads_b("bq"),
        "wk": stack_heads_w("wk"), "bk": stack_heads_b("bk"),
        "wv": stack_heads_w("wv"), "bv": stack_heads_b("bv"),
        "wo": jnp.stack([split_wo(lp["wo"]) for lp in layers], 0
                        ).reshape(L * H, dk, D).astype(bf16),
        "bo": stack("bo"),
        "w1": stack("w1").astype(bf16), "b1": stack("b1"),
        "w2": stack("w2").astype(bf16), "b2": stack("b2"),
        "hg": params["head_gamma"], "hb": params["head_beta"],
        "wc": params["wc"].astype(bf16), "bc": params["bc"],
    }


# ---------------------------------------------------------------------------
# Plain-JAX glue (patching / positional embedding / init)
# ---------------------------------------------------------------------------
def create_patches(x, patch_size):
    # Reproduces inputs.unfold(2,p,p).unfold(3,p,p).reshape(B,-1,p*p*3) exactly
    # (including its channel/spatial interleaving).
    B, Cc, Hh, Ww = x.shape
    nh, nw = Hh // patch_size, Ww // patch_size
    r = x.reshape(B, Cc, nh, patch_size, nw, patch_size)
    r = jnp.transpose(r, (0, 1, 2, 4, 3, 5))            # (B, C, nh, nw, p, p)
    return r.reshape(B, -1, patch_size * patch_size * 3)


def positional_embedding(pos_length, d_model):
    pe = np.ones((pos_length, d_model), dtype=np.float64)
    for pos in range(pos_length):
        for i in range(d_model):
            if i % 2 == 0:
                pe[pos, i] = np.sin(pos / 10000 ** (i / d_model))
            else:
                pe[pos, i] = np.cos(pos / 10000 ** ((i - 1) / d_model))
    return jnp.asarray(pe.astype(np.float32))


def init_params(key, *, embed_size, d_model, d_hidden, mlp_filters,
                num_layers, num_classes, num_patches):
    keys = jax.random.split(key, 4 + num_layers)
    p = {}
    p["wp"] = jax.random.normal(keys[0], (embed_size, d_model), jnp.float32) * 0.05
    p["bp"] = jnp.zeros((1, d_model), jnp.float32)
    p["cls"] = jax.random.uniform(keys[1], (1, d_model), jnp.float32)   # torch.rand
    p["pos"] = positional_embedding(num_patches + 1, d_model)

    layers = []
    for l in range(num_layers):
        lk = jax.random.split(keys[2 + l], 8)
        layers.append({
            "gamma": jnp.ones((1, d_model), jnp.float32),
            "beta": jnp.zeros((1, d_model), jnp.float32),
            "wq": jax.random.normal(lk[0], (d_model, d_hidden), jnp.float32) * 0.05,
            "bq": jax.random.normal(lk[1], (1, d_hidden), jnp.float32) * 0.01,
            "wk": jax.random.normal(lk[2], (d_model, d_hidden), jnp.float32) * 0.05,
            "bk": jax.random.normal(lk[3], (1, d_hidden), jnp.float32) * 0.01,
            "wv": jax.random.normal(lk[4], (d_model, d_hidden), jnp.float32) * 0.05,
            "bv": jax.random.normal(lk[5], (1, d_hidden), jnp.float32) * 0.01,
            "wo": jax.random.normal(lk[6], (d_hidden, d_model), jnp.float32) * 0.05,
            "bo": jnp.zeros((1, d_model), jnp.float32),
            "w1": jax.random.normal(lk[7], (d_model, mlp_filters), jnp.float32) * 0.05,
            "b1": jnp.zeros((1, mlp_filters), jnp.float32),
            "w2": jax.random.normal(jax.random.fold_in(lk[7], 1),
                                    (mlp_filters, d_model), jnp.float32) * 0.05,
            "b2": jnp.zeros((1, d_model), jnp.float32),
        })
    p["layers"] = layers
    p["head_gamma"] = jnp.ones((1, d_model), jnp.float32)
    p["head_beta"] = jnp.zeros((1, d_model), jnp.float32)
    p["wc"] = jax.random.normal(keys[2 + num_layers], (d_model, num_classes),
                                jnp.float32) * 0.05
    p["bc"] = jnp.zeros((1, num_classes), jnp.float32)
    return p


# ---------------------------------------------------------------------------
# Forward
# ---------------------------------------------------------------------------
def vit_forward(x, params, *, patch_size, num_heads):
    # nn.Dropout modules in the reference are never applied in forward -> no-op.
    patches = create_patches(x, patch_size)                # (B, N, E)
    B, N, E = patches.shape
    D = params["wp"].shape[1]
    Dh = params["layers"][0]["wq"].shape[1]
    F = params["layers"][0]["w1"].shape[1]
    C = params["wc"].shape[1]
    L = len(params["layers"])
    H = num_heads
    dk = Dh // H
    S = N + 1
    M = B * S

    pk = _pack_params(params, num_heads=H)
    patches_flat = patches.reshape(B * N, E)

    kernel = make_vit_kernel(B=B, N=N, S=S, E=E, D=D, Dh=Dh, H=H, dk=dk,
                             F=F, L=L, C=C)

    def fs(shape):                       # full-array block, single grid step
        nd = len(shape)
        return pl.BlockSpec(shape, lambda i, nd=nd: (0,) * nd)

    logits, attn_flat = pl.pallas_call(
        kernel,
        out_shape=(
            jax.ShapeDtypeStruct((B, C), jnp.float32),
            jax.ShapeDtypeStruct((L * B * H, S, S), jnp.float32),
        ),
        grid=(1,),
        in_specs=[
            fs((B * N, E)),
            fs((E, D)), fs((1, D)), fs((1, D)), fs((S, D)),
            fs((L, 1, D)), fs((L, 1, D)),
            fs((L * H, D, dk)), fs((L * H, 1, dk)),
            fs((L * H, D, dk)), fs((L * H, 1, dk)),
            fs((L * H, D, dk)), fs((L * H, 1, dk)),
            fs((L * H, dk, D)), fs((L, 1, D)),
            fs((L, D, F)), fs((L, 1, F)),
            fs((L, F, D)), fs((L, 1, D)),
            fs((1, D)), fs((1, D)),
            fs((D, C)), fs((1, C)),
        ],
        out_specs=(fs((B, C)), fs((L * B * H, S, S))),
        scratch_shapes=[pltpu.VMEM((M, D), jnp.float32)],
        compiler_params=pltpu.CompilerParams(dimension_semantics=("arbitrary",)),
    )(patches_flat,
      pk["wp"], pk["bp"], pk["cls"], pk["pos"],
      pk["gamma"], pk["beta"],
      pk["wq"], pk["bq"], pk["wk"], pk["bk"], pk["wv"], pk["bv"],
      pk["wo"], pk["bo"], pk["w1"], pk["b1"], pk["w2"], pk["b2"],
      pk["hg"], pk["hb"], pk["wc"], pk["bc"])

    attn = attn_flat.reshape(L, B, H, S, S)
    return logits, [attn[l] for l in range(L)]


# ---------------------------------------------------------------------------
if __name__ == "__main__":
    # Small config: 16x16 RGB images, 8x8 patches -> 4 patches, seq len 5.
    B, Cch, Himg, Wimg = 2, 3, 16, 16
    patch_size = 8
    embed_size = patch_size * patch_size * 3              # 192
    num_patches = (Himg // patch_size) * (Wimg // patch_size)  # 4
    d_model, d_hidden = 32, 32
    num_heads, num_layers = 2, 2
    mlp_filters, num_classes = 64, 10

    key = jax.random.PRNGKey(0)
    kx, kp = jax.random.split(key)
    x = jax.random.normal(kx, (B, Cch, Himg, Wimg), jnp.float32)

    params = init_params(
        kp, embed_size=embed_size, d_model=d_model, d_hidden=d_hidden,
        mlp_filters=mlp_filters, num_layers=num_layers,
        num_classes=num_classes, num_patches=num_patches)

    fwd = jax.jit(functools.partial(vit_forward, patch_size=patch_size,
                                    num_heads=num_heads))
    logits, attention_maps = fwd(x, params)
    jax.block_until_ready(logits)
    for a in attention_maps:
        jax.block_until_ready(a)

    assert logits.shape == (B, num_classes)
    assert bool(jnp.all(jnp.isfinite(logits)))
    assert len(attention_maps) == num_layers
    assert attention_maps[0].shape == (B, num_heads, num_patches + 1, num_patches + 1)
    print("KERNEL_OK")
</pallas_src>

<mosaic_0001>
module attributes {stable_mosaic.version = 11 : i64} {
  func.func @kernel(%arg0: i32, %arg1: memref<8x192xf32, #tpu.memory_space<vmem>>, %arg2: memref<192x32xbf16, #tpu.memory_space<vmem>>, %arg3: memref<1x32xf32, #tpu.memory_space<vmem>>, %arg4: memref<1x32xf32, #tpu.memory_space<vmem>>, %arg5: memref<5x32xf32, #tpu.memory_space<vmem>>, %arg6: memref<2x1x32xf32, #tpu.memory_space<vmem>>, %arg7: memref<2x1x32xf32, #tpu.memory_space<vmem>>, %arg8: memref<4x32x16xbf16, #tpu.memory_space<vmem>>, %arg9: memref<4x1x16xf32, #tpu.memory_space<vmem>>, %arg10: memref<4x32x16xbf16, #tpu.memory_space<vmem>>, %arg11: memref<4x1x16xf32, #tpu.memory_space<vmem>>, %arg12: memref<4x32x16xbf16, #tpu.memory_space<vmem>>, %arg13: memref<4x1x16xf32, #tpu.memory_space<vmem>>, %arg14: memref<4x16x32xbf16, #tpu.memory_space<vmem>>, %arg15: memref<2x1x32xf32, #tpu.memory_space<vmem>>, %arg16: memref<2x32x64xbf16, #tpu.memory_space<vmem>>, %arg17: memref<2x1x64xf32, #tpu.memory_space<vmem>>, %arg18: memref<2x64x32xbf16, #tpu.memory_space<vmem>>, %arg19: memref<2x1x32xf32, #tpu.memory_space<vmem>>, %arg20: memref<1x32xf32, #tpu.memory_space<vmem>>, %arg21: memref<1x32xf32, #tpu.memory_space<vmem>>, %arg22: memref<32x10xbf16, #tpu.memory_space<vmem>>, %arg23: memref<1x10xf32, #tpu.memory_space<vmem>>, %arg24: memref<2x10xf32, #tpu.memory_space<vmem>>, %arg25: memref<8x5x5xf32, #tpu.memory_space<vmem>>, %arg26: memref<10x32xf32, #tpu.memory_space<vmem>>) attributes {dimension_semantics = [#tpu.dimension_semantics<arbitrary>], iteration_bounds = array<i64: 1>, scalar_prefetch = 0 : i64, scratch_operands = 1 : i64, tpu.core_type = #tpu.core_type<tc>, window_params = [{pipeline_mode = #tpu.pipeline_mode<synchronous>, transform_indices = @transform_0, window_bounds = array<i64: 8, 192>}, {pipeline_mode = #tpu.pipeline_mode<synchronous>, transform_indices = @transform_1, window_bounds = array<i64: 192, 32>}, {pipeline_mode = #tpu.pipeline_mode<synchronous>, transform_indices = @transform_2, window_bounds = array<i64: 1, 32>}, {pipeline_mode = #tpu.pipeline_mode<synchronous>, transform_indices = @transform_3, window_bounds = array<i64: 1, 32>}, {pipeline_mode = #tpu.pipeline_mode<synchronous>, transform_indices = @transform_4, window_bounds = array<i64: 5, 32>}, {pipeline_mode = #tpu.pipeline_mode<synchronous>, transform_indices = @transform_5, window_bounds = array<i64: 2, 1, 32>}, {pipeline_mode = #tpu.pipeline_mode<synchronous>, transform_indices = @transform_6, window_bounds = array<i64: 2, 1, 32>}, {pipeline_mode = #tpu.pipeline_mode<synchronous>, transform_indices = @transform_7, window_bounds = array<i64: 4, 32, 16>}, {pipeline_mode = #tpu.pipeline_mode<synchronous>, transform_indices = @transform_8, window_bounds = array<i64: 4, 1, 16>}, {pipeline_mode = #tpu.pipeline_mode<synchronous>, transform_indices = @transform_9, window_bounds = array<i64: 4, 32, 16>}, {pipeline_mode = #tpu.pipeline_mode<synchronous>, transform_indices = @transform_10, window_bounds = array<i64: 4, 1, 16>}, {pipeline_mode = #tpu.pipeline_mode<synchronous>, transform_indices = @transform_11, window_bounds = array<i64: 4, 32, 16>}, {pipeline_mode = #tpu.pipeline_mode<synchronous>, transform_indices = @transform_12, window_bounds = array<i64: 4, 1, 16>}, {pipeline_mode = #tpu.pipeline_mode<synchronous>, transform_indices = @transform_13, window_bounds = array<i64: 4, 16, 32>}, {pipeline_mode = #tpu.pipeline_mode<synchronous>, transform_indices = @transform_14, window_bounds = array<i64: 2, 1, 32>}, {pipeline_mode = #tpu.pipeline_mode<synchronous>, transform_indices = @transform_15, window_bounds = array<i64: 2, 32, 64>}, {pipeline_mode = #tpu.pipeline_mode<synchronous>, transform_indices = @transform_16, window_bounds = array<i64: 2, 1, 64>}, {pipeline_mode = #tpu.pipeline_mode<synchronous>, transform_indices = @transform_17, window_bounds = array<i64: 2, 64, 32>}, {pipeline_mode = #tpu.pipeline_mode<synchronous>, transform_indices = @transform_18, window_bounds = array<i64: 2, 1, 32>}, {pipeline_mode = #tpu.pipeline_mode<synchronous>, transform_indices = @transform_19, window_bounds = array<i64: 1, 32>}, {pipeline_mode = #tpu.pipeline_mode<synchronous>, transform_indices = @transform_20, window_bounds = array<i64: 1, 32>}, {pipeline_mode = #tpu.pipeline_mode<synchronous>, transform_indices = @transform_21, window_bounds = array<i64: 32, 10>}, {pipeline_mode = #tpu.pipeline_mode<synchronous>, transform_indices = @transform_22, window_bounds = array<i64: 1, 10>}, {pipeline_mode = #tpu.pipeline_mode<synchronous>, transform_indices = @transform_23, window_bounds = array<i64: 2, 10>}, {pipeline_mode = #tpu.pipeline_mode<synchronous>, transform_indices = @transform_24, window_bounds = array<i64: 8, 5, 5>}]} {
    %c0 = arith.constant 0 : index
    %c0_0 = arith.constant 0 : index
    %0 = vector.load %arg1[%c0, %c0_0] : memref<8x192xf32, #tpu.memory_space<vmem>>, vector<8x192xf32>
    %1 = arith.truncf %0 : vector<8x192xf32> to vector<8x192xbf16>
    %c0_1 = arith.constant 0 : index
    %c0_2 = arith.constant 0 : index
    %2 = vector.load %arg2[%c0_1, %c0_2] : memref<192x32xbf16, #tpu.memory_space<vmem>>, vector<192x32xbf16>
    %cst = arith.constant dense<0.000000e+00> : vector<8x32xf32>
    %3 = tpu.matmul %1, %2, %cst {dimension_numbers = #tpu.dot_dimension_numbers<[1], [0], [0], [1], [0, 0, 1, 1], [], []>} : vector<8x192xbf16>, vector<192x32xbf16>, vector<8x32xf32> -> vector<8x32xf32>
    %c0_3 = arith.constant 0 : index
    %c0_4 = arith.constant 0 : index
    %4 = vector.load %arg3[%c0_3, %c0_4] : memref<1x32xf32, #tpu.memory_space<vmem>>, vector<1x32xf32>
    %5 = vector.broadcast %4 : vector<1x32xf32> to vector<8x32xf32>
    %6 = arith.addf %3, %5 : vector<8x32xf32>
    %c0_5 = arith.constant 0 : index
    %c0_6 = arith.constant 0 : index
    %7 = vector.load %arg5[%c0_5, %c0_6] : memref<5x32xf32, #tpu.memory_space<vmem>>, vector<5x32xf32>
    %c0_7 = arith.constant 0 : index
    %c0_8 = arith.constant 0 : index
    %8 = vector.load %arg4[%c0_7, %c0_8] : memref<1x32xf32, #tpu.memory_space<vmem>>, vector<1x32xf32>
    %9 = vector.extract_strided_slice %7 {offsets = [0, 0], sizes = [1, 32], strides = [1, 1]} : vector<5x32xf32> to vector<1x32xf32>
    %10 = arith.addf %8, %9 : vector<1x32xf32>
    %c0_9 = arith.constant 0 : index
    %c0_10 = arith.constant 0 : index
    %11 = vector.load %arg26[%c0_9, %c0_10] : memref<10x32xf32, #tpu.memory_space<vmem>>, vector<1x32xf32>
    tpu.vector_store %arg26[%c0_9, %c0_10], %10 {strides = array<i32>} : memref<10x32xf32, #tpu.memory_space<vmem>>, vector<1x32xf32>,
    %12 = vector.extract_strided_slice %6 {offsets = [0, 0], sizes = [4, 32], strides = [1, 1]} : vector<8x32xf32> to vector<4x32xf32>
    %13 = vector.extract_strided_slice %7 {offsets = [1, 0], sizes = [4, 32], strides = [1, 1]} : vector<5x32xf32> to vector<4x32xf32>
    %14 = arith.addf %12, %13 : vector<4x32xf32>
    %c1 = arith.constant 1 : index
    %c0_11 = arith.constant 0 : index
    %15 = vector.load %arg26[%c1, %c0_11] : memref<10x32xf32, #tpu.memory_space<vmem>>, vector<4x32xf32>
    tpu.vector_store %arg26[%c1, %c0_11], %14 {strides = array<i32>} : memref<10x32xf32, #tpu.memory_space<vmem>>, vector<4x32xf32>,
    %c5 = arith.constant 5 : index
    %c0_12 = arith.constant 0 : index
    %16 = vector.load %arg26[%c5, %c0_12] : memref<10x32xf32, #tpu.memory_space<vmem>>, vector<1x32xf32>
    tpu.vector_store %arg26[%c5, %c0_12], %10 {strides = array<i32>} : memref<10x32xf32, #tpu.memory_space<vmem>>, vector<1x32xf32>,
    %17 = vector.extract_strided_slice %6 {offsets = [4, 0], sizes = [4, 32], strides = [1, 1]} : vector<8x32xf32> to vector<4x32xf32>
    %18 = vector.extract_strided_slice %7 {offsets = [1, 0], sizes = [4, 32], strides = [1, 1]} : vector<5x32xf32> to vector<4x32xf32>
    %19 = arith.addf %17, %18 : vector<4x32xf32>
    %c6 = arith.constant 6 : index
    %c0_13 = arith.constant 0 : index
    %20 = vector.load %arg26[%c6, %c0_13] : memref<10x32xf32, #tpu.memory_space<vmem>>, vector<4x32xf32>
    tpu.vector_store %arg26[%c6, %c0_13], %19 {strides = array<i32>} : memref<10x32xf32, #tpu.memory_space<vmem>>, vector<4x32xf32>,
    %c0_14 = arith.constant 0 : index
    %c0_15 = arith.constant 0 : index
    %21 = vector.load %arg26[%c0_14, %c0_15] : memref<10x32xf32, #tpu.memory_space<vmem>>, vector<10x32xf32>
    %c0_16 = arith.constant 0 : index
    %c0_17 = arith.constant 0 : index
    %c0_18 = arith.constant 0 : index
    %22 = vector.load %arg6[%c0_16, %c0_17, %c0_18] : memref<2x1x32xf32, #tpu.memory_space<vmem>>, vector<1x1x32xf32>
    %23 = vector.shape_cast %22 : vector<1x1x32xf32> to vector<1x32xf32>
    %c0_19 = arith.constant 0 : index
    %c0_20 = arith.constant 0 : index
    %c0_21 = arith.constant 0 : index
    %24 = vector.load %arg7[%c0_19, %c0_20, %c0_21] : memref<2x1x32xf32, #tpu.memory_space<vmem>>, vector<1x1x32xf32>
    %25 = vector.shape_cast %24 : vector<1x1x32xf32> to vector<1x32xf32>
    %cst_22 = arith.constant dense<0.000000e+00> : vector<10xf32>
    %26 = vector.multi_reduction <add>, %21, %cst_22 [1] : vector<10x32xf32> to vector<10xf32>
    %27 = vector.shape_cast %26 : vector<10xf32> to vector<10x1xf32>
    %cst_23 = arith.constant 3.200000e+01 : f32
    %28 = vector.broadcast %cst_23 : f32 to vector<10x1xf32>
    %29 = arith.divf %27, %28 : vector<10x1xf32>
    %30 = vector.broadcast %29 : vector<10x1xf32> to vector<10x32xf32>
    %31 = arith.subf %21, %30 : vector<10x32xf32>
    %32 = arith.mulf %31, %31 : vector<10x32xf32>
    %cst_24 = arith.constant dense<0.000000e+00> : vector<10xf32>
    %33 = vector.multi_reduction <add>, %32, %cst_24 [1] : vector<10x32xf32> to vector<10xf32>
    %34 = vector.shape_cast %33 : vector<10xf32> to vector<10x1xf32>
    %cst_25 = arith.constant 3.200000e+01 : f32
    %35 = vector.broadcast %cst_25 : f32 to vector<10x1xf32>
    %36 = arith.divf %34, %35 : vector<10x1xf32>
    %37 = vector.broadcast %29 : vector<10x1xf32> to vector<10x32xf32>
    %38 = arith.subf %21, %37 : vector<10x32xf32>
    %cst_26 = arith.constant 9.99999974E-6 : f32
    %39 = vector.broadcast %cst_26 : f32 to vector<10x1xf32>
    %40 = arith.addf %36, %39 : vector<10x1xf32>
    %41 = math.rsqrt %40 : vector<10x1xf32>
    %42 = vector.broadcast %41 : vector<10x1xf32> to vector<10x32xf32>
    %43 = arith.mulf %38, %42 : vector<10x32xf32>
    %44 = vector.broadcast %23 : vector<1x32xf32> to vector<10x32xf32>
    %45 = arith.mulf %43, %44 : vector<10x32xf32>
    %46 = vector.broadcast %25 : vector<1x32xf32> to vector<10x32xf32>
    %47 = arith.addf %45, %46 : vector<10x32xf32>
    %48 = arith.truncf %47 : vector<10x32xf32> to vector<10x32xbf16>
    %cst_27 = arith.constant 0.000000e+00 : f32
    %49 = vector.broadcast %cst_27 : f32 to vector<10x32xf32>
    %c0_28 = arith.constant 0 : index
    %c0_29 = arith.constant 0 : index
    %c0_30 = arith.constant 0 : index
    %50 = vector.load %arg8[%c0_28, %c0_29, %c0_30] : memref<4x32x16xbf16, #tpu.memory_space<vmem>>, vector<1x32x16xbf16>
    %51 = vector.shape_cast %50 : vector<1x32x16xbf16> to vector<32x16xbf16>
    %cst_31 = arith.constant dense<0.000000e+00> : vector<10x16xf32>
    %52 = tpu.matmul %48, %51, %cst_31 {dimension_numbers = #tpu.dot_dimension_numbers<[1], [0], [0], [1], [0, 0, 1, 1], [], []>} : vector<10x32xbf16>, vector<32x16xbf16>, vector<10x16xf32> -> vector<10x16xf32>
    %c0_32 = arith.constant 0 : index
    %c0_33 = arith.constant 0 : index
    %c0_34 = arith.constant 0 : index
    %53 = vector.load %arg9[%c0_32, %c0_33, %c0_34] : memref<4x1x16xf32, #tpu.memory_space<vmem>>, vector<1x1x16xf32>
    %54 = vector.shape_cast %53 : vector<1x1x16xf32> to vector<1x16xf32>
    %55 = vector.broadcast %54 : vector<1x16xf32> to vector<10x16xf32>
    %56 = arith.addf %52, %55 : vector<10x16xf32>
    %c0_35 = arith.constant 0 : index
    %c0_36 = arith.constant 0 : index
    %c0_37 = arith.constant 0 : index
    %57 = vector.load %arg10[%c0_35, %c0_36, %c0_37] : memref<4x32x16xbf16, #tpu.memory_space<vmem>>, vector<1x32x16xbf16>
    %58 = vector.shape_cast %57 : vector<1x32x16xbf16> to vector<32x16xbf16>
    %cst_38 = arith.constant dense<0.000000e+00> : vector<10x16xf32>
    %59 = tpu.matmul %48, %58, %cst_38 {dimension_numbers = #tpu.dot_dimension_numbers<[1], [0], [0], [1], [0, 0, 1, 1], [], []>} : vector<10x32xbf16>, vector<32x16xbf16>, vector<10x16xf32> -> vector<10x16xf32>
    %c0_39 = arith.constant 0 : index
    %c0_40 = arith.constant 0 : index
    %c0_41 = arith.constant 0 : index
    %60 = vector.load %arg11[%c0_39, %c0_40, %c0_41] : memref<4x1x16xf32, #tpu.memory_space<vmem>>, vector<1x1x16xf32>
    %61 = vector.shape_cast %60 : vector<1x1x16xf32> to vector<1x16xf32>
    %62 = vector.broadcast %61 : vector<1x16xf32> to vector<10x16xf32>
    %63 = arith.addf %59, %62 : vector<10x16xf32>
    %c0_42 = arith.constant 0 : index
    %c0_43 = arith.constant 0 : index
    %c0_44 = arith.constant 0 : index
    %64 = vector.load %arg12[%c0_42, %c0_43, %c0_44] : memref<4x32x16xbf16, #tpu.memory_space<vmem>>, vector<1x32x16xbf16>
    %65 = vector.shape_cast %64 : vector<1x32x16xbf16> to vector<32x16xbf16>
    %cst_45 = arith.constant dense<0.000000e+00> : vector<10x16xf32>
    %66 = tpu.matmul %48, %65, %cst_45 {dimension_numbers = #tpu.dot_dimension_numbers<[1], [0], [0], [1], [0, 0, 1, 1], [], []>} : vector<10x32xbf16>, vector<32x16xbf16>, vector<10x16xf32> -> vector<10x16xf32>
    %c0_46 = arith.constant 0 : index
    %c0_47 = arith.constant 0 : index
    %c0_48 = arith.constant 0 : index
    %67 = vector.load %arg13[%c0_46, %c0_47, %c0_48] : memref<4x1x16xf32, #tpu.memory_space<vmem>>, vector<1x1x16xf32>
    %68 = vector.shape_cast %67 : vector<1x1x16xf32> to vector<1x16xf32>
    %69 = vector.broadcast %68 : vector<1x16xf32> to vector<10x16xf32>
    %70 = arith.addf %66, %69 : vector<10x16xf32>
    %71 = arith.truncf %56 : vector<10x16xf32> to vector<10x16xbf16>
    %72 = arith.truncf %63 : vector<10x16xf32> to vector<10x16xbf16>
    %73 = arith.truncf %70 : vector<10x16xf32> to vector<10x16xbf16>
    %74 = vector.extract_strided_slice %71 {offsets = [0, 0], sizes = [5, 16], strides = [1, 1]} : vector<10x16xbf16> to vector<5x16xbf16>
    %75 = vector.extract_strided_slice %72 {offsets = [0, 0], sizes = [5, 16], strides = [1, 1]} : vector<10x16xbf16> to vector<5x16xbf16>
    "tpu.trace_start"() <{level = 10 : i32, message = "qd,kd->qk"}> : () -> ()
    %cst_49 = arith.constant dense<0.000000e+00> : vector<5x5xf32>
    %76 = tpu.matmul %74, %75, %cst_49 {dimension_numbers = #tpu.dot_dimension_numbers<[1], [1], [0], [0], [0, 0, 1, 0], [], []>} : vector<5x16xbf16>, vector<5x16xbf16>, vector<5x5xf32> -> vector<5x5xf32>
    "tpu.trace_stop"() : () -> ()
    %cst_50 = arith.constant 2.500000e-01 : f32
    %77 = vector.broadcast %cst_50 : f32 to vector<5x5xf32>
    %78 = arith.mulf %76, %77 : vector<5x5xf32>
    %cst_51 = arith.constant dense<0xFF800000> : vector<5xf32>
    %79 = vector.multi_reduction <maximumf>, %78, %cst_51 [1] : vector<5x5xf32> to vector<5xf32>
    %80 = vector.shape_cast %79 : vector<5xf32> to vector<5x1xf32>
    %81 = vector.broadcast %80 : vector<5x1xf32> to vector<5x5xf32>
    %82 = arith.subf %78, %81 : vector<5x5xf32>
    %83 = math.exp %82 : vector<5x5xf32>
    %cst_52 = arith.constant dense<0.000000e+00> : vector<5xf32>
    %84 = vector.multi_reduction <add>, %83, %cst_52 [1] : vector<5x5xf32> to vector<5xf32>
    %85 = vector.shape_cast %84 : vector<5xf32> to vector<5x1xf32>
    %86 = tpu.reciprocal %85 {approx = true} : vector<5x1xf32> -> vector<5x1xf32>
    %87 = vector.broadcast %86 : vector<5x1xf32> to vector<5x5xf32>
    %88 = arith.mulf %83, %87 : vector<5x5xf32>
    %c0_53 = arith.constant 0 : index
    %c0_54 = arith.constant 0 : index
    %c0_55 = arith.constant 0 : index
    %89 = vector.load %arg25[%c0_53, %c0_54, %c0_55] : memref<8x5x5xf32, #tpu.memory_space<vmem>>, vector<1x5x5xf32>
    %90 = vector.shape_cast %89 : vector<1x5x5xf32> to vector<5x5xf32>
    %91 = vector.shape_cast %88 : vector<5x5xf32> to vector<1x5x5xf32>
    tpu.vector_store %arg25[%c0_53, %c0_54, %c0_55], %91 {strides = array<i32>} : memref<8x5x5xf32, #tpu.memory_space<vmem>>, vector<1x5x5xf32>,
    %92 = arith.truncf %88 : vector<5x5xf32> to vector<5x5xbf16>
    %93 = vector.extract_strided_slice %73 {offsets = [0, 0], sizes = [5, 16], strides = [1, 1]} : vector<10x16xbf16> to vector<5x16xbf16>
    %cst_56 = arith.constant dense<0.000000e+00> : vector<5x16xf32>
    %94 = tpu.matmul %92, %93, %cst_56 {dimension_numbers = #tpu.dot_dimension_numbers<[1], [0], [0], [1], [0, 0, 1, 1], [], []>} : vector<5x5xbf16>, vector<5x16xbf16>, vector<5x16xf32> -> vector<5x16xf32>
    %95 = vector.extract_strided_slice %71 {offsets = [5, 0], sizes = [5, 16], strides = [1, 1]} : vector<10x16xbf16> to vector<5x16xbf16>
    %96 = vector.extract_strided_slice %72 {offsets = [5, 0], sizes = [5, 16], strides = [1, 1]} : vector<10x16xbf16> to vector<5x16xbf16>
    "tpu.trace_start"() <{level = 10 : i32, message = "qd,kd->qk"}> : () -> ()
    %cst_57 = arith.constant dense<0.000000e+00> : vector<5x5xf32>
    %97 = tpu.matmul %95, %96, %cst_57 {dimension_numbers = #tpu.dot_dimension_numbers<[1], [1], [0], [0], [0, 0, 1, 0], [], []>} : vector<5x16xbf16>, vector<5x16xbf16>, vector<5x5xf32> -> vector<5x5xf32>
    "tpu.trace_stop"() : () -> ()
    %cst_58 = arith.constant 2.500000e-01 : f32
    %98 = vector.broadcast %cst_58 : f32 to vector<5x5xf32>
    %99 = arith.mulf %97, %98 : vector<5x5xf32>
    %cst_59 = arith.constant dense<0xFF800000> : vector<5xf32>
    %100 = vector.multi_reduction <maximumf>, %99, %cst_59 [1] : vector<5x5xf32> to vector<5xf32>
    %101 = vector.shape_cast %100 : vector<5xf32> to vector<5x1xf32>
    %102 = vector.broadcast %101 : vector<5x1xf32> to vector<5x5xf32>
    %103 = arith.subf %99, %102 : vector<5x5xf32>
    %104 = math.exp %103 : vector<5x5xf32>
    %cst_60 = arith.constant dense<0.000000e+00> : vector<5xf32>
    %105 = vector.multi_reduction <add>, %104, %cst_60 [1] : vector<5x5xf32> to vector<5xf32>
    %106 = vector.shape_cast %105 : vector<5xf32> to vector<5x1xf32>
    %107 = tpu.reciprocal %106 {approx = true} : vector<5x1xf32> -> vector<5x1xf32>
    %108 = vector.broadcast %107 : vector<5x1xf32> to vector<5x5xf32>
    %109 = arith.mulf %104, %108 : vector<5x5xf32>
    %c2 = arith.constant 2 : index
    %c0_61 = arith.constant 0 : index
    %c0_62 = arith.constant 0 : index
    %110 = vector.load %arg25[%c2, %c0_61, %c0_62] : memref<8x5x5xf32, #tpu.memory_space<vmem>>, vector<1x5x5xf32>
    %111 = vector.shape_cast %110 : vector<1x5x5xf32> to vector<5x5xf32>
    %112 = vector.shape_cast %109 : vector<5x5xf32> to vector<1x5x5xf32>
    tpu.vector_store %arg25[%c2, %c0_61, %c0_62], %112 {strides = array<i32>} : memref<8x5x5xf32, #tpu.memory_space<vmem>>, vector<1x5x5xf32>,
    %113 = arith.truncf %109 : vector<5x5xf32> to vector<5x5xbf16>
    %114 = vector.extract_strided_slice %73 {offsets = [5, 0], sizes = [5, 16], strides = [1, 1]} : vector<10x16xbf16> to vector<5x16xbf16>
    %cst_63 = arith.constant dense<0.000000e+00> : vector<5x16xf32>
    %115 = tpu.matmul %113, %114, %cst_63 {dimension_numbers = #tpu.dot_dimension_numbers<[1], [0], [0], [1], [0, 0, 1, 1], [], []>} : vector<5x5xbf16>, vector<5x16xbf16>, vector<5x16xf32> -> vector<5x16xf32>
    %116 = tpu.concatenate %94, %115 in 0 : vector<5x16xf32>, vector<5x16xf32> -> vector<10x16xf32>
    %117 = arith.truncf %116 : vector<10x16xf32> to vector<10x16xbf16>
    %c0_64 = arith.constant 0 : index
    %c0_65 = arith.constant 0 : index
    %c0_66 = arith.constant 0 : index
    %118 = vector.load %arg14[%c0_64, %c0_65, %c0_66] : memref<4x16x32xbf16, #tpu.memory_space<vmem>>, vector<1x16x32xbf16>
    %119 = vector.shape_cast %118 : vector<1x16x32xbf16> to vector<16x32xbf16>
    %cst_67 = arith.constant dense<0.000000e+00> : vector<10x32xf32>
    %120 = tpu.matmul %117, %119, %cst_67 {dimension_numbers = #tpu.dot_dimension_numbers<[1], [0], [0], [1], [0, 0, 1, 1], [], []>} : vector<10x16xbf16>, vector<16x32xbf16>, vector<10x32xf32> -> vector<10x32xf32>
    %121 = arith.addf %49, %120 : vector<10x32xf32>
    %c1_68 = arith.constant 1 : index
    %c0_69 = arith.constant 0 : index
    %c0_70 = arith.constant 0 : index
    %122 = vector.load %arg8[%c1_68, %c0_69, %c0_70] : memref<4x32x16xbf16, #tpu.memory_space<vmem>>, vector<1x32x16xbf16>
    %123 = vector.shape_cast %122 : vector<1x32x16xbf16> to vector<32x16xbf16>
    %cst_71 = arith.constant dense<0.000000e+00> : vector<10x16xf32>
    %124 = tpu.matmul %48, %123, %cst_71 {dimension_numbers = #tpu.dot_dimension_numbers<[1], [0], [0], [1], [0, 0, 1, 1], [], []>} : vector<10x32xbf16>, vector<32x16xbf16>, vector<10x16xf32> -> vector<10x16xf32>
    %c1_72 = arith.constant 1 : index
    %c0_73 = arith.constant 0 : index
    %c0_74 = arith.constant 0 : index
    %125 = vector.load %arg9[%c1_72, %c0_73, %c0_74] : memref<4x1x16xf32, #tpu.memory_space<vmem>>, vector<1x1x16xf32>
    %126 = vector.shape_cast %125 : vector<1x1x16xf32> to vector<1x16xf32>
    %127 = vector.broadcast %126 : vector<1x16xf32> to vector<10x16xf32>
    %128 = arith.addf %124, %127 : vector<10x16xf32>
    %c1_75 = arith.constant 1 : index
    %c0_76 = arith.constant 0 : index
    %c0_77 = arith.constant 0 : index
    %129 = vector.load %arg10[%c1_75, %c0_76, %c0_77] : memref<4x32x16xbf16, #tpu.memory_space<vmem>>, vector<1x32x16xbf16>
    %130 = vector.shape_cast %129 : vector<1x32x16xbf16> to vector<32x16xbf16>
    %cst_78 = arith.constant dense<0.000000e+00> : vector<10x16xf32>
    %131 = tpu.matmul %48, %130, %cst_78 {dimension_numbers = #tpu.dot_dimension_numbers<[1], [0], [0], [1], [0, 0, 1, 1], [], []>} : vector<10x32xbf16>, vector<32x16xbf16>, vector<10x16xf32> -> vector<10x16xf32>
    %c1_79 = arith.constant 1 : index
    %c0_80 = arith.constant 0 : index
    %c0_81 = arith.constant 0 : index
    %132 = vector.load %arg11[%c1_79, %c0_80, %c0_81] : memref<4x1x16xf32, #tpu.memory_space<vmem>>, vector<1x1x16xf32>
    %133 = vector.shape_cast %132 : vector<1x1x16xf32> to vector<1x16xf32>
    %134 = vector.broadcast %133 : vector<1x16xf32> to vector<10x16xf32>
    %135 = arith.addf %131, %134 : vector<10x16xf32>
    %c1_82 = arith.constant 1 : index
    %c0_83 = arith.constant 0 : index
    %c0_84 = arith.constant 0 : index
    %136 = vector.load %arg12[%c1_82, %c0_83, %c0_84] : memref<4x32x16xbf16, #tpu.memory_space<vmem>>, vector<1x32x16xbf16>
    %137 = vector.shape_cast %136 : vector<1x32x16xbf16> to vector<32x16xbf16>
    %cst_85 = arith.constant dense<0.000000e+00> : vector<10x16xf32>
    %138 = tpu.matmul %48, %137, %cst_85 {dimension_numbers = #tpu.dot_dimension_numbers<[1], [0], [0], [1], [0, 0, 1, 1], [], []>} : vector<10x32xbf16>, vector<32x16xbf16>, vector<10x16xf32> -> vector<10x16xf32>
    %c1_86 = arith.constant 1 : index
    %c0_87 = arith.constant 0 : index
    %c0_88 = arith.constant 0 : index
    %139 = vector.load %arg13[%c1_86, %c0_87, %c0_88] : memref<4x1x16xf32, #tpu.memory_space<vmem>>, vector<1x1x16xf32>
    %140 = vector.shape_cast %139 : vector<1x1x16xf32> to vector<1x16xf32>
    %141 = vector.broadcast %140 : vector<1x16xf32> to vector<10x16xf32>
    %142 = arith.addf %138, %141 : vector<10x16xf32>
    %143 = arith.truncf %128 : vector<10x16xf32> to vector<10x16xbf16>
    %144 = arith.truncf %135 : vector<10x16xf32> to vector<10x16xbf16>
    %145 = arith.truncf %142 : vector<10x16xf32> to vector<10x16xbf16>
    %146 = vector.extract_strided_slice %143 {offsets = [0, 0], sizes = [5, 16], strides = [1, 1]} : vector<10x16xbf16> to vector<5x16xbf16>
    %147 = vector.extract_strided_slice %144 {offsets = [0, 0], sizes = [5, 16], strides = [1, 1]} : vector<10x16xbf16> to vector<5x16xbf16>
    "tpu.trace_start"() <{level = 10 : i32, message = "qd,kd->qk"}> : () -> ()
    %cst_89 = arith.constant dense<0.000000e+00> : vector<5x5xf32>
    %148 = tpu.matmul %146, %147, %cst_89 {dimension_numbers = #tpu.dot_dimension_numbers<[1], [1], [0], [0], [0, 0, 1, 0], [], []>} : vector<5x16xbf16>, vector<5x16xbf16>, vector<5x5xf32> -> vector<5x5xf32>
    "tpu.trace_stop"() : () -> ()
    %cst_90 = arith.constant 2.500000e-01 : f32
    %149 = vector.broadcast %cst_90 : f32 to vector<5x5xf32>
    %150 = arith.mulf %148, %149 : vector<5x5xf32>
    %cst_91 = arith.constant dense<0xFF800000> : vector<5xf32>
    %151 = vector.multi_reduction <maximumf>, %150, %cst_91 [1] : vector<5x5xf32> to vector<5xf32>
    %152 = vector.shape_cast %151 : vector<5xf32> to vector<5x1xf32>
    %153 = vector.broadcast %152 : vector<5x1xf32> to vector<5x5xf32>
    %154 = arith.subf %150, %153 : vector<5x5xf32>
    %155 = math.exp %154 : vector<5x5xf32>
    %cst_92 = arith.constant dense<0.000000e+00> : vector<5xf32>
    %156 = vector.multi_reduction <add>, %155, %cst_92 [1] : vector<5x5xf32> to vector<5xf32>
    %157 = vector.shape_cast %156 : vector<5xf32> to vector<5x1xf32>
    %158 = tpu.reciprocal %157 {approx = true} : vector<5x1xf32> -> vector<5x1xf32>
    %159 = vector.broadcast %158 : vector<5x1xf32> to vector<5x5xf32>
    %160 = arith.mulf %155, %159 : vector<5x5xf32>
    %c1_93 = arith.constant 1 : index
    %c0_94 = arith.constant 0 : index
    %c0_95 = arith.constant 0 : index
    %161 = vector.load %arg25[%c1_93, %c0_94, %c0_95] : memref<8x5x5xf32, #tpu.memory_space<vmem>>, vector<1x5x5xf32>
    %162 = vector.shape_cast %161 : vector<1x5x5xf32> to vector<5x5xf32>
    %163 = vector.shape_cast %160 : vector<5x5xf32> to vector<1x5x5xf32>
    tpu.vector_store %arg25[%c1_93, %c0_94, %c0_95], %163 {strides = array<i32>} : memref<8x5x5xf32, #tpu.memory_space<vmem>>, vector<1x5x5xf32>,
    %164 = arith.truncf %160 : vector<5x5xf32> to vector<5x5xbf16>
    %165 = vector.extract_strided_slice %145 {offsets = [0, 0], sizes = [5, 16], strides = [1, 1]} : vector<10x16xbf16> to vector<5x16xbf16>
    %cst_96 = arith.constant dense<0.000000e+00> : vector<5x16xf32>
    %166 = tpu.matmul %164, %165, %cst_96 {dimension_numbers = #tpu.dot_dimension_numbers<[1], [0], [0], [1], [0, 0, 1, 1], [], []>} : vector<5x5xbf16>, vector<5x16xbf16>, vector<5x16xf32> -> vector<5x16xf32>
    %167 = vector.extract_strided_slice %143 {offsets = [5, 0], sizes = [5, 16], strides = [1, 1]} : vector<10x16xbf16> to vector<5x16xbf16>
    %168 = vector.extract_strided_slice %144 {offsets = [5, 0], sizes = [5, 16], strides = [1, 1]} : vector<10x16xbf16> to vector<5x16xbf16>
    "tpu.trace_start"() <{level = 10 : i32, message = "qd,kd->qk"}> : () -> ()
    %cst_97 = arith.constant dense<0.000000e+00> : vector<5x5xf32>
    %169 = tpu.matmul %167, %168, %cst_97 {dimension_numbers = #tpu.dot_dimension_numbers<[1], [1], [0], [0], [0, 0, 1, 0], [], []>} : vector<5x16xbf16>, vector<5x16xbf16>, vector<5x5xf32> -> vector<5x5xf32>
    "tpu.trace_stop"() : () -> ()
    %cst_98 = arith.constant 2.500000e-01 : f32
    %170 = vector.broadcast %cst_98 : f32 to vector<5x5xf32>
    %171 = arith.mulf %169, %170 : vector<5x5xf32>
    %cst_99 = arith.constant dense<0xFF800000> : vector<5xf32>
    %172 = vector.multi_reduction <maximumf>, %171, %cst_99 [1] : vector<5x5xf32> to vector<5xf32>
    %173 = vector.shape_cast %172 : vector<5xf32> to vector<5x1xf32>
    %174 = vector.broadcast %173 : vector<5x1xf32> to vector<5x5xf32>
    %175 = arith.subf %171, %174 : vector<5x5xf32>
    %176 = math.exp %175 : vector<5x5xf32>
    %cst_100 = arith.constant dense<0.000000e+00> : vector<5xf32>
    %177 = vector.multi_reduction <add>, %176, %cst_100 [1] : vector<5x5xf32> to vector<5xf32>
    %178 = vector.shape_cast %177 : vector<5xf32> to vector<5x1xf32>
    %179 = tpu.reciprocal %178 {approx = true} : vector<5x1xf32> -> vector<5x1xf32>
    %180 = vector.broadcast %179 : vector<5x1xf32> to vector<5x5xf32>
    %181 = arith.mulf %176, %180 : vector<5x5xf32>
    %c3 = arith.constant 3 : index
    %c0_101 = arith.constant 0 : index
    %c0_102 = arith.constant 0 : index
    %182 = vector.load %arg25[%c3, %c0_101, %c0_102] : memref<8x5x5xf32, #tpu.memory_space<vmem>>, vector<1x5x5xf32>
    %183 = vector.shape_cast %182 : vector<1x5x5xf32> to vector<5x5xf32>
    %184 = vector.shape_cast %181 : vector<5x5xf32> to vector<1x5x5xf32>
    tpu.vector_store %arg25[%c3, %c0_101, %c0_102], %184 {strides = array<i32>} : memref<8x5x5xf32, #tpu.memory_space<vmem>>, vector<1x5x5xf32>,
    %185 = arith.truncf %181 : vector<5x5xf32> to vector<5x5xbf16>
    %186 = vector.extract_strided_slice %145 {offsets = [5, 0], sizes = [5, 16], strides = [1, 1]} : vector<10x16xbf16> to vector<5x16xbf16>
    %cst_103 = arith.constant dense<0.000000e+00> : vector<5x16xf32>
    %187 = tpu.matmul %185, %186, %cst_103 {dimension_numbers = #tpu.dot_dimension_numbers<[1], [0], [0], [1], [0, 0, 1, 1], [], []>} : vector<5x5xbf16>, vector<5x16xbf16>, vector<5x16xf32> -> vector<5x16xf32>
    %188 = tpu.concatenate %166, %187 in 0 : vector<5x16xf32>, vector<5x16xf32> -> vector<10x16xf32>
    %189 = arith.truncf %188 : vector<10x16xf32> to vector<10x16xbf16>
    %c1_104 = arith.constant 1 : index
    %c0_105 = arith.constant 0 : index
    %c0_106 = arith.constant 0 : index
    %190 = vector.load %arg14[%c1_104, %c0_105, %c0_106] : memref<4x16x32xbf16, #tpu.memory_space<vmem>>, vector<1x16x32xbf16>
    %191 = vector.shape_cast %190 : vector<1x16x32xbf16> to vector<16x32xbf16>
    %cst_107 = arith.constant dense<0.000000e+00> : vector<10x32xf32>
    %192 = tpu.matmul %189, %191, %cst_107 {dimension_numbers = #tpu.dot_dimension_numbers<[1], [0], [0], [1], [0, 0, 1, 1], [], []>} : vector<10x16xbf16>, vector<16x32xbf16>, vector<10x32xf32> -> vector<10x32xf32>
    %193 = arith.addf %121, %192 : vector<10x32xf32>
    %c0_108 = arith.constant 0 : index
    %c0_109 = arith.constant 0 : index
    %c0_110 = arith.constant 0 : index
    %194 = vector.load %arg15[%c0_108, %c0_109, %c0_110] : memref<2x1x32xf32, #tpu.memory_space<vmem>>, vector<1x1x32xf32>
    %195 = vector.shape_cast %194 : vector<1x1x32xf32> to vector<1x32xf32>
    %196 = vector.broadcast %195 : vector<1x32xf32> to vector<10x32xf32>
    %197 = arith.addf %193, %196 : vector<10x32xf32>
    %198 = arith.addf %197, %21 : vector<10x32xf32>
    %cst_111 = arith.constant dense<0.000000e+00> : vector<10xf32>
    %199 = vector.multi_reduction <add>, %198, %cst_111 [1] : vector<10x32xf32> to vector<10xf32>
    %200 = vector.shape_cast %199 : vector<10xf32> to vector<10x1xf32>
    %cst_112 = arith.constant 3.200000e+01 : f32
    %201 = vector.broadcast %cst_112 : f32 to vector<10x1xf32>
    %202 = arith.divf %200, %201 : vector<10x1xf32>
    %203 = vector.broadcast %202 : vector<10x1xf32> to vector<10x32xf32>
    %204 = arith.subf %198, %203 : vector<10x32xf32>
    %205 = arith.mulf %204, %204 : vector<10x32xf32>
    %cst_113 = arith.constant dense<0.000000e+00> : vector<10xf32>
    %206 = vector.multi_reduction <add>, %205, %cst_113 [1] : vector<10x32xf32> to vector<10xf32>
    %207 = vector.shape_cast %206 : vector<10xf32> to vector<10x1xf32>
    %cst_114 = arith.constant 3.200000e+01 : f32
    %208 = vector.broadcast %cst_114 : f32 to vector<10x1xf32>
    %209 = arith.divf %207, %208 : vector<10x1xf32>
    %210 = vector.broadcast %202 : vector<10x1xf32> to vector<10x32xf32>
    %211 = arith.subf %198, %210 : vector<10x32xf32>
    %cst_115 = arith.constant 9.99999974E-6 : f32
    %212 = vector.broadcast %cst_115 : f32 to vector<10x1xf32>
    %213 = arith.addf %209, %212 : vector<10x1xf32>
    %214 = math.rsqrt %213 : vector<10x1xf32>
    %215 = vector.broadcast %214 : vector<10x1xf32> to vector<10x32xf32>
    %216 = arith.mulf %211, %215 : vector<10x32xf32>
    %217 = vector.broadcast %23 : vector<1x32xf32> to vector<10x32xf32>
    %218 = arith.mulf %216, %217 : vector<10x32xf32>
    %219 = vector.broadcast %25 : vector<1x32xf32> to vector<10x32xf32>
    %220 = arith.addf %218, %219 : vector<10x32xf32>
    %221 = arith.truncf %220 : vector<10x32xf32> to vector<10x32xbf16>
    %c0_116 = arith.constant 0 : index
    %c0_117 = arith.constant 0 : index
    %c0_118 = arith.constant 0 : index
    %222 = vector.load %arg16[%c0_116, %c0_117, %c0_118] : memref<2x32x64xbf16, #tpu.memory_space<vmem>>, vector<1x32x64xbf16>
    %223 = vector.shape_cast %222 : vector<1x32x64xbf16> to vector<32x64xbf16>
    %cst_119 = arith.constant dense<0.000000e+00> : vector<10x64xf32>
    %224 = tpu.matmul %221, %223, %cst_119 {dimension_numbers = #tpu.dot_dimension_numbers<[1], [0], [0], [1], [0, 0, 1, 1], [], []>} : vector<10x32xbf16>, vector<32x64xbf16>, vector<10x64xf32> -> vector<10x64xf32>
    %c0_120 = arith.constant 0 : index
    %c0_121 = arith.constant 0 : index
    %c0_122 = arith.constant 0 : index
    %225 = vector.load %arg17[%c0_120, %c0_121, %c0_122] : memref<2x1x64xf32, #tpu.memory_space<vmem>>, vector<1x1x64xf32>
    %226 = vector.shape_cast %225 : vector<1x1x64xf32> to vector<1x64xf32>
    %227 = vector.broadcast %226 : vector<1x64xf32> to vector<10x64xf32>
    %228 = arith.addf %224, %227 : vector<10x64xf32>
    %cst_123 = arith.constant 5.000000e-01 : f32
    %229 = vector.broadcast %cst_123 : f32 to vector<10x64xf32>
    %230 = arith.mulf %229, %228 : vector<10x64xf32>
    %cst_124 = arith.constant 1.41421354 : f32
    %231 = vector.broadcast %cst_124 : f32 to vector<10x64xf32>
    %232 = arith.divf %228, %231 : vector<10x64xf32>
    %233 = math.erf %232 : vector<10x64xf32>
    %cst_125 = arith.constant 1.000000e+00 : f32
    %234 = vector.broadcast %cst_125 : f32 to vector<10x64xf32>
    %235 = arith.addf %234, %233 : vector<10x64xf32>
    %236 = arith.mulf %230, %235 : vector<10x64xf32>
    %237 = arith.truncf %236 : vector<10x64xf32> to vector<10x64xbf16>
    %c0_126 = arith.constant 0 : index
    %c0_127 = arith.constant 0 : index
    %c0_128 = arith.constant 0 : index
    %238 = vector.load %arg18[%c0_126, %c0_127, %c0_128] : memref<2x64x32xbf16, #tpu.memory_space<vmem>>, vector<1x64x32xbf16>
    %239 = vector.shape_cast %238 : vector<1x64x32xbf16> to vector<64x32xbf16>
    %cst_129 = arith.constant dense<0.000000e+00> : vector<10x32xf32>
    %240 = tpu.matmul %237, %239, %cst_129 {dimension_numbers = #tpu.dot_dimension_numbers<[1], [0], [0], [1], [0, 0, 1, 1], [], []>} : vector<10x64xbf16>, vector<64x32xbf16>, vector<10x32xf32> -> vector<10x32xf32>
    %c0_130 = arith.constant 0 : index
    %c0_131 = arith.constant 0 : index
    %c0_132 = arith.constant 0 : index
    %241 = vector.load %arg19[%c0_130, %c0_131, %c0_132] : memref<2x1x32xf32, #tpu.memory_space<vmem>>, vector<1x1x32xf32>
    %242 = vector.shape_cast %241 : vector<1x1x32xf32> to vector<1x32xf32>
    %243 = vector.broadcast %242 : vector<1x32xf32> to vector<10x32xf32>
    %244 = arith.addf %240, %243 : vector<10x32xf32>
    %245 = arith.addf %244, %198 : vector<10x32xf32>
    %c1_133 = arith.constant 1 : index
    %c0_134 = arith.constant 0 : index
    %c0_135 = arith.constant 0 : index
    %246 = vector.load %arg6[%c1_133, %c0_134, %c0_135] : memref<2x1x32xf32, #tpu.memory_space<vmem>>, vector<1x1x32xf32>
    %247 = vector.shape_cast %246 : vector<1x1x32xf32> to vector<1x32xf32>
    %c1_136 = arith.constant 1 : index
    %c0_137 = arith.constant 0 : index
    %c0_138 = arith.constant 0 : index
    %248 = vector.load %arg7[%c1_136, %c0_137, %c0_138] : memref<2x1x32xf32, #tpu.memory_space<vmem>>, vector<1x1x32xf32>
    %249 = vector.shape_cast %248 : vector<1x1x32xf32> to vector<1x32xf32>
    %cst_139 = arith.constant dense<0.000000e+00> : vector<10xf32>
    %250 = vector.multi_reduction <add>, %245, %cst_139 [1] : vector<10x32xf32> to vector<10xf32>
    %251 = vector.shape_cast %250 : vector<10xf32> to vector<10x1xf32>
    %cst_140 = arith.constant 3.200000e+01 : f32
    %252 = vector.broadcast %cst_140 : f32 to vector<10x1xf32>
    %253 = arith.divf %251, %252 : vector<10x1xf32>
    %254 = vector.broadcast %253 : vector<10x1xf32> to vector<10x32xf32>
    %255 = arith.subf %245, %254 : vector<10x32xf32>
    %256 = arith.mulf %255, %255 : vector<10x32xf32>
    %cst_141 = arith.constant dense<0.000000e+00> : vector<10xf32>
    %257 = vector.multi_reduction <add>, %256, %cst_141 [1] : vector<10x32xf32> to vector<10xf32>
    %258 = vector.shape_cast %257 : vector<10xf32> to vector<10x1xf32>
    %cst_142 = arith.constant 3.200000e+01 : f32
    %259 = vector.broadcast %cst_142 : f32 to vector<10x1xf32>
    %260 = arith.divf %258, %259 : vector<10x1xf32>
    %261 = vector.broadcast %253 : vector<10x1xf32> to vector<10x32xf32>
    %262 = arith.subf %245, %261 : vector<10x32xf32>
    %cst_143 = arith.constant 9.99999974E-6 : f32
    %263 = vector.broadcast %cst_143 : f32 to vector<10x1xf32>
    %264 = arith.addf %260, %263 : vector<10x1xf32>
    %265 = math.rsqrt %264 : vector<10x1xf32>
    %266 = vector.broadcast %265 : vector<10x1xf32> to vector<10x32xf32>
    %267 = arith.mulf %262, %266 : vector<10x32xf32>
    %268 = vector.broadcast %247 : vector<1x32xf32> to vector<10x32xf32>
    %269 = arith.mulf %267, %268 : vector<10x32xf32>
    %270 = vector.broadcast %249 : vector<1x32xf32> to vector<10x32xf32>
    %271 = arith.addf %269, %270 : vector<10x32xf32>
    %272 = arith.truncf %271 : vector<10x32xf32> to vector<10x32xbf16>
    %cst_144 = arith.constant 0.000000e+00 : f32
    %273 = vector.broadcast %cst_144 : f32 to vector<10x32xf32>
    %c2_145 = arith.constant 2 : index
    %c0_146 = arith.constant 0 : index
    %c0_147 = arith.constant 0 : index
    %274 = vector.load %arg8[%c2_145, %c0_146, %c0_147] : memref<4x32x16xbf16, #tpu.memory_space<vmem>>, vector<1x32x16xbf16>
    %275 = vector.shape_cast %274 : vector<1x32x16xbf16> to vector<32x16xbf16>
    %cst_148 = arith.constant dense<0.000000e+00> : vector<10x16xf32>
    %276 = tpu.matmul %272, %275, %cst_148 {dimension_numbers = #tpu.dot_dimension_numbers<[1], [0], [0], [1], [0, 0, 1, 1], [], []>} : vector<10x32xbf16>, vector<32x16xbf16>, vector<10x16xf32> -> vector<10x16xf32>
    %c2_149 = arith.constant 2 : index
    %c0_150 = arith.constant 0 : index
    %c0_151 = arith.constant 0 : index
    %277 = vector.load %arg9[%c2_149, %c0_150, %c0_151] : memref<4x1x16xf32, #tpu.memory_space<vmem>>, vector<1x1x16xf32>
    %278 = vector.shape_cast %277 : vector<1x1x16xf32> to vector<1x16xf32>
    %279 = vector.broadcast %278 : vector<1x16xf32> to vector<10x16xf32>
    %280 = arith.addf %276, %279 : vector<10x16xf32>
    %c2_152 = arith.constant 2 : index
    %c0_153 = arith.constant 0 : index
    %c0_154 = arith.constant 0 : index
    %281 = vector.load %arg10[%c2_152, %c0_153, %c0_154] : memref<4x32x16xbf16, #tpu.memory_space<vmem>>, vector<1x32x16xbf16>
    %282 = vector.shape_cast %281 : vector<1x32x16xbf16> to vector<32x16xbf16>
    %cst_155 = arith.constant dense<0.000000e+00> : vector<10x16xf32>
    %283 = tpu.matmul %272, %282, %cst_155 {dimension_numbers = #tpu.dot_dimension_numbers<[1], [0], [0], [1], [0, 0, 1, 1], [], []>} : vector<10x32xbf16>, vector<32x16xbf16>, vector<10x16xf32> -> vector<10x16xf32>
    %c2_156 = arith.constant 2 : index
    %c0_157 = arith.constant 0 : index
    %c0_158 = arith.constant 0 : index
    %284 = vector.load %arg11[%c2_156, %c0_157, %c0_158] : memref<4x1x16xf32, #tpu.memory_space<vmem>>, vector<1x1x16xf32>
    %285 = vector.shape_cast %284 : vector<1x1x16xf32> to vector<1x16xf32>
    %286 = vector.broadcast %285 : vector<1x16xf32> to vector<10x16xf32>
    %287 = arith.addf %283, %286 : vector<10x16xf32>
    %c2_159 = arith.constant 2 : index
    %c0_160 = arith.constant 0 : index
    %c0_161 = arith.constant 0 : index
    %288 = vector.load %arg12[%c2_159, %c0_160, %c0_161] : memref<4x32x16xbf16, #tpu.memory_space<vmem>>, vector<1x32x16xbf16>
    %289 = vector.shape_cast %288 : vector<1x32x16xbf16> to vector<32x16xbf16>
    %cst_162 = arith.constant dense<0.000000e+00> : vector<10x16xf32>
    %290 = tpu.matmul %272, %289, %cst_162 {dimension_numbers = #tpu.dot_dimension_numbers<[1], [0], [0], [1], [0, 0, 1, 1], [], []>} : vector<10x32xbf16>, vector<32x16xbf16>, vector<10x16xf32> -> vector<10x16xf32>
    %c2_163 = arith.constant 2 : index
    %c0_164 = arith.constant 0 : index
    %c0_165 = arith.constant 0 : index
    %291 = vector.load %arg13[%c2_163, %c0_164, %c0_165] : memref<4x1x16xf32, #tpu.memory_space<vmem>>, vector<1x1x16xf32>
    %292 = vector.shape_cast %291 : vector<1x1x16xf32> to vector<1x16xf32>
    %293 = vector.broadcast %292 : vector<1x16xf32> to vector<10x16xf32>
    %294 = arith.addf %290, %293 : vector<10x16xf32>
    %295 = arith.truncf %280 : vector<10x16xf32> to vector<10x16xbf16>
    %296 = arith.truncf %287 : vector<10x16xf32> to vector<10x16xbf16>
    %297 = arith.truncf %294 : vector<10x16xf32> to vector<10x16xbf16>
    %298 = vector.extract_strided_slice %295 {offsets = [0, 0], sizes = [5, 16], strides = [1, 1]} : vector<10x16xbf16> to vector<5x16xbf16>
    %299 = vector.extract_strided_slice %296 {offsets = [0, 0], sizes = [5, 16], strides = [1, 1]} : vector<10x16xbf16> to vector<5x16xbf16>
    "tpu.trace_start"() <{level = 10 : i32, message = "qd,kd->qk"}> : () -> ()
    %cst_166 = arith.constant dense<0.000000e+00> : vector<5x5xf32>
    %300 = tpu.matmul %298, %299, %cst_166 {dimension_numbers = #tpu.dot_dimension_numbers<[1], [1], [0], [0], [0, 0, 1, 0], [], []>} : vector<5x16xbf16>, vector<5x16xbf16>, vector<5x5xf32> -> vector<5x5xf32>
    "tpu.trace_stop"() : () -> ()
    %cst_167 = arith.constant 2.500000e-01 : f32
    %301 = vector.broadcast %cst_167 : f32 to vector<5x5xf32>
    %302 = arith.mulf %300, %301 : vector<5x5xf32>
    %cst_168 = arith.constant dense<0xFF800000> : vector<5xf32>
    %303 = vector.multi_reduction <maximumf>, %302, %cst_168 [1] : vector<5x5xf32> to vector<5xf32>
    %304 = vector.shape_cast %303 : vector<5xf32> to vector<5x1xf32>
    %305 = vector.broadcast %304 : vector<5x1xf32> to vector<5x5xf32>
    %306 = arith.subf %302, %305 : vector<5x5xf32>
    %307 = math.exp %306 : vector<5x5xf32>
    %cst_169 = arith.constant dense<0.000000e+00> : vector<5xf32>
    %308 = vector.multi_reduction <add>, %307, %cst_169 [1] : vector<5x5xf32> to vector<5xf32>
    %309 = vector.shape_cast %308 : vector<5xf32> to vector<5x1xf32>
    %310 = tpu.reciprocal %309 {approx = true} : vector<5x1xf32> -> vector<5x1xf32>
    %311 = vector.broadcast %310 : vector<5x1xf32> to vector<5x5xf32>
    %312 = arith.mulf %307, %311 : vector<5x5xf32>
    %c4 = arith.constant 4 : index
    %c0_170 = arith.constant 0 : index
    %c0_171 = arith.constant 0 : index
    %313 = vector.load %arg25[%c4, %c0_170, %c0_171] : memref<8x5x5xf32, #tpu.memory_space<vmem>>, vector<1x5x5xf32>
    %314 = vector.shape_cast %313 : vector<1x5x5xf32> to vector<5x5xf32>
    %315 = vector.shape_cast %312 : vector<5x5xf32> to vector<1x5x5xf32>
    tpu.vector_store %arg25[%c4, %c0_170, %c0_171], %315 {strides = array<i32>} : memref<8x5x5xf32, #tpu.memory_space<vmem>>, vector<1x5x5xf32>,
    %316 = arith.truncf %312 : vector<5x5xf32> to vector<5x5xbf16>
    %317 = vector.extract_strided_slice %297 {offsets = [0, 0], sizes = [5, 16], strides = [1, 1]} : vector<10x16xbf16> to vector<5x16xbf16>
    %cst_172 = arith.constant dense<0.000000e+00> : vector<5x16xf32>
    %318 = tpu.matmul %316, %317, %cst_172 {dimension_numbers = #tpu.dot_dimension_numbers<[1], [0], [0], [1], [0, 0, 1, 1], [], []>} : vector<5x5xbf16>, vector<5x16xbf16>, vector<5x16xf32> -> vector<5x16xf32>
    %319 = vector.extract_strided_slice %295 {offsets = [5, 0], sizes = [5, 16], strides = [1, 1]} : vector<10x16xbf16> to vector<5x16xbf16>
    %320 = vector.extract_strided_slice %296 {offsets = [5, 0], sizes = [5, 16], strides = [1, 1]} : vector<10x16xbf16> to vector<5x16xbf16>
    "tpu.trace_start"() <{level = 10 : i32, message = "qd,kd->qk"}> : () -> ()
    %cst_173 = arith.constant dense<0.000000e+00> : vector<5x5xf32>
    %321 = tpu.matmul %319, %320, %cst_173 {dimension_numbers = #tpu.dot_dimension_numbers<[1], [1], [0], [0], [0, 0, 1, 0], [], []>} : vector<5x16xbf16>, vector<5x16xbf16>, vector<5x5xf32> -> vector<5x5xf32>
    "tpu.trace_stop"() : () -> ()
    %cst_174 = arith.constant 2.500000e-01 : f32
    %322 = vector.broadcast %cst_174 : f32 to vector<5x5xf32>
    %323 = arith.mulf %321, %322 : vector<5x5xf32>
    %cst_175 = arith.constant dense<0xFF800000> : vector<5xf32>
    %324 = vector.multi_reduction <maximumf>, %323, %cst_175 [1] : vector<5x5xf32> to vector<5xf32>
    %325 = vector.shape_cast %324 : vector<5xf32> to vector<5x1xf32>
    %326 = vector.broadcast %325 : vector<5x1xf32> to vector<5x5xf32>
    %327 = arith.subf %323, %326 : vector<5x5xf32>
    %328 = math.exp %327 : vector<5x5xf32>
    %cst_176 = arith.constant dense<0.000000e+00> : vector<5xf32>
    %329 = vector.multi_reduction <add>, %328, %cst_176 [1] : vector<5x5xf32> to vector<5xf32>
    %330 = vector.shape_cast %329 : vector<5xf32> to vector<5x1xf32>
    %331 = tpu.reciprocal %330 {approx = true} : vector<5x1xf32> -> vector<5x1xf32>
    %332 = vector.broadcast %331 : vector<5x1xf32> to vector<5x5xf32>
    %333 = arith.mulf %328, %332 : vector<5x5xf32>
    %c6_177 = arith.constant 6 : index
    %c0_178 = arith.constant 0 : index
    %c0_179 = arith.constant 0 : index
    %334 = vector.load %arg25[%c6_177, %c0_178, %c0_179] : memref<8x5x5xf32, #tpu.memory_space<vmem>>, vector<1x5x5xf32>
    %335 = vector.shape_cast %334 : vector<1x5x5xf32> to vector<5x5xf32>
    %336 = vector.shape_cast %333 : vector<5x5xf32> to vector<1x5x5xf32>
    tpu.vector_store %arg25[%c6_177, %c0_178, %c0_179], %336 {strides = array<i32>} : memref<8x5x5xf32, #tpu.memory_space<vmem>>, vector<1x5x5xf32>,
    %337 = arith.truncf %333 : vector<5x5xf32> to vector<5x5xbf16>
    %338 = vector.extract_strided_slice %297 {offsets = [5, 0], sizes = [5, 16], strides = [1, 1]} : vector<10x16xbf16> to vector<5x16xbf16>
    %cst_180 = arith.constant dense<0.000000e+00> : vector<5x16xf32>
    %339 = tpu.matmul %337, %338, %cst_180 {dimension_numbers = #tpu.dot_dimension_numbers<[1], [0], [0], [1], [0, 0, 1, 1], [], []>} : vector<5x5xbf16>, vector<5x16xbf16>, vector<5x16xf32> -> vector<5x16xf32>
    %340 = tpu.concatenate %318, %339 in 0 : vector<5x16xf32>, vector<5x16xf32> -> vector<10x16xf32>
    %341 = arith.truncf %340 : vector<10x16xf32> to vector<10x16xbf16>
    %c2_181 = arith.constant 2 : index
    %c0_182 = arith.constant 0 : index
    %c0_183 = arith.constant 0 : index
    %342 = vector.load %arg14[%c2_181, %c0_182, %c0_183] : memref<4x16x32xbf16, #tpu.memory_space<vmem>>, vector<1x16x32xbf16>
    %343 = vector.shape_cast %342 : vector<1x16x32xbf16> to vector<16x32xbf16>
    %cst_184 = arith.constant dense<0.000000e+00> : vector<10x32xf32>
    %344 = tpu.matmul %341, %343, %cst_184 {dimension_numbers = #tpu.dot_dimension_numbers<[1], [0], [0], [1], [0, 0, 1, 1], [], []>} : vector<10x16xbf16>, vector<16x32xbf16>, vector<10x32xf32> -> vector<10x32xf32>
    %345 = arith.addf %273, %344 : vector<10x32xf32>
    %c3_185 = arith.constant 3 : index
    %c0_186 = arith.constant 0 : index
    %c0_187 = arith.constant 0 : index
    %346 = vector.load %arg8[%c3_185, %c0_186, %c0_187] : memref<4x32x16xbf16, #tpu.memory_space<vmem>>, vector<1x32x16xbf16>
    %347 = vector.shape_cast %346 : vector<1x32x16xbf16> to vector<32x16xbf16>
    %cst_188 = arith.constant dense<0.000000e+00> : vector<10x16xf32>
    %348 = tpu.matmul %272, %347, %cst_188 {dimension_numbers = #tpu.dot_dimension_numbers<[1], [0], [0], [1], [0, 0, 1, 1], [], []>} : vector<10x32xbf16>, vector<32x16xbf16>, vector<10x16xf32> -> vector<10x16xf32>
    %c3_189 = arith.constant 3 : index
    %c0_190 = arith.constant 0 : index
    %c0_191 = arith.constant 0 : index
    %349 = vector.load %arg9[%c3_189, %c0_190, %c0_191] : memref<4x1x16xf32, #tpu.memory_space<vmem>>, vector<1x1x16xf32>
    %350 = vector.shape_cast %349 : vector<1x1x16xf32> to vector<1x16xf32>
    %351 = vector.broadcast %350 : vector<1x16xf32> to vector<10x16xf32>
    %352 = arith.addf %348, %351 : vector<10x16xf32>
    %c3_192 = arith.constant 3 : index
    %c0_193 = arith.constant 0 : index
    %c0_194 = arith.constant 0 : index
    %353 = vector.load %arg10[%c3_192, %c0_193, %c0_194] : memref<4x32x16xbf16, #tpu.memory_space<vmem>>, vector<1x32x16xbf16>
    %354 = vector.shape_cast %353 : vector<1x32x16xbf16> to vector<32x16xbf16>
    %cst_195 = arith.constant dense<0.000000e+00> : vector<10x16xf32>
    %355 = tpu.matmul %272, %354, %cst_195 {dimension_numbers = #tpu.dot_dimension_numbers<[1], [0], [0], [1], [0, 0, 1, 1], [], []>} : vector<10x32xbf16>, vector<32x16xbf16>, vector<10x16xf32> -> vector<10x16xf32>
    %c3_196 = arith.constant 3 : index
    %c0_197 = arith.constant 0 : index
    %c0_198 = arith.constant 0 : index
    %356 = vector.load %arg11[%c3_196, %c0_197, %c0_198] : memref<4x1x16xf32, #tpu.memory_space<vmem>>, vector<1x1x16xf32>
    %357 = vector.shape_cast %356 : vector<1x1x16xf32> to vector<1x16xf32>
    %358 = vector.broadcast %357 : vector<1x16xf32> to vector<10x16xf32>
    %359 = arith.addf %355, %358 : vector<10x16xf32>
    %c3_199 = arith.constant 3 : index
    %c0_200 = arith.constant 0 : index
    %c0_201 = arith.constant 0 : index
    %360 = vector.load %arg12[%c3_199, %c0_200, %c0_201] : memref<4x32x16xbf16, #tpu.memory_space<vmem>>, vector<1x32x16xbf16>
    %361 = vector.shape_cast %360 : vector<1x32x16xbf16> to vector<32x16xbf16>
    %cst_202 = arith.constant dense<0.000000e+00> : vector<10x16xf32>
    %362 = tpu.matmul %272, %361, %cst_202 {dimension_numbers = #tpu.dot_dimension_numbers<[1], [0], [0], [1], [0, 0, 1, 1], [], []>} : vector<10x32xbf16>, vector<32x16xbf16>, vector<10x16xf32> -> vector<10x16xf32>
    %c3_203 = arith.constant 3 : index
    %c0_204 = arith.constant 0 : index
    %c0_205 = arith.constant 0 : index
    %363 = vector.load %arg13[%c3_203, %c0_204, %c0_205] : memref<4x1x16xf32, #tpu.memory_space<vmem>>, vector<1x1x16xf32>
    %364 = vector.shape_cast %363 : vector<1x1x16xf32> to vector<1x16xf32>
    %365 = vector.broadcast %364 : vector<1x16xf32> to vector<10x16xf32>
    %366 = arith.addf %362, %365 : vector<10x16xf32>
    %367 = arith.truncf %352 : vector<10x16xf32> to vector<10x16xbf16>
    %368 = arith.truncf %359 : vector<10x16xf32> to vector<10x16xbf16>
    %369 = arith.truncf %366 : vector<10x16xf32> to vector<10x16xbf16>
    %370 = vector.extract_strided_slice %367 {offsets = [0, 0], sizes = [5, 16], strides = [1, 1]} : vector<10x16xbf16> to vector<5x16xbf16>
    %371 = vector.extract_strided_slice %368 {offsets = [0, 0], sizes = [5, 16], strides = [1, 1]} : vector<10x16xbf16> to vector<5x16xbf16>
    "tpu.trace_start"() <{level = 10 : i32, message = "qd,kd->qk"}> : () -> ()
    %cst_206 = arith.constant dense<0.000000e+00> : vector<5x5xf32>
    %372 = tpu.matmul %370, %371, %cst_206 {dimension_numbers = #tpu.dot_dimension_numbers<[1], [1], [0], [0], [0, 0, 1, 0], [], []>} : vector<5x16xbf16>, vector<5x16xbf16>, vector<5x5xf32> -> vector<5x5xf32>
    "tpu.trace_stop"() : () -> ()
    %cst_207 = arith.constant 2.500000e-01 : f32
    %373 = vector.broadcast %cst_207 : f32 to vector<5x5xf32>
    %374 = arith.mulf %372, %373 : vector<5x5xf32>
    %cst_208 = arith.constant dense<0xFF800000> : vector<5xf32>
    %375 = vector.multi_reduction <maximumf>, %374, %cst_208 [1] : vector<5x5xf32> to vector<5xf32>
    %376 = vector.shape_cast %375 : vector<5xf32> to vector<5x1xf32>
    %377 = vector.broadcast %376 : vector<5x1xf32> to vector<5x5xf32>
    %378 = arith.subf %374, %377 : vector<5x5xf32>
    %379 = math.exp %378 : vector<5x5xf32>
    %cst_209 = arith.constant dense<0.000000e+00> : vector<5xf32>
    %380 = vector.multi_reduction <add>, %379, %cst_209 [1] : vector<5x5xf32> to vector<5xf32>
    %381 = vector.shape_cast %380 : vector<5xf32> to vector<5x1xf32>
    %382 = tpu.reciprocal %381 {approx = true} : vector<5x1xf32> -> vector<5x1xf32>
    %383 = vector.broadcast %382 : vector<5x1xf32> to vector<5x5xf32>
    %384 = arith.mulf %379, %383 : vector<5x5xf32>
    %c5_210 = arith.constant 5 : index
    %c0_211 = arith.constant 0 : index
    %c0_212 = arith.constant 0 : index
    %385 = vector.load %arg25[%c5_210, %c0_211, %c0_212] : memref<8x5x5xf32, #tpu.memory_space<vmem>>, vector<1x5x5xf32>
    %386 = vector.shape_cast %385 : vector<1x5x5xf32> to vector<5x5xf32>
    %387 = vector.shape_cast %384 : vector<5x5xf32> to vector<1x5x5xf32>
    tpu.vector_store %arg25[%c5_210, %c0_211, %c0_212], %387 {strides = array<i32>} : memref<8x5x5xf32, #tpu.memory_space<vmem>>, vector<1x5x5xf32>,
    %388 = arith.truncf %384 : vector<5x5xf32> to vector<5x5xbf16>
    %389 = vector.extract_strided_slice %369 {offsets = [0, 0], sizes = [5, 16], strides = [1, 1]} : vector<10x16xbf16> to vector<5x16xbf16>
    %cst_213 = arith.constant dense<0.000000e+00> : vector<5x16xf32>
    %390 = tpu.matmul %388, %389, %cst_213 {dimension_numbers = #tpu.dot_dimension_numbers<[1], [0], [0], [1], [0, 0, 1, 1], [], []>} : vector<5x5xbf16>, vector<5x16xbf16>, vector<5x16xf32> -> vector<5x16xf32>
    %391 = vector.extract_strided_slice %367 {offsets = [5, 0], sizes = [5, 16], strides = [1, 1]} : vector<10x16xbf16> to vector<5x16xbf16>
    %392 = vector.extract_strided_slice %368 {offsets = [5, 0], sizes = [5, 16], strides = [1, 1]} : vector<10x16xbf16> to vector<5x16xbf16>
    "tpu.trace_start"() <{level = 10 : i32, message = "qd,kd->qk"}> : () -> ()
    %cst_214 = arith.constant dense<0.000000e+00> : vector<5x5xf32>
    %393 = tpu.matmul %391, %392, %cst_214 {dimension_numbers = #tpu.dot_dimension_numbers<[1], [1], [0], [0], [0, 0, 1, 0], [], []>} : vector<5x16xbf16>, vector<5x16xbf16>, vector<5x5xf32> -> vector<5x5xf32>
    "tpu.trace_stop"() : () -> ()
    %cst_215 = arith.constant 2.500000e-01 : f32
    %394 = vector.broadcast %cst_215 : f32 to vector<5x5xf32>
    %395 = arith.mulf %393, %394 : vector<5x5xf32>
    %cst_216 = arith.constant dense<0xFF800000> : vector<5xf32>
    %396 = vector.multi_reduction <maximumf>, %395, %cst_216 [1] : vector<5x5xf32> to vector<5xf32>
    %397 = vector.shape_cast %396 : vector<5xf32> to vector<5x1xf32>
    %398 = vector.broadcast %397 : vector<5x1xf32> to vector<5x5xf32>
    %399 = arith.subf %395, %398 : vector<5x5xf32>
    %400 = math.exp %399 : vector<5x5xf32>
    %cst_217 = arith.constant dense<0.000000e+00> : vector<5xf32>
    %401 = vector.multi_reduction <add>, %400, %cst_217 [1] : vector<5x5xf32> to vector<5xf32>
    %402 = vector.shape_cast %401 : vector<5xf32> to vector<5x1xf32>
    %403 = tpu.reciprocal %402 {approx = true} : vector<5x1xf32> -> vector<5x1xf32>
    %404 = vector.broadcast %403 : vector<5x1xf32> to vector<5x5xf32>
    %405 = arith.mulf %400, %404 : vector<5x5xf32>
    %c7 = arith.constant 7 : index
    %c0_218 = arith.constant 0 : index
    %c0_219 = arith.constant 0 : index
    %406 = vector.load %arg25[%c7, %c0_218, %c0_219] : memref<8x5x5xf32, #tpu.memory_space<vmem>>, vector<1x5x5xf32>
    %407 = vector.shape_cast %406 : vector<1x5x5xf32> to vector<5x5xf32>
    %408 = vector.shape_cast %405 : vector<5x5xf32> to vector<1x5x5xf32>
    tpu.vector_store %arg25[%c7, %c0_218, %c0_219], %408 {strides = array<i32>} : memref<8x5x5xf32, #tpu.memory_space<vmem>>, vector<1x5x5xf32>,
    %409 = arith.truncf %405 : vector<5x5xf32> to vector<5x5xbf16>
    %410 = vector.extract_strided_slice %369 {offsets = [5, 0], sizes = [5, 16], strides = [1, 1]} : vector<10x16xbf16> to vector<5x16xbf16>
    %cst_220 = arith.constant dense<0.000000e+00> : vector<5x16xf32>
    %411 = tpu.matmul %409, %410, %cst_220 {dimension_numbers = #tpu.dot_dimension_numbers<[1], [0], [0], [1], [0, 0, 1, 1], [], []>} : vector<5x5xbf16>, vector<5x16xbf16>, vector<5x16xf32> -> vector<5x16xf32>
    %412 = tpu.concatenate %390, %411 in 0 : vector<5x16xf32>, vector<5x16xf32> -> vector<10x16xf32>
    %413 = arith.truncf %412 : vector<10x16xf32> to vector<10x16xbf16>
    %c3_221 = arith.constant 3 : index
    %c0_222 = arith.constant 0 : index
    %c0_223 = arith.constant 0 : index
    %414 = vector.load %arg14[%c3_221, %c0_222, %c0_223] : memref<4x16x32xbf16, #tpu.memory_space<vmem>>, vector<1x16x32xbf16>
    %415 = vector.shape_cast %414 : vector<1x16x32xbf16> to vector<16x32xbf16>
    %cst_224 = arith.constant dense<0.000000e+00> : vector<10x32xf32>
    %416 = tpu.matmul %413, %415, %cst_224 {dimension_numbers = #tpu.dot_dimension_numbers<[1], [0], [0], [1], [0, 0, 1, 1], [], []>} : vector<10x16xbf16>, vector<16x32xbf16>, vector<10x32xf32> -> vector<10x32xf32>
    %417 = arith.addf %345, %416 : vector<10x32xf32>
    %c1_225 = arith.constant 1 : index
    %c0_226 = arith.constant 0 : index
    %c0_227 = arith.constant 0 : index
    %418 = vector.load %arg15[%c1_225, %c0_226, %c0_227] : memref<2x1x32xf32, #tpu.memory_space<vmem>>, vector<1x1x32xf32>
    %419 = vector.shape_cast %418 : vector<1x1x32xf32> to vector<1x32xf32>
    %420 = vector.broadcast %419 : vector<1x32xf32> to vector<10x32xf32>
    %421 = arith.addf %417, %420 : vector<10x32xf32>
    %422 = arith.addf %421, %245 : vector<10x32xf32>
    %cst_228 = arith.constant dense<0.000000e+00> : vector<10xf32>
    %423 = vector.multi_reduction <add>, %422, %cst_228 [1] : vector<10x32xf32> to vector<10xf32>
    %424 = vector.shape_cast %423 : vector<10xf32> to vector<10x1xf32>
    %cst_229 = arith.constant 3.200000e+01 : f32
    %425 = vector.broadcast %cst_229 : f32 to vector<10x1xf32>
    %426 = arith.divf %424, %425 : vector<10x1xf32>
    %427 = vector.broadcast %426 : vector<10x1xf32> to vector<10x32xf32>
    %428 = arith.subf %422, %427 : vector<10x32xf32>
    %429 = arith.mulf %428, %428 : vector<10x32xf32>
    %cst_230 = arith.constant dense<0.000000e+00> : vector<10xf32>
    %430 = vector.multi_reduction <add>, %429, %cst_230 [1] : vector<10x32xf32> to vector<10xf32>
    %431 = vector.shape_cast %430 : vector<10xf32> to vector<10x1xf32>
    %cst_231 = arith.constant 3.200000e+01 : f32
    %432 = vector.broadcast %cst_231 : f32 to vector<10x1xf32>
    %433 = arith.divf %431, %432 : vector<10x1xf32>
    %434 = vector.broadcast %426 : vector<10x1xf32> to vector<10x32xf32>
    %435 = arith.subf %422, %434 : vector<10x32xf32>
    %cst_232 = arith.constant 9.99999974E-6 : f32
    %436 = vector.broadcast %cst_232 : f32 to vector<10x1xf32>
    %437 = arith.addf %433, %436 : vector<10x1xf32>
    %438 = math.rsqrt %437 : vector<10x1xf32>
    %439 = vector.broadcast %438 : vector<10x1xf32> to vector<10x32xf32>
    %440 = arith.mulf %435, %439 : vector<10x32xf32>
    %441 = vector.broadcast %247 : vector<1x32xf32> to vector<10x32xf32>
    %442 = arith.mulf %440, %441 : vector<10x32xf32>
    %443 = vector.broadcast %249 : vector<1x32xf32> to vector<10x32xf32>
    %444 = arith.addf %442, %443 : vector<10x32xf32>
    %445 = arith.truncf %444 : vector<10x32xf32> to vector<10x32xbf16>
    %c1_233 = arith.constant 1 : index
    %c0_234 = arith.constant 0 : index
    %c0_235 = arith.constant 0 : index
    %446 = vector.load %arg16[%c1_233, %c0_234, %c0_235] : memref<2x32x64xbf16, #tpu.memory_space<vmem>>, vector<1x32x64xbf16>
    %447 = vector.shape_cast %446 : vector<1x32x64xbf16> to vector<32x64xbf16>
    %cst_236 = arith.constant dense<0.000000e+00> : vector<10x64xf32>
    %448 = tpu.matmul %445, %447, %cst_236 {dimension_numbers = #tpu.dot_dimension_numbers<[1], [0], [0], [1], [0, 0, 1, 1], [], []>} : vector<10x32xbf16>, vector<32x64xbf16>, vector<10x64xf32> -> vector<10x64xf32>
    %c1_237 = arith.constant 1 : index
    %c0_238 = arith.constant 0 : index
    %c0_239 = arith.constant 0 : index
    %449 = vector.load %arg17[%c1_237, %c0_238, %c0_239] : memref<2x1x64xf32, #tpu.memory_space<vmem>>, vector<1x1x64xf32>
    %450 = vector.shape_cast %449 : vector<1x1x64xf32> to vector<1x64xf32>
    %451 = vector.broadcast %450 : vector<1x64xf32> to vector<10x64xf32>
    %452 = arith.addf %448, %451 : vector<10x64xf32>
    %cst_240 = arith.constant 5.000000e-01 : f32
    %453 = vector.broadcast %cst_240 : f32 to vector<10x64xf32>
    %454 = arith.mulf %453, %452 : vector<10x64xf32>
    %cst_241 = arith.constant 1.41421354 : f32
    %455 = vector.broadcast %cst_241 : f32 to vector<10x64xf32>
    %456 = arith.divf %452, %455 : vector<10x64xf32>
    %457 = math.erf %456 : vector<10x64xf32>
    %cst_242 = arith.constant 1.000000e+00 : f32
    %458 = vector.broadcast %cst_242 : f32 to vector<10x64xf32>
    %459 = arith.addf %458, %457 : vector<10x64xf32>
    %460 = arith.mulf %454, %459 : vector<10x64xf32>
    %461 = arith.truncf %460 : vector<10x64xf32> to vector<10x64xbf16>
    %c1_243 = arith.constant 1 : index
    %c0_244 = arith.constant 0 : index
    %c0_245 = arith.constant 0 : index
    %462 = vector.load %arg18[%c1_243, %c0_244, %c0_245] : memref<2x64x32xbf16, #tpu.memory_space<vmem>>, vector<1x64x32xbf16>
    %463 = vector.shape_cast %462 : vector<1x64x32xbf16> to vector<64x32xbf16>
    %cst_246 = arith.constant dense<0.000000e+00> : vector<10x32xf32>
    %464 = tpu.matmul %461, %463, %cst_246 {dimension_numbers = #tpu.dot_dimension_numbers<[1], [0], [0], [1], [0, 0, 1, 1], [], []>} : vector<10x64xbf16>, vector<64x32xbf16>, vector<10x32xf32> -> vector<10x32xf32>
    %c1_247 = arith.constant 1 : index
    %c0_248 = arith.constant 0 : index
    %c0_249 = arith.constant 0 : index
    %465 = vector.load %arg19[%c1_247, %c0_248, %c0_249] : memref<2x1x32xf32, #tpu.memory_space<vmem>>, vector<1x1x32xf32>
    %466 = vector.shape_cast %465 : vector<1x1x32xf32> to vector<1x32xf32>
    %467 = vector.broadcast %466 : vector<1x32xf32> to vector<10x32xf32>
    %468 = arith.addf %464, %467 : vector<10x32xf32>
    %469 = arith.addf %468, %422 : vector<10x32xf32>
    %470 = vector.extract_strided_slice %469 {offsets = [0, 0], sizes = [1, 32], strides = [1, 1]} : vector<10x32xf32> to vector<1x32xf32>
    %471 = vector.extract_strided_slice %469 {offsets = [5, 0], sizes = [1, 32], strides = [1, 1]} : vector<10x32xf32> to vector<1x32xf32>
    %472 = tpu.concatenate %470, %471 in 0 : vector<1x32xf32>, vector<1x32xf32> -> vector<2x32xf32>
    %c0_250 = arith.constant 0 : index
    %c0_251 = arith.constant 0 : index
    %473 = vector.load %arg20[%c0_250, %c0_251] : memref<1x32xf32, #tpu.memory_space<vmem>>, vector<1x32xf32>
    %c0_252 = arith.constant 0 : index
    %c0_253 = arith.constant 0 : index
    %474 = vector.load %arg21[%c0_252, %c0_253] : memref<1x32xf32, #tpu.memory_space<vmem>>, vector<1x32xf32>
    %cst_254 = arith.constant dense<0.000000e+00> : vector<2xf32>
    %475 = vector.multi_reduction <add>, %472, %cst_254 [1] : vector<2x32xf32> to vector<2xf32>
    %476 = vector.shape_cast %475 : vector<2xf32> to vector<2x1xf32>
    %cst_255 = arith.constant 3.200000e+01 : f32
    %477 = vector.broadcast %cst_255 : f32 to vector<2x1xf32>
    %478 = arith.divf %476, %477 : vector<2x1xf32>
    %479 = vector.broadcast %478 : vector<2x1xf32> to vector<2x32xf32>
    %480 = arith.subf %472, %479 : vector<2x32xf32>
    %481 = arith.mulf %480, %480 : vector<2x32xf32>
    %cst_256 = arith.constant dense<0.000000e+00> : vector<2xf32>
    %482 = vector.multi_reduction <add>, %481, %cst_256 [1] : vector<2x32xf32> to vector<2xf32>
    %483 = vector.shape_cast %482 : vector<2xf32> to vector<2x1xf32>
    %cst_257 = arith.constant 3.200000e+01 : f32
    %484 = vector.broadcast %cst_257 : f32 to vector<2x1xf32>
    %485 = arith.divf %483, %484 : vector<2x1xf32>
    %486 = vector.broadcast %478 : vector<2x1xf32> to vector<2x32xf32>
    %487 = arith.subf %472, %486 : vector<2x32xf32>
    %cst_258 = arith.constant 9.99999974E-6 : f32
    %488 = vector.broadcast %cst_258 : f32 to vector<2x1xf32>
    %489 = arith.addf %485, %488 : vector<2x1xf32>
    %490 = math.rsqrt %489 : vector<2x1xf32>
    %491 = vector.broadcast %490 : vector<2x1xf32> to vector<2x32xf32>
    %492 = arith.mulf %487, %491 : vector<2x32xf32>
    %493 = vector.broadcast %473 : vector<1x32xf32> to vector<2x32xf32>
    %494 = arith.mulf %492, %493 : vector<2x32xf32>
    %495 = vector.broadcast %474 : vector<1x32xf32> to vector<2x32xf32>
    %496 = arith.addf %494, %495 : vector<2x32xf32>
    %497 = arith.truncf %496 : vector<2x32xf32> to vector<2x32xbf16>
    %c0_259 = arith.constant 0 : index
    %c0_260 = arith.constant 0 : index
    %498 = vector.load %arg22[%c0_259, %c0_260] : memref<32x10xbf16, #tpu.memory_space<vmem>>, vector<32x10xbf16>
    %cst_261 = arith.constant dense<0.000000e+00> : vector<2x10xf32>
    %499 = tpu.matmul %497, %498, %cst_261 {dimension_numbers = #tpu.dot_dimension_numbers<[1], [0], [0], [1], [0, 0, 1, 1], [], []>} : vector<2x32xbf16>, vector<32x10xbf16>, vector<2x10xf32> -> vector<2x10xf32>
    %c0_262 = arith.constant 0 : index
    %c0_263 = arith.constant 0 : index
    %500 = vector.load %arg23[%c0_262, %c0_263] : memref<1x10xf32, #tpu.memory_space<vmem>>, vector<1x10xf32>
    %501 = vector.broadcast %500 : vector<1x10xf32> to vector<2x10xf32>
    %502 = arith.addf %499, %501 : vector<2x10xf32>
    %c0_264 = arith.constant 0 : index
    %c0_265 = arith.constant 0 : index
    %503 = vector.load %arg24[%c0_264, %c0_265] : memref<2x10xf32, #tpu.memory_space<vmem>>, vector<2x10xf32>
    tpu.vector_store %arg24[%c0_264, %c0_265], %502 {strides = array<i32>} : memref<2x10xf32, #tpu.memory_space<vmem>>, vector<2x10xf32>,
    return
  }
  func.func @transform_0(%arg0: i32) -> (i32, i32) {
    %c0_i32 = arith.constant 0 : i32
    %c0_i32_0 = arith.constant 0 : i32
    %c0_i32_1 = arith.constant 0 : i32
    return %c0_i32, %c0_i32_0 : i32, i32
  }
  func.func @transform_1(%arg0: i32) -> (i32, i32) {
    %c0_i32 = arith.constant 0 : i32
    %c0_i32_0 = arith.constant 0 : i32
    %c0_i32_1 = arith.constant 0 : i32
    return %c0_i32, %c0_i32_0 : i32, i32
  }
  func.func @transform_2(%arg0: i32) -> (i32, i32) {
    %c0_i32 = arith.constant 0 : i32
    %c0_i32_0 = arith.constant 0 : i32
    %c0_i32_1 = arith.constant 0 : i32
    return %c0_i32, %c0_i32_0 : i32, i32
  }
  func.func @transform_3(%arg0: i32) -> (i32, i32) {
    %c0_i32 = arith.constant 0 : i32
    %c0_i32_0 = arith.constant 0 : i32
    %c0_i32_1 = arith.constant 0 : i32
    return %c0_i32, %c0_i32_0 : i32, i32
  }
  func.func @transform_4(%arg0: i32) -> (i32, i32) {
    %c0_i32 = arith.constant 0 : i32
    %c0_i32_0 = arith.constant 0 : i32
    %c0_i32_1 = arith.constant 0 : i32
    return %c0_i32, %c0_i32_0 : i32, i32
  }
  func.func @transform_5(%arg0: i32) -> (i32, i32, i32) {
    %c0_i32 = arith.constant 0 : i32
    %c0_i32_0 = arith.constant 0 : i32
    %c0_i32_1 = arith.constant 0 : i32
    %c0_i32_2 = arith.constant 0 : i32
    return %c0_i32, %c0_i32_0, %c0_i32_1 : i32, i32, i32
  }
  func.func @transform_6(%arg0: i32) -> (i32, i32, i32) {
    %c0_i32 = arith.constant 0 : i32
    %c0_i32_0 = arith.constant 0 : i32
    %c0_i32_1 = arith.constant 0 : i32
    %c0_i32_2 = arith.constant 0 : i32
    return %c0_i32, %c0_i32_0, %c0_i32_1 : i32, i32, i32
  }
  func.func @transform_7(%arg0: i32) -> (i32, i32, i32) {
    %c0_i32 = arith.constant 0 : i32
    %c0_i32_0 = arith.constant 0 : i32
    %c0_i32_1 = arith.constant 0 : i32
    %c0_i32_2 = arith.constant 0 : i32
    return %c0_i32, %c0_i32_0, %c0_i32_1 : i32, i32, i32
  }
  func.func @transform_8(%arg0: i32) -> (i32, i32, i32) {
    %c0_i32 = arith.constant 0 : i32
    %c0_i32_0 = arith.constant 0 : i32
    %c0_i32_1 = arith.constant 0 : i32
    %c0_i32_2 = arith.constant 0 : i32
    return %c0_i32, %c0_i32_0, %c0_i32_1 : i32, i32, i32
  }
  func.func @transform_9(%arg0: i32) -> (i32, i32, i32) {
    %c0_i32 = arith.constant 0 : i32
    %c0_i32_0 = arith.constant 0 : i32
    %c0_i32_1 = arith.constant 0 : i32
    %c0_i32_2 = arith.constant 0 : i32
    return %c0_i32, %c0_i32_0, %c0_i32_1 : i32, i32, i32
  }
  func.func @transform_10(%arg0: i32) -> (i32, i32, i32) {
    %c0_i32 = arith.constant 0 : i32
    %c0_i32_0 = arith.constant 0 : i32
    %c0_i32_1 = arith.constant 0 : i32
    %c0_i32_2 = arith.constant 0 : i32
    return %c0_i32, %c0_i32_0, %c0_i32_1 : i32, i32, i32
  }
  func.func @transform_11(%arg0: i32) -> (i32, i32, i32) {
    %c0_i32 = arith.constant 0 : i32
    %c0_i32_0 = arith.constant 0 : i32
    %c0_i32_1 = arith.constant 0 : i32
    %c0_i32_2 = arith.constant 0 : i32
    return %c0_i32, %c0_i32_0, %c0_i32_1 : i32, i32, i32
  }
  func.func @transform_12(%arg0: i32) -> (i32, i32, i32) {
    %c0_i32 = arith.constant 0 : i32
    %c0_i32_0 = arith.constant 0 : i32
    %c0_i32_1 = arith.constant 0 : i32
    %c0_i32_2 = arith.constant 0 : i32
    return %c0_i32, %c0_i32_0, %c0_i32_1 : i32, i32, i32
  }
  func.func @transform_13(%arg0: i32) -> (i32, i32, i32) {
    %c0_i32 = arith.constant 0 : i32
    %c0_i32_0 = arith.constant 0 : i32
    %c0_i32_1 = arith.constant 0 : i32
    %c0_i32_2 = arith.constant 0 : i32
    return %c0_i32, %c0_i32_0, %c0_i32_1 : i32, i32, i32
  }
  func.func @transform_14(%arg0: i32) -> (i32, i32, i32) {
    %c0_i32 = arith.constant 0 : i32
    %c0_i32_0 = arith.constant 0 : i32
    %c0_i32_1 = arith.constant 0 : i32
    %c0_i32_2 = arith.constant 0 : i32
    return %c0_i32, %c0_i32_0, %c0_i32_1 : i32, i32, i32
  }
  func.func @transform_15(%arg0: i32) -> (i32, i32, i32) {
    %c0_i32 = arith.constant 0 : i32
    %c0_i32_0 = arith.constant 0 : i32
    %c0_i32_1 = arith.constant 0 : i32
    %c0_i32_2 = arith.constant 0 : i32
    return %c0_i32, %c0_i32_0, %c0_i32_1 : i32, i32, i32
  }
  func.func @transform_16(%arg0: i32) -> (i32, i32, i32) {
    %c0_i32 = arith.constant 0 : i32
    %c0_i32_0 = arith.constant 0 : i32
    %c0_i32_1 = arith.constant 0 : i32
    %c0_i32_2 = arith.constant 0 : i32
    return %c0_i32, %c0_i32_0, %c0_i32_1 : i32, i32, i32
  }
  func.func @transform_17(%arg0: i32) -> (i32, i32, i32) {
    %c0_i32 = arith.constant 0 : i32
    %c0_i32_0 = arith.constant 0 : i32
    %c0_i32_1 = arith.constant 0 : i32
    %c0_i32_2 = arith.constant 0 : i32
    return %c0_i32, %c0_i32_0, %c0_i32_1 : i32, i32, i32
  }
  func.func @transform_18(%arg0: i32) -> (i32, i32, i32) {
    %c0_i32 = arith.constant 0 : i32
    %c0_i32_0 = arith.constant 0 : i32
    %c0_i32_1 = arith.constant 0 : i32
    %c0_i32_2 = arith.constant 0 : i32
    return %c0_i32, %c0_i32_0, %c0_i32_1 : i32, i32, i32
  }
  func.func @transform_19(%arg0: i32) -> (i32, i32) {
    %c0_i32 = arith.constant 0 : i32
    %c0_i32_0 = arith.constant 0 : i32
    %c0_i32_1 = arith.constant 0 : i32
    return %c0_i32, %c0_i32_0 : i32, i32
  }
  func.func @transform_20(%arg0: i32) -> (i32, i32) {
    %c0_i32 = arith.constant 0 : i32
    %c0_i32_0 = arith.constant 0 : i32
    %c0_i32_1 = arith.constant 0 : i32
    return %c0_i32, %c0_i32_0 : i32, i32
  }
  func.func @transform_21(%arg0: i32) -> (i32, i32) {
    %c0_i32 = arith.constant 0 : i32
    %c0_i32_0 = arith.constant 0 : i32
    %c0_i32_1 = arith.constant 0 : i32
    return %c0_i32, %c0_i32_0 : i32, i32
  }
  func.func @transform_22(%arg0: i32) -> (i32, i32) {
    %c0_i32 = arith.constant 0 : i32
    %c0_i32_0 = arith.constant 0 : i32
    %c0_i32_1 = arith.constant 0 : i32
    return %c0_i32, %c0_i32_0 : i32, i32
  }
  func.func @transform_23(%arg0: i32) -> (i32, i32) {
    %c0_i32 = arith.constant 0 : i32
    %c0_i32_0 = arith.constant 0 : i32
    %c0_i32_1 = arith.constant 0 : i32
    return %c0_i32, %c0_i32_0 : i32, i32
  }
  func.func @transform_24(%arg0: i32) -> (i32, i32, i32) {
    %c0_i32 = arith.constant 0 : i32
    %c0_i32_0 = arith.constant 0 : i32
    %c0_i32_1 = arith.constant 0 : i32
    %c0_i32_2 = arith.constant 0 : i32
    return %c0_i32, %c0_i32_0, %c0_i32_1 : i32, i32, i32
  }
}

</mosaic_0001>

<llo_original>
// kernel: vit_forward.1
$region0: #{vit_forward.1}
  #allocation0 [shape = 'u32[]', space=smem, size = 0x4, offset = 0x4, fixed_abs, tag = 'smem constant byte address 0x4 - core index']
  #allocation1 [shape = 'u32[144,128]{1,0:T(1,128)}', space=vmem, size = 0x12000, scoped, tag = 'internal scratch']
  #allocation2 [shape = 'f32[10,32]{1,0:T(8,128)}', space=vmem, size = 0x2000, scoped, tag = 'scratch operand']
  %s0 = inlined_call_operand.vmem [shape: f32[8,192], index: 0, kind: input, shape index: {}]
  %s1 = inlined_call_operand.vmem [shape: bf16[192,32], index: 1, kind: input, shape index: {}]
  %s2 = inlined_call_operand.vmem [shape: f32[1,32], index: 2, kind: input, shape index: {}]
  %s3 = inlined_call_operand.vmem [shape: f32[1,32], index: 3, kind: input, shape index: {}]
  %s4 = inlined_call_operand.vmem [shape: f32[5,32], index: 4, kind: input, shape index: {}]
  %s5 = inlined_call_operand.vmem [shape: f32[2,1,32], index: 5, kind: input, shape index: {}]
  %s6 = inlined_call_operand.vmem [shape: f32[2,1,32], index: 6, kind: input, shape index: {}]
  %s7 = inlined_call_operand.vmem [shape: bf16[4,32,16], index: 7, kind: input, shape index: {}]
  %s8 = inlined_call_operand.vmem [shape: f32[4,1,16], index: 8, kind: input, shape index: {}]
  %s9 = inlined_call_operand.vmem [shape: bf16[4,32,16], index: 9, kind: input, shape index: {}]
  %s10 = inlined_call_operand.vmem [shape: f32[4,1,16], index: 10, kind: input, shape index: {}]
  %s11 = inlined_call_operand.vmem [shape: bf16[4,32,16], index: 11, kind: input, shape index: {}]
  %s12 = inlined_call_operand.vmem [shape: f32[4,1,16], index: 12, kind: input, shape index: {}]
  %s13 = inlined_call_operand.vmem [shape: bf16[4,16,32], index: 13, kind: input, shape index: {}]
  %s14 = inlined_call_operand.vmem [shape: f32[2,1,32], index: 14, kind: input, shape index: {}]
  %s15 = inlined_call_operand.vmem [shape: bf16[2,32,64], index: 15, kind: input, shape index: {}]
  %s16 = inlined_call_operand.vmem [shape: f32[2,1,64], index: 16, kind: input, shape index: {}]
  %s17 = inlined_call_operand.vmem [shape: bf16[2,64,32], index: 17, kind: input, shape index: {}]
  %s18 = inlined_call_operand.vmem [shape: f32[2,1,32], index: 18, kind: input, shape index: {}]
  %s19 = inlined_call_operand.vmem [shape: f32[1,32], index: 19, kind: input, shape index: {}]
  %s20 = inlined_call_operand.vmem [shape: f32[1,32], index: 20, kind: input, shape index: {}]
  %s21 = inlined_call_operand.vmem [shape: bf16[32,10], index: 21, kind: input, shape index: {}]
  %s22 = inlined_call_operand.vmem [shape: f32[1,10], index: 22, kind: input, shape index: {}]
  %s23 = inlined_call_operand.hbm [shape: f32[2,10], index: 23, kind: output, shape index: {0}]
  %s24 = inlined_call_operand.vmem [shape: f32[8,5,5], index: 24, kind: output, shape index: {1}]
  %25 = xla_tuple %s23, %s24
  %s26 = sld [smem:[#allocation0]]
  $region110: #{vit_forward.1} parent=0
    _
  %s28 = ssub.s32 1, %s26
  %s29 = scalar_select 0, %s28, %s26
  $region1: #{vit_forward.1} parent=0
    #allocation3 [shape = 'u8[1024]{0}', space=vmem, size = 0x400, scoped, tag = 'output window, operand 0, single buffered']
    #allocation4 [shape = 's32[1]{0}', space=sflag, size = 0x4, scoped, tag = 'scoped memory for vit_forward.1']
    %30 = vsyncpa [#allocation4], 0
    // Predicated region
    $region2: #{vit_forward.1} parent=1 // pred_check
      _
    $region3: #{vit_forward.1} parent=1 // pred_check_branch
      %32 = sbr.rel (0) target = $region5
    $region4: #{vit_forward.1} parent=1 // pred_region
      _
    $region5: #{vit_forward.1} parent=1 // pred_fallthru
      _
    // Predicated region
    $region6: #{vit_forward.1} parent=1 // pred_check
      _
    $region7: #{vit_forward.1} parent=1 // pred_check_branch
      %34 = sbr.rel (0) target = $region9
    $region8: #{vit_forward.1} parent=1 // pred_region
      _
    $region9: #{vit_forward.1} parent=1 // pred_fallthru
      _
    // Predicated region
    $region10: #{vit_forward.1} parent=1 // pred_check
      _
    $region11: #{vit_forward.1} parent=1 // pred_check_branch
      %36 = sbr.rel (0) target = $region13
    $region12: #{vit_forward.1} parent=1 // pred_region
      _
    $region13: #{vit_forward.1} parent=1 // pred_fallthru
      _
    // Predicated region
    $region14: #{vit_forward.1} parent=1 // pred_check
      _
    $region15: #{vit_forward.1} parent=1 // pred_check_branch
      %38 = sbr.rel (0) target = $region17
    $region16: #{vit_forward.1} parent=1 // pred_region
      _
    $region17: #{vit_forward.1} parent=1 // pred_fallthru
      _
    // Predicated region
    $region18: #{vit_forward.1} parent=1 // pred_check
      _
    $region19: #{vit_forward.1} parent=1 // pred_check_branch
      %40 = sbr.rel (0) target = $region21
    $region20: #{vit_forward.1} parent=1 // pred_region
      _
    $region21: #{vit_forward.1} parent=1 // pred_fallthru
      _
    // Predicated region
    $region22: #{vit_forward.1} parent=1 // pred_check
      _
    $region23: #{vit_forward.1} parent=1 // pred_check_branch
      %42 = sbr.rel (0) target = $region25
    $region24: #{vit_forward.1} parent=1 // pred_region
      _
    $region25: #{vit_forward.1} parent=1 // pred_fallthru
      _
    // Predicated region
    $region26: #{vit_forward.1} parent=1 // pred_check
      _
    $region27: #{vit_forward.1} parent=1 // pred_check_branch
      %44 = sbr.rel (0) target = $region29
    $region28: #{vit_forward.1} parent=1 // pred_region
      _
    $region29: #{vit_forward.1} parent=1 // pred_fallthru
      _
    // Predicated region
    $region30: #{vit_forward.1} parent=1 // pred_check
      _
    $region31: #{vit_forward.1} parent=1 // pred_check_branch
      %46 = sbr.rel (0) target = $region33
    $region32: #{vit_forward.1} parent=1 // pred_region
      _
    $region33: #{vit_forward.1} parent=1 // pred_fallthru
      _
    // Predicated region
    $region34: #{vit_forward.1} parent=1 // pred_check
      _
    $region35: #{vit_forward.1} parent=1 // pred_check_branch
      %48 = sbr.rel (0) target = $region37
    $region36: #{vit_forward.1} parent=1 // pred_region
      _
    $region37: #{vit_forward.1} parent=1 // pred_fallthru
      _
    // Predicated region
    $region38: #{vit_forward.1} parent=1 // pred_check
      _
    $region39: #{vit_forward.1} parent=1 // pred_check_branch
      %50 = sbr.rel (0) target = $region41
    $region40: #{vit_forward.1} parent=1 // pred_region
      _
    $region41: #{vit_forward.1} parent=1 // pred_fallthru
      _
    // Predicated region
    $region42: #{vit_forward.1} parent=1 // pred_check
      _
    $region43: #{vit_forward.1} parent=1 // pred_check_branch
      %52 = sbr.rel (0) target = $region45
    $region44: #{vit_forward.1} parent=1 // pred_region
      _
    $region45: #{vit_forward.1} parent=1 // pred_fallthru
      _
    // Predicated region
    $region46: #{vit_forward.1} parent=1 // pred_check
      _
    $region47: #{vit_forward.1} parent=1 // pred_check_branch
      %54 = sbr.rel (0) target = $region49
    $region48: #{vit_forward.1} parent=1 // pred_region
      _
    $region49: #{vit_forward.1} parent=1 // pred_fallthru
      _
    // Predicated region
    $region50: #{vit_forward.1} parent=1 // pred_check
      _
    $region51: #{vit_forward.1} parent=1 // pred_check_branch
      %56 = sbr.rel (0) target = $region53
    $region52: #{vit_forward.1} parent=1 // pred_region
      _
    $region53: #{vit_forward.1} parent=1 // pred_fallthru
      _
    // Predicated region
    $region54: #{vit_forward.1} parent=1 // pred_check
      _
    $region55: #{vit_forward.1} parent=1 // pred_check_branch
      %58 = sbr.rel (0) target = $region57
    $region56: #{vit_forward.1} parent=1 // pred_region
      _
    $region57: #{vit_forward.1} parent=1 // pred_fallthru
      _
    // Predicated region
    $region58: #{vit_forward.1} parent=1 // pred_check
      _
    $region59: #{vit_forward.1} parent=1 // pred_check_branch
      %60 = sbr.rel (0) target = $region61
    $region60: #{vit_forward.1} parent=1 // pred_region
      _
    $region61: #{vit_forward.1} parent=1 // pred_fallthru
      _
    // Predicated region
    $region62: #{vit_forward.1} parent=1 // pred_check
      _
    $region63: #{vit_forward.1} parent=1 // pred_check_branch
      %62 = sbr.rel (0) target = $region65
    $region64: #{vit_forward.1} parent=1 // pred_region
      _
    $region65: #{vit_forward.1} parent=1 // pred_fallthru
      _
    // Predicated region
    $region66: #{vit_forward.1} parent=1 // pred_check
      _
    $region67: #{vit_forward.1} parent=1 // pred_check_branch
      %64 = sbr.rel (0) target = $region69
    $region68: #{vit_forward.1} parent=1 // pred_region
      _
    $region69: #{vit_forward.1} parent=1 // pred_fallthru
      _
    // Predicated region
    $region70: #{vit_forward.1} parent=1 // pred_check
      _
    $region71: #{vit_forward.1} parent=1 // pred_check_branch
      %66 = sbr.rel (0) target = $region73
    $region72: #{vit_forward.1} parent=1 // pred_region
      _
    $region73: #{vit_forward.1} parent=1 // pred_fallthru
      _
    // Predicated region
    $region74: #{vit_forward.1} parent=1 // pred_check
      _
    $region75: #{vit_forward.1} parent=1 // pred_check_branch
      %68 = sbr.rel (0) target = $region77
    $region76: #{vit_forward.1} parent=1 // pred_region
      _
    $region77: #{vit_forward.1} parent=1 // pred_fallthru
      _
    // Predicated region
    $region78: #{vit_forward.1} parent=1 // pred_check
      _
    $region79: #{vit_forward.1} parent=1 // pred_check_branch
      %70 = sbr.rel (0) target = $region81
    $region80: #{vit_forward.1} parent=1 // pred_region
      _
    $region81: #{vit_forward.1} parent=1 // pred_fallthru
      _
    // Predicated region
    $region82: #{vit_forward.1} parent=1 // pred_check
      _
    $region83: #{vit_forward.1} parent=1 // pred_check_branch
      %72 = sbr.rel (0) target = $region85
    $region84: #{vit_forward.1} parent=1 // pred_region
      _
    $region85: #{vit_forward.1} parent=1 // pred_fallthru
      _
    // Predicated region
    $region86: #{vit_forward.1} parent=1 // pred_check
      _
    $region87: #{vit_forward.1} parent=1 // pred_check_branch
      %74 = sbr.rel (0) target = $region89
    $region88: #{vit_forward.1} parent=1 // pred_region
      _
    $region89: #{vit_forward.1} parent=1 // pred_fallthru
      _
    // Predicated region
    $region90: #{vit_forward.1} parent=1 // pred_check
      _
    $region91: #{vit_forward.1} parent=1 // pred_check_branch
      %76 = sbr.rel (0) target = $region93
    $region92: #{vit_forward.1} parent=1 // pred_region
      _
    $region93: #{vit_forward.1} parent=1 // pred_fallthru
      _
    %v78 = vld [vmem:[%s0] sm:$0xff]
    %v79 = vld [vmem:[%s0 + $0x8] sm:$0xff]
    %v80 = vpack.c.bf16 %v78, %v78
    %v81 = vpack.c.bf16 %v79, %v79
    %v82 = vld [vmem:[%s1] sm:$0xf]
    %v83 = vld [vmem:[%s1 + $0x4] sm:$0xf]
    %v84 = vld [vmem:[%s1 + $0x8] sm:$0xf]
    %v85 = vld [vmem:[%s1 + $0xc] sm:$0xf]
    %v86 = vld [vmem:[%s1 + $0x10] sm:$0xf]
    %v87 = vld [vmem:[%s1 + $0x14] sm:$0xf]
    %v88 = vld [vmem:[%s1 + $0x18] sm:$0xf]
    %v89 = vld [vmem:[%s1 + $0x1c] sm:$0xf]
    %v90 = vld [vmem:[%s1 + $0x20] sm:$0xf]
    %v91 = vld [vmem:[%s1 + $0x24] sm:$0xf]
    %v92 = vld [vmem:[%s1 + $0x28] sm:$0xf]
    %v93 = vld [vmem:[%s1 + $0x2c] sm:$0xf]
    %v94 = vld [vmem:[%s1 + $0x30] sm:$0xf]
    %v95 = vld [vmem:[%s1 + $0x34] sm:$0xf]
    %v96 = vld [vmem:[%s1 + $0x38] sm:$0xf]
    %v97 = vld [vmem:[%s1 + $0x3c] sm:$0xf]
    %v98 = vld [vmem:[%s1 + $0x40] sm:$0xf]
    %v99 = vld [vmem:[%s1 + $0x44] sm:$0xf]
    %v100 = vld [vmem:[%s1 + $0x48] sm:$0xf]
    %v101 = vld [vmem:[%s1 + $0x4c] sm:$0xf]
    %v102 = vld [vmem:[%s1 + $0x50] sm:$0xf]
    %v103 = vld [vmem:[%s1 + $0x54] sm:$0xf]
    %v104 = vld [vmem:[%s1 + $0x58] sm:$0xf]
    %v105 = vld [vmem:[%s1 + $0x5c] sm:$0xf]
    %v106 = vld [vmem:[%s2] sm:$0x1]
    %v108 = vlaneseq
    %v109 = vshrl.u32 %v108, 7
    %v110 = vsub.s32 0, %v109
    %v111 = vrot.slane %v106, %v110
    %v137 = vunpack.c.l.b16 %v82
    %v138 = vunpack.c.l.b16 %v83
    %v139 = vunpack.c.l.b16 %v84
    %v140 = vunpack.c.l.b16 %v85
    %v141 = vunpack.c.l.b16 %v86
    %v142 = vunpack.c.l.b16 %v87
    %v143 = vunpack.c.l.b16 %v88
    %v144 = vunpack.c.l.b16 %v89
    %v145 = vunpack.c.l.b16 %v90
    %v146 = vunpack.c.l.b16 %v91
    %v147 = vunpack.c.l.b16 %v92
    %v148 = vunpack.c.l.b16 %v93
    %v149 = vunpack.c.l.b16 %v94
    %v150 = vunpack.c.l.b16 %v95
    %v151 = vunpack.c.l.b16 %v96
    %v152 = vunpack.c.l.b16 %v97
    %v153 = vunpack.c.l.b16 %v98
    %v154 = vunpack.c.l.b16 %v99
    %v155 = vunpack.c.l.b16 %v100
    %v156 = vunpack.c.l.b16 %v101
    %v157 = vunpack.c.l.b16 %v102
    %v158 = vunpack.c.l.b16 %v103
    %v159 = vunpack.c.l.b16 %v104
    %v160 = vunpack.c.l.b16 %v105
    %v161 = vpack.c.b16 %v138, %v137
    %v162 = vpack.c.b16 %v140, %v139
    %v163 = vpack.c.b16 %v142, %v141
    %v164 = vpack.c.b16 %v144, %v143
    %v165 = vpack.c.b16 %v146, %v145
    %v166 = vpack.c.b16 %v148, %v147
    %v167 = vpack.c.b16 %v150, %v149
    %v168 = vpack.c.b16 %v152, %v151
    %v169 = vpack.c.b16 %v154, %v153
    %v170 = vpack.c.b16 %v156, %v155
    %v171 = vpack.c.b16 %v158, %v157
    %v172 = vpack.c.b16 %v160, %v159
    %vm185 = vcmask 523264
    %v187 = vsel %vm185, %v81, 0
    %189 = vmatprep.subr.bf16.mxu0 0
    %190 = vmatpush1.bf16.msra.mxu0 %v168
    %191 = vmatprep.subr.bf16.mxu0 0
    %192 = vmatpush1.bf16.msra.mxu0 %v167
    %193 = vmatprep.subr.bf16.mxu0 0
    %194 = vmatpush1.bf16.msra.mxu0 %v166
    %195 = vmatprep.subr.bf16.mxu0 0
    %196 = vmatpush1.bf16.msra.mxu0 %v165
    %197 = vmatprep.subr.bf16.mxu0 0
    %198 = vmatpush1.bf16.msra.mxu0 %v164
    %199 = vmatprep.subr.bf16.mxu0 0
    %200 = vmatpush1.bf16.msra.mxu0 %v163
    %201 = vmatprep.subr.bf16.mxu0 0
    %202 = vmatpush1.bf16.msra.mxu0 %v162
    %203 = vmatprep.subr.bf16.mxu0 0
    %204 = vmatpush1.bf16.msra.mxu0 %v161
    %205 = vmatprep.subr.bf16.mxu0 0
    %206 = vmatpush2.bf16.msra.mxu0 0
    %207 = vmatprep.subr.bf16.mxu0 0
    %208 = vmatpush2.bf16.msra.mxu0 0
    %209 = vmatprep.subr.bf16.mxu0 0
    %210 = vmatpush2.bf16.msra.mxu0 0
    %211 = vmatprep.subr.bf16.mxu0 0
    %212 = vmatpush2.bf16.msra.mxu0 0
    %213 = vmatprep.subr.bf16.mxu0 0
    %214 = vmatpush2.bf16.msra.mxu0 %v172
    %215 = vmatprep.subr.bf16.mxu0 0
    %216 = vmatpush2.bf16.msra.mxu0 %v171
    %217 = vmatprep.subr.bf16.mxu0 0
    %218 = vmatpush2.bf16.msra.mxu0 %v170
    %219 = vmatprep.subr.bf16.mxu0 0
    %220 = vmatpush2.bf16.msra.mxu0 %v169
    %221 = vmatprep.mubr.bf16.mxu0 %v187
    %222 = vmatmul.mubr.bf16.gmra.mxu0 %v80
    %v223 = vpop.f32.mrf.mxu0
    %v224 = vadd.f32 %v111, %v223
    %v225 = vpop.f32.mrf.mxu0
    %v226 = vpop.f32.mrf.mxu0
    %v227 = vpop.f32.mrf.mxu0
    %228 = vdwg.mxu0
    %v229 = vld [vmem:[%s4] sm:$0x1f]
    %v230 = vld [vmem:[%s3] sm:$0x1]
    %v231 = vadd.f32 %v230, %v229
    %vm232 = vcmask 253952
    %233 = vst.msk [vmem:[#allocation2] sm:$0x1] %vm232, %v231
    %v235 = vrot.slane %v229, 1
    %v237 = vadd.f32 %v224, %v235
    %vm238 = vcmask 257024
    %239 = vst.msk [vmem:[#allocation2 + $0x1] sm:$0xf] %vm238, %v237
    %240 = vst.msk [vmem:[#allocation2 + $0x5] sm:$0x1] %vm232, %v231
    %v241 = vrot.slane %v229, 5
    %v243 = vadd.f32 %v224, %v241
    %vm244 = vcmask 261124
    %245 = vst.msk [vmem:[#allocation2 + $0x2] sm:$0xf0] %vm244, %v243
    %v246 = vld [vmem:[#allocation2] sm:$0xff]
    %v247 = vld [vmem:[#allocation2 + $0x8] sm:$0x3]
    %v248 = vld [vmem:[%s5] sm:$0x1]
    %v249 = vld [vmem:[%s6] sm:$0x1]
    %vm250 = vcmask 261120
    %v251 = vsel %vm250, %v246, 0.0
    %252 = vadd.xlane.f32.xlu0 %v251
    %v253 = vpop.xlane.xlu0 %252
    %vm254 = vcmask 254976
    %v255 = vsel %vm254, %v247, 0.0
    %256 = vadd.xlane.f32.xlu0 %v255
    %v257 = vpop.xlane.xlu0 %256
    %v258 = vrcp.pop 32.0
    %v259 = vmul.f32 %v253, %v258
    %v260 = vmul.f32 %v257, %v258
    %v261 = vsub.f32 %v246, %v259
    %v262 = vsub.f32 %v247, %v260
    %v263 = vmul.f32 %v261, %v261
    %v264 = vmul.f32 %v262, %v262
    %v265 = vsel %vm250, %v263, 0.0
    %266 = vadd.xlane.f32.xlu0 %v265
    %v267 = vpop.xlane.xlu0 %266
    %v268 = vsel %vm254, %v264, 0.0
    %269 = vadd.xlane.f32.xlu0 %v268
    %v270 = vpop.xlane.xlu0 %269
    %v271 = vmul.f32 %v267, %v258
    %v272 = vmul.f32 %v270, %v258
    %v273 = vadd.f32 %v271, 1e-05
    %v274 = vadd.f32 %v272, 1e-05
    %v275 = vrsqrt.pop %v273
    %v276 = vrsqrt.pop %v274
    %v277 = vmul.f32 %v261, %v275
    %v278 = vmul.f32 %v262, %v276
    %v280 = vlaneseq
    %v281 = vshrl.u32 %v280, 7
    %v282 = vsub.s32 0, %v281
    %v283 = vrot.slane %v248, %v282
    %v285 = vmul.f32 %v277, %v283
    %v286 = vmul.f32 %v278, %v283
    %v288 = vlaneseq
    %v289 = vshrl.u32 %v288, 7
    %v290 = vsub.s32 0, %v289
    %v291 = vrot.slane %v249, %v290
    %v293 = vadd.f32 %v285, %v291
    %v294 = vadd.f32 %v286, %v291
    %v295 = vpack.c.bf16 %v294, %v293
    %v296 = vld [vmem:[%s7] sm:$0xf]
    %v297 = vld [vmem:[%s7 + $0x4] sm:$0xf]
    %v298 = vld [vmem:[%s7 + $0x8] sm:$0xf]
    %v299 = vld [vmem:[%s7 + $0xc] sm:$0xf]
    %v300 = vld [vmem:[%s8] sm:$0x1]
    %v302 = vlaneseq
    %v303 = vshrl.u32 %v302, 7
    %v304 = vsub.s32 0, %v303
    %v305 = vrot.slane %v300, %v304
    %v311 = vunpack.c.l.b16 %v296
    %v312 = vunpack.c.l.b16 %v297
    %v313 = vunpack.c.l.b16 %v298
    %v314 = vunpack.c.l.b16 %v299
    %v315 = vpack.c.b16 %v312, %v311
    %v316 = vpack.c.b16 %v314, %v313
    %v320 = vsel %vm250, %v295, 0
    %322 = vmatprep.subr.bf16.mxu0 0
    %323 = vmatpush1.bf16.msra.mxu0 0
    %324 = vmatprep.subr.bf16.mxu0 0
    %325 = vmatpush1.bf16.msra.mxu0 0
    %326 = vmatprep.subr.bf16.mxu0 0
    %327 = vmatpush1.bf16.msra.mxu0 0
    %328 = vmatprep.subr.bf16.mxu0 0
    %329 = vmatpush1.bf16.msra.mxu0 0
    %330 = vmatprep.subr.bf16.mxu0 0
    %331 = vmatpush1.bf16.msra.mxu0 0
    %332 = vmatprep.subr.bf16.mxu0 0
    %333 = vmatpush1.bf16.msra.mxu0 0
    %334 = vmatprep.subr.bf16.mxu0 0
    %335 = vmatpush1.bf16.msra.mxu0 %v316
    %336 = vmatprep.subr.bf16.mxu0 0
    %337 = vmatpush1.bf16.msra.mxu0 %v315
    %338 = vmatprep.subr.bf16.mxu0 0
    %339 = vmatpush2.bf16.msra.mxu0 0
    %340 = vmatprep.subr.bf16.mxu0 0
    %341 = vmatpush2.bf16.msra.mxu0 0
    %342 = vmatprep.subr.bf16.mxu0 0
    %343 = vmatpush2.bf16.msra.mxu0 0
    %344 = vmatprep.subr.bf16.mxu0 0
    %345 = vmatpush2.bf16.msra.mxu0 0
    %346 = vmatprep.subr.bf16.mxu0 0
    %347 = vmatpush2.bf16.msra.mxu0 0
    %348 = vmatprep.subr.bf16.mxu0 0
    %349 = vmatpush2.bf16.msra.mxu0 0
    %350 = vmatprep.subr.bf16.mxu0 0
    %351 = vmatpush2.bf16.msra.mxu0 0
    %352 = vmatprep.subr.bf16.mxu0 0
    %353 = vmatpush2.bf16.msra.mxu0 0
    %354 = vmatprep.mubr.bf16.mxu0 0
    %355 = vmatmul.mubr.bf16.gmra.mxu0 %v320
    %v356 = vpop.f32.mrf.mxu0
    %v357 = vadd.f32 %v305, %v356
    %v358 = vpop.f32.mrf.mxu0
    %v359 = vpop.f32.mrf.mxu0
    %v360 = vadd.f32 %v305, %v359
    %v361 = vpop.f32.mrf.mxu0
    %362 = vdwg.mxu0
    %v363 = vld [vmem:[%s9] sm:$0xf]
    %v364 = vld [vmem:[%s9 + $0x4] sm:$0xf]
    %v365 = vld [vmem:[%s9 + $0x8] sm:$0xf]
    %v366 = vld [vmem:[%s9 + $0xc] sm:$0xf]
    %v367 = vld [vmem:[%s10] sm:$0x1]
    %v369 = vlaneseq
    %v370 = vshrl.u32 %v369, 7
    %v371 = vsub.s32 0, %v370
    %v372 = vrot.slane %v367, %v371
    %v378 = vunpack.c.l.b16 %v363
    %v379 = vunpack.c.l.b16 %v364
    %v380 = vunpack.c.l.b16 %v365
    %v381 = vunpack.c.l.b16 %v366
    %v382 = vpack.c.b16 %v379, %v378
    %v383 = vpack.c.b16 %v381, %v380
    %386 = vmatprep.subr.bf16.mxu0 0
    %387 = vmatpush1.bf16.msra.mxu0 0
    %388 = vmatprep.subr.bf16.mxu0 0
    %389 = vmatpush1.bf16.msra.mxu0 0
    %390 = vmatprep.subr.bf16.mxu0 0
    %391 = vmatpush1.bf16.msra.mxu0 0
    %392 = vmatprep.subr.bf16.mxu0 0
    %393 = vmatpush1.bf16.msra.mxu0 0
    %394 = vmatprep.subr.bf16.mxu0 0
    %395 = vmatpush1.bf16.msra.mxu0 0
    %396 = vmatprep.subr.bf16.mxu0 0
    %397 = vmatpush1.bf16.msra.mxu0 0
    %398 = vmatprep.subr.bf16.mxu0 0
    %399 = vmatpush1.bf16.msra.mxu0 %v383
    %400 = vmatprep.subr.bf16.mxu0 0
    %401 = vmatpush1.bf16.msra.mxu0 %v382
    %402 = vmatprep.subr.bf16.mxu0 0
    %403 = vmatpush2.bf16.msra.mxu0 0
    %404 = vmatprep.subr.bf16.mxu0 0
    %405 = vmatpush2.bf16.msra.mxu0 0
    %406 = vmatprep.subr.bf16.mxu0 0
    %407 = vmatpush2.bf16.msra.mxu0 0
    %408 = vmatprep.subr.bf16.mxu0 0
    %409 = vmatpush2.bf16.msra.mxu0 0
    %410 = vmatprep.subr.bf16.mxu0 0
    %411 = vmatpush2.bf16.msra.mxu0 0
    %412 = vmatprep.subr.bf16.mxu0 0
    %413 = vmatpush2.bf16.msra.mxu0 0
    %414 = vmatprep.subr.bf16.mxu0 0
    %415 = vmatpush2.bf16.msra.mxu0 0
    %416 = vmatprep.subr.bf16.mxu0 0
    %417 = vmatpush2.bf16.msra.mxu0 0
    %418 = vmatprep.mubr.bf16.mxu0 0
    %419 = vmatmul.mubr.bf16.gmra.mxu0 %v320
    %v420 = vpop.f32.mrf.mxu0
    %v421 = vadd.f32 %v372, %v420
    %v422 = vpop.f32.mrf.mxu0
    %v423 = vpop.f32.mrf.mxu0
    %v424 = vadd.f32 %v372, %v423
    %v425 = vpop.f32.mrf.mxu0
    %426 = vdwg.mxu0
    %v427 = vld [vmem:[%s11] sm:$0xf]
    %v428 = vld [vmem:[%s11 + $0x4] sm:$0xf]
    %v429 = vld [vmem:[%s11 + $0x8] sm:$0xf]
    %v430 = vld [vmem:[%s11 + $0xc] sm:$0xf]
    %v431 = vld [vmem:[%s12] sm:$0x1]
    %v433 = vlaneseq
    %v434 = vshrl.u32 %v433, 7
    %v435 = vsub.s32 0, %v434
    %v436 = vrot.slane %v431, %v435
    %v442 = vunpack.c.l.b16 %v427
    %v443 = vunpack.c.l.b16 %v428
    %v444 = vunpack.c.l.b16 %v429
    %v445 = vunpack.c.l.b16 %v430
    %v446 = vpack.c.b16 %v443, %v442
    %v447 = vpack.c.b16 %v445, %v444
    %450 = vmatprep.subr.bf16.mxu0 0
    %451 = vmatpush1.bf16.msra.mxu0 0
    %452 = vmatprep.subr.bf16.mxu0 0
    %453 = vmatpush1.bf16.msra.mxu0 0
    %454 = vmatprep.subr.bf16.mxu0 0
    %455 = vmatpush1.bf16.msra.mxu0 0
    %456 = vmatprep.subr.bf16.mxu0 0
    %457 = vmatpush1.bf16.msra.mxu0 0
    %458 = vmatprep.subr.bf16.mxu0 0
    %459 = vmatpush1.bf16.msra.mxu0 0
    %460 = vmatprep.subr.bf16.mxu0 0
    %461 = vmatpush1.bf16.msra.mxu0 0
    %462 = vmatprep.subr.bf16.mxu0 0
    %463 = vmatpush1.bf16.msra.mxu0 %v447
    %464 = vmatprep.subr.bf16.mxu0 0
    %465 = vmatpush1.bf16.msra.mxu0 %v446
    %466 = vmatprep.subr.bf16.mxu0 0
    %467 = vmatpush2.bf16.msra.mxu0 0
    %468 = vmatprep.subr.bf16.mxu0 0
    %469 = vmatpush2.bf16.msra.mxu0 0
    %470 = vmatprep.subr.bf16.mxu0 0
    %471 = vmatpush2.bf16.msra.mxu0 0
    %472 = vmatprep.subr.bf16.mxu0 0
    %473 = vmatpush2.bf16.msra.mxu0 0
    %474 = vmatprep.subr.bf16.mxu0 0
    %475 = vmatpush2.bf16.msra.mxu0 0
    %476 = vmatprep.subr.bf16.mxu0 0
    %477 = vmatpush2.bf16.msra.mxu0 0
    %478 = vmatprep.subr.bf16.mxu0 0
    %479 = vmatpush2.bf16.msra.mxu0 0
    %480 = vmatprep.subr.bf16.mxu0 0
    %481 = vmatpush2.bf16.msra.mxu0 0
    %482 = vmatprep.mubr.bf16.mxu0 0
    %483 = vmatmul.mubr.bf16.gmra.mxu0 %v320
    %v484 = vpop.f32.mrf.mxu0
    %v485 = vadd.f32 %v436, %v484
    %v486 = vpop.f32.mrf.mxu0
    %v487 = vpop.f32.mrf.mxu0
    %v488 = vadd.f32 %v436, %v487
    %v489 = vpop.f32.mrf.mxu0
    %490 = vdwg.mxu0
    %v491 = vpack.c.bf16 %v360, %v357
    %v492 = vpack.c.bf16 %v424, %v421
    %v493 = vpack.c.bf16 %v488, %v485
    %vm494 = vcmask 130048
    %v496 = vsel %vm494, %v491, 0
    %v499 = vsel %vm494, %v492, 0
    %501 = vmatprep.subr.bf16.mxu0 0
    %502 = vmatpush1.bf16.xpose.msra.mxu0 0
    %503 = vmatprep.subr.bf16.mxu0 0
    %504 = vmatpush1.bf16.xpose.msra.mxu0 0
    %505 = vmatprep.subr.bf16.mxu0 0
    %506 = vmatpush1.bf16.xpose.msra.mxu0 0
    %507 = vmatprep.subr.bf16.mxu0 0
    %508 = vmatpush1.bf16.xpose.msra.mxu0 0
    %509 = vmatprep.subr.bf16.mxu0 0
    %510 = vmatpush1.bf16.xpose.msra.mxu0 0
    %511 = vmatprep.subr.bf16.mxu0 0
    %512 = vmatpush1.bf16.xpose.msra.mxu0 0
    %513 = vmatprep.subr.bf16.mxu0 0
    %514 = vmatpush1.bf16.xpose.msra.mxu0 0
    %515 = vmatprep.subr.bf16.mxu0 0
    %516 = vmatpush1.bf16.xpose.msra.mxu0 %v499
    %517 = vmatprep.subr.bf16.mxu0 0
    %518 = vmatpush2.bf16.xpose.msra.mxu0 0
    %519 = vmatprep.subr.bf16.mxu0 0
    %520 = vmatpush2.bf16.xpose.msra.mxu0 0
    %521 = vmatprep.subr.bf16.mxu0 0
    %522 = vmatpush2.bf16.xpose.msra.mxu0 0
    %523 = vmatprep.subr.bf16.mxu0 0
    %524 = vmatpush2.bf16.xpose.msra.mxu0 0
    %525 = vmatprep.subr.bf16.mxu0 0
    %526 = vmatpush2.bf16.xpose.msra.mxu0 0
    %527 = vmatprep.subr.bf16.mxu0 0
    %528 = vmatpush2.bf16.xpose.msra.mxu0 0
    %529 = vmatprep.subr.bf16.mxu0 0
    %530 = vmatpush2.bf16.xpose.msra.mxu0 0
    %531 = vmatprep.subr.bf16.mxu0 0
    %532 = vmatpush2.bf16.xpose.msra.mxu0 0
    %533 = vmatprep.mubr.bf16.mxu0 0
    %534 = vmatmul.mubr.bf16.gmra.mxu0 %v496
    %v535 = vpop.f32.mrf.mxu0
    %v536 = vadd.f32 0.0, %v535
    %v537 = vpop.f32.mrf.mxu0
    %v538 = vpop.f32.mrf.mxu0
    %v539 = vpop.f32.mrf.mxu0
    %540 = vdwg.mxu0
    %v541 = vmul.f32 %v536, 0.25
    %vm542 = vcmask 36864
    %v543 = vsel %vm542, %v541, -inf
    %544 = vmax.xlane.f32.xlu0 %v543
    %v545 = vpop.xlane.xlu0 %544
    %v546 = vsub.f32 %v541, %v545
    %v547 = vmul.f32 %v546, 1.442695
    %v548 = vpow.pop %v547
    %v549 = vsel %vm542, %v548, 0.0
    %550 = vadd.xlane.f32.xlu0 %v549
    %v551 = vpop.xlane.xlu0 %550
    %v552 = vrcp.pop %v551
    %v553 = vmul.f32 %v548, %v552
    %554 = vst.msk [vmem:[%s24] sm:$0x1f] %vm542, %v553
    %v555 = vpack.c.bf16 %v553, %v553
    %vm556 = vcmask 39936
    %v558 = vsel %vm556, %v555, 0
    %vm560 = vcmask 1041408
    %vm561 = vcmask 1042432
    %v562 = vsel %vm560, 4294967295, 65535
    %v563 = vsel %vm561, %v562, 0
    %v565 = vand.u32 %v493, %v563
    %567 = vmatprep.subr.bf16.mxu0 0
    %568 = vmatpush1.bf16.msra.mxu0 0
    %569 = vmatprep.subr.bf16.mxu0 0
    %570 = vmatpush1.bf16.msra.mxu0 0
    %571 = vmatprep.subr.bf16.mxu0 0
    %572 = vmatpush1.bf16.msra.mxu0 0
    %573 = vmatprep.subr.bf16.mxu0 0
    %574 = vmatpush1.bf16.msra.mxu0 0
    %575 = vmatprep.subr.bf16.mxu0 0
    %576 = vmatpush1.bf16.msra.mxu0 0
    %577 = vmatprep.subr.bf16.mxu0 0
    %578 = vmatpush1.bf16.msra.mxu0 0
    %579 = vmatprep.subr.bf16.mxu0 0
    %580 = vmatpush1.bf16.msra.mxu0 0
    %581 = vmatprep.subr.bf16.mxu0 0
    %582 = vmatpush1.bf16.msra.mxu0 %v565
    %583 = vmatprep.subr.bf16.mxu0 0
    %584 = vmatpush2.bf16.msra.mxu0 0
    %585 = vmatprep.subr.bf16.mxu0 0
    %586 = vmatpush2.bf16.msra.mxu0 0
    %587 = vmatprep.subr.bf16.mxu0 0
    %588 = vmatpush2.bf16.msra.mxu0 0
    %589 = vmatprep.subr.bf16.mxu0 0
    %590 = vmatpush2.bf16.msra.mxu0 0
    %591 = vmatprep.subr.bf16.mxu0 0
    %592 = vmatpush2.bf16.msra.mxu0 0
    %593 = vmatprep.subr.bf16.mxu0 0
    %594 = vmatpush2.bf16.msra.mxu0 0
    %595 = vmatprep.subr.bf16.mxu0 0
    %596 = vmatpush2.bf16.msra.mxu0 0
    %597 = vmatprep.subr.bf16.mxu0 0
    %598 = vmatpush2.bf16.msra.mxu0 0
    %599 = vmatprep.mubr.bf16.mxu0 0
    %600 = vmatmul.mubr.bf16.gmra.mxu0 %v558
    %v601 = vpop.f32.mrf.mxu0
    %v602 = vadd.f32 0.0, %v601
    %v603 = vpop.f32.mrf.mxu0
    %v604 = vpop.f32.mrf.mxu0
    %v605 = vpop.f32.mrf.mxu0
    %606 = vdwg.mxu0
    %v607 = vshrl.u32 %v491, 16
    %v609 = vrot.slane %v607, 2
    %v610 = vshll.u32 %v491, 16
    %v612 = vrot.slane %v610, 3
    %v613 = vor.u32 %v609, %v612
    %v614 = vshrl.u32 %v492, 16
    %v616 = vrot.slane %v614, 2
    %v617 = vshll.u32 %v492, 16
    %v619 = vrot.slane %v617, 3
    %v620 = vor.u32 %v616, %v619
    %v622 = vsel %vm494, %v613, 0
    %v625 = vsel %vm494, %v620, 0
    %627 = vmatprep.subr.bf16.mxu0 0
    %628 = vmatpush1.bf16.xpose.msra.mxu0 0
    %629 = vmatprep.subr.bf16.mxu0 0
    %630 = vmatpush1.bf16.xpose.msra.mxu0 0
    %631 = vmatprep.subr.bf16.mxu0 0
    %632 = vmatpush1.bf16.xpose.msra.mxu0 0
    %633 = vmatprep.subr.bf16.mxu0 0
    %634 = vmatpush1.bf16.xpose.msra.mxu0 0
    %635 = vmatprep.subr.bf16.mxu0 0
    %636 = vmatpush1.bf16.xpose.msra.mxu0 0
    %637 = vmatprep.subr.bf16.mxu0 0
    %638 = vmatpush1.bf16.xpose.msra.mxu0 0
    %639 = vmatprep.subr.bf16.mxu0 0
    %640 = vmatpush1.bf16.xpose.msra.mxu0 0
    %641 = vmatprep.subr.bf16.mxu0 0
    %642 = vmatpush1.bf16.xpose.msra.mxu0 %v625
    %643 = vmatprep.subr.bf16.mxu0 0
    %644 = vmatpush2.bf16.xpose.msra.mxu0 0
    %645 = vmatprep.subr.bf16.mxu0 0
    %646 = vmatpush2.bf16.xpose.msra.mxu0 0
    %647 = vmatprep.subr.bf16.mxu0 0
    %648 = vmatpush2.bf16.xpose.msra.mxu0 0
    %649 = vmatprep.subr.bf16.mxu0 0
    %650 = vmatpush2.bf16.xpose.msra.mxu0 0
    %651 = vmatprep.subr.bf16.mxu0 0
    %652 = vmatpush2.bf16.xpose.msra.mxu0 0
    %653 = vmatprep.subr.bf16.mxu0 0
    %654 = vmatpush2.bf16.xpose.msra.mxu0 0
    %655 = vmatprep.subr.bf16.mxu0 0
    %656 = vmatpush2.bf16.xpose.msra.mxu0 0
    %657 = vmatprep.subr.bf16.mxu0 0
    %658 = vmatpush2.bf16.xpose.msra.mxu0 0
    %659 = vmatprep.mubr.bf16.mxu0 0
    %660 = vmatmul.mubr.bf16.gmra.mxu0 %v622
    %v661 = vpop.f32.mrf.mxu0
    %v662 = vadd.f32 0.0, %v661
    %v663 = vpop.f32.mrf.mxu0
    %v664 = vpop.f32.mrf.mxu0
    %v665 = vpop.f32.mrf.mxu0
    %666 = vdwg.mxu0
    %v667 = vmul.f32 %v662, 0.25
    %v668 = vsel %vm542, %v667, -inf
    %669 = vmax.xlane.f32.xlu0 %v668
    %v670 = vpop.xlane.xlu0 %669
    %v671 = vsub.f32 %v667, %v670
    %v672 = vmul.f32 %v671, 1.442695
    %v673 = vpow.pop %v672
    %v674 = vsel %vm542, %v673, 0.0
    %675 = vadd.xlane.f32.xlu0 %v674
    %v676 = vpop.xlane.xlu0 %675
    %v677 = vrcp.pop %v676
    %v678 = vmul.f32 %v673, %v677
    %s679 = scalar_lea.vmem %s24, 16
    %680 = vst.msk [vmem:[%s679] sm:$0x1f] %vm542, %v678
    %v681 = vpack.c.bf16 %v678, %v678
    %v682 = vshrl.u32 %v493, 16
    %v684 = vrot.slane %v682, 2
    %v685 = vshll.u32 %v493, 16
    %v687 = vrot.slane %v685, 3
    %v688 = vor.u32 %v684, %v687
    %v690 = vsel %vm556, %v681, 0
    %v693 = vand.u32 %v688, %v563
    %695 = vmatprep.subr.bf16.mxu0 0
    %696 = vmatpush1.bf16.msra.mxu0 0
    %697 = vmatprep.subr.bf16.mxu0 0
    %698 = vmatpush1.bf16.msra.mxu0 0
    %699 = vmatprep.subr.bf16.mxu0 0
    %700 = vmatpush1.bf16.msra.mxu0 0
    %701 = vmatprep.subr.bf16.mxu0 0
    %702 = vmatpush1.bf16.msra.mxu0 0
    %703 = vmatprep.subr.bf16.mxu0 0
    %704 = vmatpush1.bf16.msra.mxu0 0
    %705 = vmatprep.subr.bf16.mxu0 0
    %706 = vmatpush1.bf16.msra.mxu0 0
    %707 = vmatprep.subr.bf16.mxu0 0
    %708 = vmatpush1.bf16.msra.mxu0 0
    %709 = vmatprep.subr.bf16.mxu0 0
    %710 = vmatpush1.bf16.msra.mxu0 %v693
    %711 = vmatprep.subr.bf16.mxu0 0
    %712 = vmatpush2.bf16.msra.mxu0 0
    %713 = vmatprep.subr.bf16.mxu0 0
    %714 = vmatpush2.bf16.msra.mxu0 0
    %715 = vmatprep.subr.bf16.mxu0 0
    %716 = vmatpush2.bf16.msra.mxu0 0
    %717 = vmatprep.subr.bf16.mxu0 0
    %718 = vmatpush2.bf16.msra.mxu0 0
    %719 = vmatprep.subr.bf16.mxu0 0
    %720 = vmatpush2.bf16.msra.mxu0 0
    %721 = vmatprep.subr.bf16.mxu0 0
    %722 = vmatpush2.bf16.msra.mxu0 0
    %723 = vmatprep.subr.bf16.mxu0 0
    %724 = vmatpush2.bf16.msra.mxu0 0
    %725 = vmatprep.subr.bf16.mxu0 0
    %726 = vmatpush2.bf16.msra.mxu0 0
    %727 = vmatprep.mubr.bf16.mxu0 0
    %728 = vmatmul.mubr.bf16.gmra.mxu0 %v690
    %v729 = vpop.f32.mrf.mxu0
    %v730 = vadd.f32 0.0, %v729
    %v731 = vpop.f32.mrf.mxu0
    %v732 = vpop.f32.mrf.mxu0
    %v733 = vpop.f32.mrf.mxu0
    %734 = vdwg.mxu0
    %v736 = vrot.slane %v730, 3
    %vm738 = vcmask 1044480
    %v739 = vsel %vm738, %v602, %v736
    %v740 = vpack.c.bf16 %v736, %v739
    %v741 = vld [vmem:[%s13] sm:$0xf]
    %v742 = vld [vmem:[%s13 + $0x4] sm:$0xf]
    %s743 = scalar_lea.vmem %s7, 16
    %v744 = vld [vmem:[%s743] sm:$0xf]
    %v745 = vld [vmem:[%s743 + $0x4] sm:$0xf]
    %v746 = vld [vmem:[%s743 + $0x8] sm:$0xf]
    %v747 = vld [vmem:[%s743 + $0xc] sm:$0xf]
    %s748 = scalar_lea.vmem %s8, 1
    %v749 = vld [vmem:[%s748] sm:$0x1]
    %v751 = vlaneseq
    %v752 = vshrl.u32 %v751, 7
    %v753 = vsub.s32 0, %v752
    %v754 = vrot.slane %v749, %v753
    %v760 = vunpack.c.l.b16 %v744
    %v761 = vunpack.c.l.b16 %v745
    %v762 = vunpack.c.l.b16 %v746
    %v763 = vunpack.c.l.b16 %v747
    %v764 = vpack.c.b16 %v761, %v760
    %v765 = vpack.c.b16 %v763, %v762
    %768 = vmatprep.subr.bf16.mxu0 0
    %769 = vmatpush1.bf16.msra.mxu0 0
    %770 = vmatprep.subr.bf16.mxu0 0
    %771 = vmatpush1.bf16.msra.mxu0 0
    %772 = vmatprep.subr.bf16.mxu0 0
    %773 = vmatpush1.bf16.msra.mxu0 0
    %774 = vmatprep.subr.bf16.mxu0 0
    %775 = vmatpush1.bf16.msra.mxu0 0
    %776 = vmatprep.subr.bf16.mxu0 0
    %777 = vmatpush1.bf16.msra.mxu0 0
    %778 = vmatprep.subr.bf16.mxu0 0
    %779 = vmatpush1.bf16.msra.mxu0 0
    %780 = vmatprep.subr.bf16.mxu0 0
    %781 = vmatpush1.bf16.msra.mxu0 %v765
    %782 = vmatprep.subr.bf16.mxu0 0
    %783 = vmatpush1.bf16.msra.mxu0 %v764
    %784 = vmatprep.subr.bf16.mxu0 0
    %785 = vmatpush2.bf16.msra.mxu0 0
    %786 = vmatprep.subr.bf16.mxu0 0
    %787 = vmatpush2.bf16.msra.mxu0 0
    %788 = vmatprep.subr.bf16.mxu0 0
    %789 = vmatpush2.bf16.msra.mxu0 0
    %790 = vmatprep.subr.bf16.mxu0 0
    %791 = vmatpush2.bf16.msra.mxu0 0
    %792 = vmatprep.subr.bf16.mxu0 0
    %793 = vmatpush2.bf16.msra.mxu0 0
    %794 = vmatprep.subr.bf16.mxu0 0
    %795 = vmatpush2.bf16.msra.mxu0 0
    %796 = vmatprep.subr.bf16.mxu0 0
    %797 = vmatpush2.bf16.msra.mxu0 0
    %798 = vmatprep.subr.bf16.mxu0 0
    %799 = vmatpush2.bf16.msra.mxu0 0
    %800 = vmatprep.mubr.bf16.mxu0 0
    %801 = vmatmul.mubr.bf16.gmra.mxu0 %v320
    %v802 = vpop.f32.mrf.mxu0
    %v803 = vadd.f32 %v754, %v802
    %v804 = vpop.f32.mrf.mxu0
    %v805 = vpop.f32.mrf.mxu0
    %v806 = vadd.f32 %v754, %v805
    %v807 = vpop.f32.mrf.mxu0
    %808 = vdwg.mxu0
    %s809 = scalar_lea.vmem %s9, 16
    %v810 = vld [vmem:[%s809] sm:$0xf]
    %v811 = vld [vmem:[%s809 + $0x4] sm:$0xf]
    %v812 = vld [vmem:[%s809 + $0x8] sm:$0xf]
    %v813 = vld [vmem:[%s809 + $0xc] sm:$0xf]
    %s814 = scalar_lea.vmem %s10, 1
    %v815 = vld [vmem:[%s814] sm:$0x1]
    %v817 = vlaneseq
    %v818 = vshrl.u32 %v817, 7
    %v819 = vsub.s32 0, %v818
    %v820 = vrot.slane %v815, %v819
    %v826 = vunpack.c.l.b16 %v810
    %v827 = vunpack.c.l.b16 %v811
    %v828 = vunpack.c.l.b16 %v812
    %v829 = vunpack.c.l.b16 %v813
    %v830 = vpack.c.b16 %v827, %v826
    %v831 = vpack.c.b16 %v829, %v828
    %834 = vmatprep.subr.bf16.mxu0 0
    %835 = vmatpush1.bf16.msra.mxu0 0
    %836 = vmatprep.subr.bf16.mxu0 0
    %837 = vmatpush1.bf16.msra.mxu0 0
    %838 = vmatprep.subr.bf16.mxu0 0
    %839 = vmatpush1.bf16.msra.mxu0 0
    %840 = vmatprep.subr.bf16.mxu0 0
    %841 = vmatpush1.bf16.msra.mxu0 0
    %842 = vmatprep.subr.bf16.mxu0 0
    %843 = vmatpush1.bf16.msra.mxu0 0
    %844 = vmatprep.subr.bf16.mxu0 0
    %845 = vmatpush1.bf16.msra.mxu0 0
    %846 = vmatprep.subr.bf16.mxu0 0
    %847 = vmatpush1.bf16.msra.mxu0 %v831
    %848 = vmatprep.subr.bf16.mxu0 0
    %849 = vmatpush1.bf16.msra.mxu0 %v830
    %850 = vmatprep.subr.bf16.mxu0 0
    %851 = vmatpush2.bf16.msra.mxu0 0
    %852 = vmatprep.subr.bf16.mxu0 0
    %853 = vmatpush2.bf16.msra.mxu0 0
    %854 = vmatprep.subr.bf16.mxu0 0
    %855 = vmatpush2.bf16.msra.mxu0 0
    %856 = vmatprep.subr.bf16.mxu0 0
    %857 = vmatpush2.bf16.msra.mxu0 0
    %858 = vmatprep.subr.bf16.mxu0 0
    %859 = vmatpush2.bf16.msra.mxu0 0
    %860 = vmatprep.subr.bf16.mxu0 0
    %861 = vmatpush2.bf16.msra.mxu0 0
    %862 = vmatprep.subr.bf16.mxu0 0
    %863 = vmatpush2.bf16.msra.mxu0 0
    %864 = vmatprep.subr.bf16.mxu0 0
    %865 = vmatpush2.bf16.msra.mxu0 0
    %866 = vmatprep.mubr.bf16.mxu0 0
    %867 = vmatmul.mubr.bf16.gmra.mxu0 %v320
    %v868 = vpop.f32.mrf.mxu0
    %v869 = vadd.f32 %v820, %v868
    %v870 = vpop.f32.mrf.mxu0
    %v871 = vpop.f32.mrf.mxu0
    %v872 = vadd.f32 %v820, %v871
    %v873 = vpop.f32.mrf.mxu0
    %874 = vdwg.mxu0
    %s875 = scalar_lea.vmem %s11, 16
    %v876 = vld [vmem:[%s875] sm:$0xf]
    %v877 = vld [vmem:[%s875 + $0x4] sm:$0xf]
    %v878 = vld [vmem:[%s875 + $0x8] sm:$0xf]
    %v879 = vld [vmem:[%s875 + $0xc] sm:$0xf]
    %s880 = scalar_lea.vmem %s12, 1
    %v881 = vld [vmem:[%s880] sm:$0x1]
    %v883 = vlaneseq
    %v884 = vshrl.u32 %v883, 7
    %v885 = vsub.s32 0, %v884
    %v886 = vrot.slane %v881, %v885
    %v892 = vunpack.c.l.b16 %v876
    %v893 = vunpack.c.l.b16 %v877
    %v894 = vunpack.c.l.b16 %v878
    %v895 = vunpack.c.l.b16 %v879
    %v896 = vpack.c.b16 %v893, %v892
    %v897 = vpack.c.b16 %v895, %v894
    %900 = vmatprep.subr.bf16.mxu0 0
    %901 = vmatpush1.bf16.msra.mxu0 0
    %902 = vmatprep.subr.bf16.mxu0 0
    %903 = vmatpush1.bf16.msra.mxu0 0
    %904 = vmatprep.subr.bf16.mxu0 0
    %905 = vmatpush1.bf16.msra.mxu0 0
    %906 = vmatprep.subr.bf16.mxu0 0
    %907 = vmatpush1.bf16.msra.mxu0 0
    %908 = vmatprep.subr.bf16.mxu0 0
    %909 = vmatpush1.bf16.msra.mxu0 0
    %910 = vmatprep.subr.bf16.mxu0 0
    %911 = vmatpush1.bf16.msra.mxu0 0
    %912 = vmatprep.subr.bf16.mxu0 0
    %913 = vmatpush1.bf16.msra.mxu0 %v897
    %914 = vmatprep.subr.bf16.mxu0 0
    %915 = vmatpush1.bf16.msra.mxu0 %v896
    %916 = vmatprep.subr.bf16.mxu0 0
    %917 = vmatpush2.bf16.msra.mxu0 0
    %918 = vmatprep.subr.bf16.mxu0 0
    %919 = vmatpush2.bf16.msra.mxu0 0
    %920 = vmatprep.subr.bf16.mxu0 0
    %921 = vmatpush2.bf16.msra.mxu0 0
    %922 = vmatprep.subr.bf16.mxu0 0
    %923 = vmatpush2.bf16.msra.mxu0 0
    %924 = vmatprep.subr.bf16.mxu0 0
    %925 = vmatpush2.bf16.msra.mxu0 0
    %926 = vmatprep.subr.bf16.mxu0 0
    %927 = vmatpush2.bf16.msra.mxu0 0
    %928 = vmatprep.subr.bf16.mxu0 0
    %929 = vmatpush2.bf16.msra.mxu0 0
    %930 = vmatprep.subr.bf16.mxu0 0
    %931 = vmatpush2.bf16.msra.mxu0 0
    %932 = vmatprep.mubr.bf16.mxu0 0
    %933 = vmatmul.mubr.bf16.gmra.mxu0 %v320
    %v934 = vpop.f32.mrf.mxu0
    %v935 = vadd.f32 %v886, %v934
    %v936 = vpop.f32.mrf.mxu0
    %v937 = vpop.f32.mrf.mxu0
    %v938 = vadd.f32 %v886, %v937
    %v939 = vpop.f32.mrf.mxu0
    %940 = vdwg.mxu0
    %v941 = vpack.c.bf16 %v806, %v803
    %v942 = vpack.c.bf16 %v872, %v869
    %v943 = vpack.c.bf16 %v938, %v935
    %v945 = vsel %vm494, %v941, 0
    %v948 = vsel %vm494, %v942, 0
    %950 = vmatprep.subr.bf16.mxu0 0
    %951 = vmatpush1.bf16.xpose.msra.mxu0 0
    %952 = vmatprep.subr.bf16.mxu0 0
    %953 = vmatpush1.bf16.xpose.msra.mxu0 0
    %954 = vmatprep.subr.bf16.mxu0 0
    %955 = vmatpush1.bf16.xpose.msra.mxu0 0
    %956 = vmatprep.subr.bf16.mxu0 0
    %957 = vmatpush1.bf16.xpose.msra.mxu0 0
    %958 = vmatprep.subr.bf16.mxu0 0
    %959 = vmatpush1.bf16.xpose.msra.mxu0 0
    %960 = vmatprep.subr.bf16.mxu0 0
    %961 = vmatpush1.bf16.xpose.msra.mxu0 0
    %962 = vmatprep.subr.bf16.mxu0 0
    %963 = vmatpush1.bf16.xpose.msra.mxu0 0
    %964 = vmatprep.subr.bf16.mxu0 0
    %965 = vmatpush1.bf16.xpose.msra.mxu0 %v948
    %966 = vmatprep.subr.bf16.mxu0 0
    %967 = vmatpush2.bf16.xpose.msra.mxu0 0
    %968 = vmatprep.subr.bf16.mxu0 0
    %969 = vmatpush2.bf16.xpose.msra.mxu0 0
    %970 = vmatprep.subr.bf16.mxu0 0
    %971 = vmatpush2.bf16.xpose.msra.mxu0 0
    %972 = vmatprep.subr.bf16.mxu0 0
    %973 = vmatpush2.bf16.xpose.msra.mxu0 0
    %974 = vmatprep.subr.bf16.mxu0 0
    %975 = vmatpush2.bf16.xpose.msra.mxu0 0
    %976 = vmatprep.subr.bf16.mxu0 0
    %977 = vmatpush2.bf16.xpose.msra.mxu0 0
    %978 = vmatprep.subr.bf16.mxu0 0
    %979 = vmatpush2.bf16.xpose.msra.mxu0 0
    %980 = vmatprep.subr.bf16.mxu0 0
    %981 = vmatpush2.bf16.xpose.msra.mxu0 0
    %982 = vmatprep.mubr.bf16.mxu0 0
    %983 = vmatmul.mubr.bf16.gmra.mxu0 %v945
    %v984 = vpop.f32.mrf.mxu0
    %v985 = vadd.f32 0.0, %v984
    %v986 = vpop.f32.mrf.mxu0
    %v987 = vpop.f32.mrf.mxu0
    %v988 = vpop.f32.mrf.mxu0
    %989 = vdwg.mxu0
    %v990 = vmul.f32 %v985, 0.25
    %v991 = vsel %vm542, %v990, -inf
    %992 = vmax.xlane.f32.xlu0 %v991
    %v993 = vpop.xlane.xlu0 %992
    %v994 = vsub.f32 %v990, %v993
    %v995 = vmul.f32 %v994, 1.442695
    %v996 = vpow.pop %v995
    %v997 = vsel %vm542, %v996, 0.0
    %998 = vadd.xlane.f32.xlu0 %v997
    %v999 = vpop.xlane.xlu0 %998
    %v1000 = vrcp.pop %v999
    %v1001 = vmul.f32 %v996, %v1000
    %s1002 = scalar_lea.vmem %s24, 8
    %1003 = vst.msk [vmem:[%s1002] sm:$0x1f] %vm542, %v1001
    %v1004 = vpack.c.bf16 %v1001, %v1001
    %v1006 = vsel %vm556, %v1004, 0
    %v1009 = vand.u32 %v943, %v563
    %1011 = vmatprep.subr.bf16.mxu0 0
    %1012 = vmatpush1.bf16.msra.mxu0 0
    %1013 = vmatprep.subr.bf16.mxu0 0
    %1014 = vmatpush1.bf16.msra.mxu0 0
    %1015 = vmatprep.subr.bf16.mxu0 0
    %1016 = vmatpush1.bf16.msra.mxu0 0
    %1017 = vmatprep.subr.bf16.mxu0 0
    %1018 = vmatpush1.bf16.msra.mxu0 0
    %1019 = vmatprep.subr.bf16.mxu0 0
    %1020 = vmatpush1.bf16.msra.mxu0 0
    %1021 = vmatprep.subr.bf16.mxu0 0
    %1022 = vmatpush1.bf16.msra.mxu0 0
    %1023 = vmatprep.subr.bf16.mxu0 0
    %1024 = vmatpush1.bf16.msra.mxu0 0
    %1025 = vmatprep.subr.bf16.mxu0 0
    %1026 = vmatpush1.bf16.msra.mxu0 %v1009
    %1027 = vmatprep.subr.bf16.mxu0 0
    %1028 = vmatpush2.bf16.msra.mxu0 0
    %1029 = vmatprep.subr.bf16.mxu0 0
    %1030 = vmatpush2.bf16.msra.mxu0 0
    %1031 = vmatprep.subr.bf16.mxu0 0
    %1032 = vmatpush2.bf16.msra.mxu0 0
    %1033 = vmatprep.subr.bf16.mxu0 0
    %1034 = vmatpush2.bf16.msra.mxu0 0
    %1035 = vmatprep.subr.bf16.mxu0 0
    %1036 = vmatpush2.bf16.msra.mxu0 0
    %1037 = vmatprep.subr.bf16.mxu0 0
    %1038 = vmatpush2.bf16.msra.mxu0 0
    %1039 = vmatprep.subr.bf16.mxu0 0
    %1040 = vmatpush2.bf16.msra.mxu0 0
    %1041 = vmatprep.subr.bf16.mxu0 0
    %1042 = vmatpush2.bf16.msra.mxu0 0
    %1043 = vmatprep.mubr.bf16.mxu0 0
    %1044 = vmatmul.mubr.bf16.gmra.mxu0 %v1006
    %v1045 = vpop.f32.mrf.mxu0
    %v1046 = vadd.f32 0.0, %v1045
    %v1047 = vpop.f32.mrf.mxu0
    %v1048 = vpop.f32.mrf.mxu0
    %v1049 = vpop.f32.mrf.mxu0
    %1050 = vdwg.mxu0
    %v1051 = vshrl.u32 %v941, 16
    %v1053 = vrot.slane %v1051, 2
    %v1054 = vshll.u32 %v941, 16
    %v1056 = vrot.slane %v1054, 3
    %v1057 = vor.u32 %v1053, %v1056
    %v1058 = vshrl.u32 %v942, 16
    %v1060 = vrot.slane %v1058, 2
    %v1061 = vshll.u32 %v942, 16
    %v1063 = vrot.slane %v1061, 3
    %v1064 = vor.u32 %v1060, %v1063
    %v1066 = vsel %vm494, %v1057, 0
    %v1069 = vsel %vm494, %v1064, 0
    %1071 = vmatprep.subr.bf16.mxu0 0
    %1072 = vmatpush1.bf16.xpose.msra.mxu0 0
    %1073 = vmatprep.subr.bf16.mxu0 0
    %1074 = vmatpush1.bf16.xpose.msra.mxu0 0
    %1075 = vmatprep.subr.bf16.mxu0 0
    %1076 = vmatpush1.bf16.xpose.msra.mxu0 0
    %1077 = vmatprep.subr.bf16.mxu0 0
    %1078 = vmatpush1.bf16.xpose.msra.mxu0 0
    %1079 = vmatprep.subr.bf16.mxu0 0
    %1080 = vmatpush1.bf16.xpose.msra.mxu0 0
    %1081 = vmatprep.subr.bf16.mxu0 0
    %1082 = vmatpush1.bf16.xpose.msra.mxu0 0
    %1083 = vmatprep.subr.bf16.mxu0 0
    %1084 = vmatpush1.bf16.xpose.msra.mxu0 0
    %1085 = vmatprep.subr.bf16.mxu0 0
    %1086 = vmatpush1.bf16.xpose.msra.mxu0 %v1069
    %1087 = vmatprep.subr.bf16.mxu0 0
    %1088 = vmatpush2.bf16.xpose.msra.mxu0 0
    %1089 = vmatprep.subr.bf16.mxu0 0
    %1090 = vmatpush2.bf16.xpose.msra.mxu0 0
    %1091 = vmatprep.subr.bf16.mxu0 0
    %1092 = vmatpush2.bf16.xpose.msra.mxu0 0
    %1093 = vmatprep.subr.bf16.mxu0 0
    %1094 = vmatpush2.bf16.xpose.msra.mxu0 0
    %1095 = vmatprep.subr.bf16.mxu0 0
    %1096 = vmatpush2.bf16.xpose.msra.mxu0 0
    %1097 = vmatprep.subr.bf16.mxu0 0
    %1098 = vmatpush2.bf16.xpose.msra.mxu0 0
    %1099 = vmatprep.subr.bf16.mxu0 0
    %1100 = vmatpush2.bf16.xpose.msra.mxu0 0
    %1101 = vmatprep.subr.bf16.mxu0 0
    %1102 = vmatpush2.bf16.xpose.msra.mxu0 0
    %1103 = vmatprep.mubr.bf16.mxu0 0
    %1104 = vmatmul.mubr.bf16.gmra.mxu0 %v1066
    %v1105 = vpop.f32.mrf.mxu0
    %v1106 = vadd.f32 0.0, %v1105
    %v1107 = vpop.f32.mrf.mxu0
    %v1108 = vpop.f32.mrf.mxu0
    %v1109 = vpop.f32.mrf.mxu0
    %1110 = vdwg.mxu0
    %v1111 = vmul.f32 %v1106, 0.25
    %v1112 = vsel %vm542, %v1111, -inf
    %1113 = vmax.xlane.f32.xlu0 %v1112
    %v1114 = vpop.xlane.xlu0 %1113
    %v1115 = vsub.f32 %v1111, %v1114
    %v1116 = vmul.f32 %v1115, 1.442695
    %v1117 = vpow.pop %v1116
    %v1118 = vsel %vm542, %v1117, 0.0
    %1119 = vadd.xlane.f32.xlu0 %v1118
    %v1120 = vpop.xlane.xlu0 %1119
    %v1121 = vrcp.pop %v1120
    %v1122 = vmul.f32 %v1117, %v1121
    %s1123 = scalar_lea.vmem %s24, 24
    %1124 = vst.msk [vmem:[%s1123] sm:$0x1f] %vm542, %v1122
    %v1125 = vpack.c.bf16 %v1122, %v1122
    %v1126 = vshrl.u32 %v943, 16
    %v1128 = vrot.slane %v1126, 2
    %v1129 = vshll.u32 %v943, 16
    %v1131 = vrot.slane %v1129, 3
    %v1132 = vor.u32 %v1128, %v1131
    %v1134 = vsel %vm556, %v1125, 0
    %v1137 = vand.u32 %v1132, %v563
    %1139 = vmatprep.subr.bf16.mxu0 0
    %1140 = vmatpush1.bf16.msra.mxu0 0
    %1141 = vmatprep.subr.bf16.mxu0 0
    %1142 = vmatpush1.bf16.msra.mxu0 0
    %1143 = vmatprep.subr.bf16.mxu0 0
    %1144 = vmatpush1.bf16.msra.mxu0 0
    %1145 = vmatprep.subr.bf16.mxu0 0
    %1146 = vmatpush1.bf16.msra.mxu0 0
    %1147 = vmatprep.subr.bf16.mxu0 0
    %1148 = vmatpush1.bf16.msra.mxu0 0
    %1149 = vmatprep.subr.bf16.mxu0 0
    %1150 = vmatpush1.bf16.msra.mxu0 0
    %1151 = vmatprep.subr.bf16.mxu0 0
    %1152 = vmatpush1.bf16.msra.mxu0 0
    %1153 = vmatprep.subr.bf16.mxu0 0
    %1154 = vmatpush1.bf16.msra.mxu0 %v1137
    %1155 = vmatprep.subr.bf16.mxu0 0
    %1156 = vmatpush2.bf16.msra.mxu0 0
    %1157 = vmatprep.subr.bf16.mxu0 0
    %1158 = vmatpush2.bf16.msra.mxu0 0
    %1159 = vmatprep.subr.bf16.mxu0 0
    %1160 = vmatpush2.bf16.msra.mxu0 0
    %1161 = vmatprep.subr.bf16.mxu0 0
    %1162 = vmatpush2.bf16.msra.mxu0 0
    %1163 = vmatprep.subr.bf16.mxu0 0
    %1164 = vmatpush2.bf16.msra.mxu0 0
    %1165 = vmatprep.subr.bf16.mxu0 0
    %1166 = vmatpush2.bf16.msra.mxu0 0
    %1167 = vmatprep.subr.bf16.mxu0 0
    %1168 = vmatpush2.bf16.msra.mxu0 0
    %1169 = vmatprep.subr.bf16.mxu0 0
    %1170 = vmatpush2.bf16.msra.mxu0 0
    %1171 = vmatprep.mubr.bf16.mxu0 0
    %1172 = vmatmul.mubr.bf16.gmra.mxu0 %v1134
    %v1173 = vpop.f32.mrf.mxu0
    %v1174 = vadd.f32 0.0, %v1173
    %v1175 = vpop.f32.mrf.mxu0
    %v1176 = vpop.f32.mrf.mxu0
    %v1177 = vpop.f32.mrf.mxu0
    %1178 = vdwg.mxu0
    %v1180 = vrot.slane %v1174, 3
    %v1182 = vsel %vm738, %v1046, %v1180
    %v1183 = vpack.c.bf16 %v1180, %v1182
    %s1184 = scalar_lea.vmem %s13, 8
    %v1185 = vld [vmem:[%s1184] sm:$0xf]
    %v1186 = vld [vmem:[%s1184 + $0x4] sm:$0xf]
    %v1189 = vunpack.c.l.b16 %v1185
    %v1190 = vunpack.c.l.b16 %v1186
    %v1191 = vpack.c.b16 %v1190, %v1189
    %v1194 = vsel %vm494, %v1183, 0
    %1196 = vmatprep.subr.bf16.mxu0 0
    %1197 = vmatpush1.bf16.msra.mxu0 0
    %1198 = vmatprep.subr.bf16.mxu0 0
    %1199 = vmatpush1.bf16.msra.mxu0 0
    %1200 = vmatprep.subr.bf16.mxu0 0
    %1201 = vmatpush1.bf16.msra.mxu0 0
    %1202 = vmatprep.subr.bf16.mxu0 0
    %1203 = vmatpush1.bf16.msra.mxu0 0
    %1204 = vmatprep.subr.bf16.mxu0 0
    %1205 = vmatpush1.bf16.msra.mxu0 0
    %1206 = vmatprep.subr.bf16.mxu0 0
    %1207 = vmatpush1.bf16.msra.mxu0 0
    %1208 = vmatprep.subr.bf16.mxu0 0
    %1209 = vmatpush1.bf16.msra.mxu0 0
    %1210 = vmatprep.subr.bf16.mxu0 0
    %1211 = vmatpush1.bf16.msra.mxu0 %v1191
    %1212 = vmatprep.subr.bf16.mxu0 0
    %1213 = vmatpush2.bf16.msra.mxu0 0
    %1214 = vmatprep.subr.bf16.mxu0 0
    %1215 = vmatpush2.bf16.msra.mxu0 0
    %1216 = vmatprep.subr.bf16.mxu0 0
    %1217 = vmatpush2.bf16.msra.mxu0 0
    %1218 = vmatprep.subr.bf16.mxu0 0
    %1219 = vmatpush2.bf16.msra.mxu0 0
    %1220 = vmatprep.subr.bf16.mxu0 0
    %1221 = vmatpush2.bf16.msra.mxu0 0
    %1222 = vmatprep.subr.bf16.mxu0 0
    %1223 = vmatpush2.bf16.msra.mxu0 0
    %1224 = vmatprep.subr.bf16.mxu0 0
    %1225 = vmatpush2.bf16.msra.mxu0 0
    %1226 = vmatprep.subr.bf16.mxu0 0
    %1227 = vmatpush2.bf16.msra.mxu0 0
    %1228 = vmatprep.mubr.bf16.mxu0 0
    %1229 = vmatmul.mubr.bf16.gmra.mxu0 %v1194
    %v1230 = vpop.f32.mrf.mxu0
    %v1231 = vadd.f32 0.0, %v1230
    %v1232 = vpop.f32.mrf.mxu0
    %v1233 = vpop.f32.mrf.mxu0
    %v1234 = vadd.f32 0.0, %v1233
    %v1235 = vpop.f32.mrf.mxu0
    %1236 = vdwg.mxu0
    %v1239 = vunpack.c.l.b16 %v741
    %v1240 = vunpack.c.l.b16 %v742
    %v1241 = vpack.c.b16 %v1240, %v1239
    %v1244 = vsel %vm494, %v740, 0
    %1246 = vmatprep.subr.bf16.mxu0 0
    %1247 = vmatpush1.bf16.msra.mxu0 0
    %1248 = vmatprep.subr.bf16.mxu0 0
    %1249 = vmatpush1.bf16.msra.mxu0 0
    %1250 = vmatprep.subr.bf16.mxu0 0
    %1251 = vmatpush1.bf16.msra.mxu0 0
    %1252 = vmatprep.subr.bf16.mxu0 0
    %1253 = vmatpush1.bf16.msra.mxu0 0
    %1254 = vmatprep.subr.bf16.mxu0 0
    %1255 = vmatpush1.bf16.msra.mxu0 0
    %1256 = vmatprep.subr.bf16.mxu0 0
    %1257 = vmatpush1.bf16.msra.mxu0 0
    %1258 = vmatprep.subr.bf16.mxu0 0
    %1259 = vmatpush1.bf16.msra.mxu0 0
    %1260 = vmatprep.subr.bf16.mxu0 0
    %1261 = vmatpush1.bf16.msra.mxu0 %v1241
    %1262 = vmatprep.subr.bf16.mxu0 0
    %1263 = vmatpush2.bf16.msra.mxu0 0
    %1264 = vmatprep.subr.bf16.mxu0 0
    %1265 = vmatpush2.bf16.msra.mxu0 0
    %1266 = vmatprep.subr.bf16.mxu0 0
    %1267 = vmatpush2.bf16.msra.mxu0 0
    %1268 = vmatprep.subr.bf16.mxu0 0
    %1269 = vmatpush2.bf16.msra.mxu0 0
    %1270 = vmatprep.subr.bf16.mxu0 0
    %1271 = vmatpush2.bf16.msra.mxu0 0
    %1272 = vmatprep.subr.bf16.mxu0 0
    %1273 = vmatpush2.bf16.msra.mxu0 0
    %1274 = vmatprep.subr.bf16.mxu0 0
    %1275 = vmatpush2.bf16.msra.mxu0 0
    %1276 = vmatprep.subr.bf16.mxu0 0
    %1277 = vmatpush2.bf16.msra.mxu0 0
    %1278 = vmatprep.mubr.bf16.mxu0 0
    %1279 = vmatmul.mubr.bf16.gmra.mxu0 %v1244
    %v1280 = vpop.f32.mrf.mxu0
    %v1281 = vadd.f32 %v1231, %v1280
    %v1282 = vpop.f32.mrf.mxu0
    %v1283 = vpop.f32.mrf.mxu0
    %v1284 = vadd.f32 %v1234, %v1283
    %v1285 = vpop.f32.mrf.mxu0
    %1286 = vdwg.mxu0
    %v1287 = vld [vmem:[%s14] sm:$0x1]
    %v1289 = vlaneseq
    %v1290 = vshrl.u32 %v1289, 7
    %v1291 = vsub.s32 0, %v1290
    %v1292 = vrot.slane %v1287, %v1291
    %v1294 = vadd.f32 %v1281, %v1292
    %v1295 = vadd.f32 %v1284, %v1292
    %v1296 = vadd.f32 %v1294, %v246
    %v1297 = vadd.f32 %v1295, %v247
    %v1298 = vsel %vm250, %v1296, 0.0
    %1299 = vadd.xlane.f32.xlu0 %v1298
    %v1300 = vpop.xlane.xlu0 %1299
    %v1301 = vsel %vm254, %v1297, 0.0
    %1302 = vadd.xlane.f32.xlu0 %v1301
    %v1303 = vpop.xlane.xlu0 %1302
    %v1304 = vmul.f32 %v1300, %v258
    %v1305 = vmul.f32 %v1303, %v258
    %v1306 = vsub.f32 %v1296, %v1304
    %v1307 = vsub.f32 %v1297, %v1305
    %v1308 = vmul.f32 %v1306, %v1306
    %v1309 = vmul.f32 %v1307, %v1307
    %v1310 = vsel %vm250, %v1308, 0.0
    %1311 = vadd.xlane.f32.xlu0 %v1310
    %v1312 = vpop.xlane.xlu0 %1311
    %v1313 = vsel %vm254, %v1309, 0.0
    %1314 = vadd.xlane.f32.xlu0 %v1313
    %v1315 = vpop.xlane.xlu0 %1314
    %v1316 = vmul.f32 %v1312, %v258
    %v1317 = vmul.f32 %v1315, %v258
    %v1318 = vadd.f32 %v1316, 1e-05
    %v1319 = vadd.f32 %v1317, 1e-05
    %v1320 = vrsqrt.pop %v1318
    %v1321 = vrsqrt.pop %v1319
    %v1322 = vmul.f32 %v1306, %v1320
    %v1323 = vmul.f32 %v1307, %v1321
    %v1324 = vmul.f32 %v1322, %v283
    %v1325 = vmul.f32 %v1323, %v283
    %v1326 = vadd.f32 %v1324, %v291
    %v1327 = vadd.f32 %v1325, %v291
    %v1328 = vpack.c.bf16 %v1327, %v1326
    %v1329 = vld [vmem:[%s15] sm:$0xf]
    %v1330 = vld [vmem:[%s15 + $0x4] sm:$0xf]
    %v1331 = vld [vmem:[%s15 + $0x8] sm:$0xf]
    %v1332 = vld [vmem:[%s15 + $0xc] sm:$0xf]
    %v1333 = vld [vmem:[%s16] sm:$0x1]
    %v1335 = vlaneseq
    %v1336 = vshrl.u32 %v1335, 7
    %v1337 = vsub.s32 0, %v1336
    %v1338 = vrot.slane %v1333, %v1337
    %v1344 = vunpack.c.l.b16 %v1329
    %v1345 = vunpack.c.l.b16 %v1330
    %v1346 = vunpack.c.l.b16 %v1331
    %v1347 = vunpack.c.l.b16 %v1332
    %v1348 = vpack.c.b16 %v1345, %v1344
    %v1349 = vpack.c.b16 %v1347, %v1346
    %v1353 = vsel %vm250, %v1328, 0
    %1355 = vmatprep.subr.bf16.mxu0 0
    %1356 = vmatpush1.bf16.msra.mxu0 0
    %1357 = vmatprep.subr.bf16.mxu0 0
    %1358 = vmatpush1.bf16.msra.mxu0 0
    %1359 = vmatprep.subr.bf16.mxu0 0
    %1360 = vmatpush1.bf16.msra.mxu0 0
    %1361 = vmatprep.subr.bf16.mxu0 0
    %1362 = vmatpush1.bf16.msra.mxu0 0
    %1363 = vmatprep.subr.bf16.mxu0 0
    %1364 = vmatpush1.bf16.msra.mxu0 0
    %1365 = vmatprep.subr.bf16.mxu0 0
    %1366 = vmatpush1.bf16.msra.mxu0 0
    %1367 = vmatprep.subr.bf16.mxu0 0
    %1368 = vmatpush1.bf16.msra.mxu0 %v1349
    %1369 = vmatprep.subr.bf16.mxu0 0
    %1370 = vmatpush1.bf16.msra.mxu0 %v1348
    %1371 = vmatprep.subr.bf16.mxu0 0
    %1372 = vmatpush2.bf16.msra.mxu0 0
    %1373 = vmatprep.subr.bf16.mxu0 0
    %1374 = vmatpush2.bf16.msra.mxu0 0
    %1375 = vmatprep.subr.bf16.mxu0 0
    %1376 = vmatpush2.bf16.msra.mxu0 0
    %1377 = vmatprep.subr.bf16.mxu0 0
    %1378 = vmatpush2.bf16.msra.mxu0 0
    %1379 = vmatprep.subr.bf16.mxu0 0
    %1380 = vmatpush2.bf16.msra.mxu0 0
    %1381 = vmatprep.subr.bf16.mxu0 0
    %1382 = vmatpush2.bf16.msra.mxu0 0
    %1383 = vmatprep.subr.bf16.mxu0 0
    %1384 = vmatpush2.bf16.msra.mxu0 0
    %1385 = vmatprep.subr.bf16.mxu0 0
    %1386 = vmatpush2.bf16.msra.mxu0 0
    %1387 = vmatprep.mubr.bf16.mxu0 0
    %1388 = vmatmul.mubr.bf16.gmra.mxu0 %v1353
    %v1389 = vpop.f32.mrf.mxu0
    %v1390 = vadd.f32 %v1338, %v1389
    %v1391 = vpop.f32.mrf.mxu0
    %v1392 = vpop.f32.mrf.mxu0
    %v1393 = vadd.f32 %v1338, %v1392
    %v1394 = vpop.f32.mrf.mxu0
    %1395 = vdwg.mxu0
    %v1396 = vmul.f32 %v1390, 0.5
    %v1397 = vmul.f32 %v1393, 0.5
    %v1398 = vrcp.pop 1.4142135
    %v1399 = vmul.f32 %v1390, %v1398
    %v1400 = vmul.f32 %v1393, %v1398
    %v1401 = verf.f32.pop %v1399
    %v1402 = verf.f32.pop %v1400
    %v1403 = vadd.f32 %v1401, 1.0
    %v1404 = vadd.f32 %v1402, 1.0
    %v1405 = vmul.f32 %v1396, %v1403
    %v1406 = vmul.f32 %v1397, %v1404
    %v1407 = vpack.c.bf16 %v1406, %v1405
    %v1408 = vld [vmem:[%s17] sm:$0xf]
    %v1409 = vld [vmem:[%s17 + $0x4] sm:$0xf]
    %v1410 = vld [vmem:[%s17 + $0x8] sm:$0xf]
    %v1411 = vld [vmem:[%s17 + $0xc] sm:$0xf]
    %v1412 = vld [vmem:[%s17 + $0x10] sm:$0xf]
    %v1413 = vld [vmem:[%s17 + $0x14] sm:$0xf]
    %v1414 = vld [vmem:[%s17 + $0x18] sm:$0xf]
    %v1415 = vld [vmem:[%s17 + $0x1c] sm:$0xf]
    %v1416 = vld [vmem:[%s18] sm:$0x1]
    %v1418 = vlaneseq
    %v1419 = vshrl.u32 %v1418, 7
    %v1420 = vsub.s32 0, %v1419
    %v1421 = vrot.slane %v1416, %v1420
    %v1431 = vunpack.c.l.b16 %v1408
    %v1432 = vunpack.c.l.b16 %v1409
    %v1433 = vunpack.c.l.b16 %v1410
    %v1434 = vunpack.c.l.b16 %v1411
    %v1435 = vunpack.c.l.b16 %v1412
    %v1436 = vunpack.c.l.b16 %v1413
    %v1437 = vunpack.c.l.b16 %v1414
    %v1438 = vunpack.c.l.b16 %v1415
    %v1439 = vpack.c.b16 %v1432, %v1431
    %v1440 = vpack.c.b16 %v1434, %v1433
    %v1441 = vpack.c.b16 %v1436, %v1435
    %v1442 = vpack.c.b16 %v1438, %v1437
    %v1448 = vsel %vm185, %v1407, 0
    %1450 = vmatprep.subr.bf16.mxu0 0
    %1451 = vmatpush1.bf16.msra.mxu0 0
    %1452 = vmatprep.subr.bf16.mxu0 0
    %1453 = vmatpush1.bf16.msra.mxu0 0
    %1454 = vmatprep.subr.bf16.mxu0 0
    %1455 = vmatpush1.bf16.msra.mxu0 0
    %1456 = vmatprep.subr.bf16.mxu0 0
    %1457 = vmatpush1.bf16.msra.mxu0 0
    %1458 = vmatprep.subr.bf16.mxu0 0
    %1459 = vmatpush1.bf16.msra.mxu0 %v1442
    %1460 = vmatprep.subr.bf16.mxu0 0
    %1461 = vmatpush1.bf16.msra.mxu0 %v1441
    %1462 = vmatprep.subr.bf16.mxu0 0
    %1463 = vmatpush1.bf16.msra.mxu0 %v1440
    %1464 = vmatprep.subr.bf16.mxu0 0
    %1465 = vmatpush1.bf16.msra.mxu0 %v1439
    %1466 = vmatprep.subr.bf16.mxu0 0
    %1467 = vmatpush2.bf16.msra.mxu0 0
    %1468 = vmatprep.subr.bf16.mxu0 0
    %1469 = vmatpush2.bf16.msra.mxu0 0
    %1470 = vmatprep.subr.bf16.mxu0 0
    %1471 = vmatpush2.bf16.msra.mxu0 0
    %1472 = vmatprep.subr.bf16.mxu0 0
    %1473 = vmatpush2.bf16.msra.mxu0 0
    %1474 = vmatprep.subr.bf16.mxu0 0
    %1475 = vmatpush2.bf16.msra.mxu0 0
    %1476 = vmatprep.subr.bf16.mxu0 0
    %1477 = vmatpush2.bf16.msra.mxu0 0
    %1478 = vmatprep.subr.bf16.mxu0 0
    %1479 = vmatpush2.bf16.msra.mxu0 0
    %1480 = vmatprep.subr.bf16.mxu0 0
    %1481 = vmatpush2.bf16.msra.mxu0 0
    %1482 = vmatprep.mubr.bf16.mxu0 0
    %1483 = vmatmul.mubr.bf16.gmra.mxu0 %v1448
    %v1484 = vpop.f32.mrf.mxu0
    %v1485 = vadd.f32 %v1421, %v1484
    %v1486 = vpop.f32.mrf.mxu0
    %v1487 = vpop.f32.mrf.mxu0
    %v1488 = vadd.f32 %v1421, %v1487
    %v1489 = vpop.f32.mrf.mxu0
    %1490 = vdwg.mxu0
    %v1491 = vadd.f32 %v1485, %v1296
    %v1492 = vadd.f32 %v1488, %v1297
    %s1493 = scalar_lea.vmem %s5, 1
    %v1494 = vld [vmem:[%s1493] sm:$0x1]
    %s1495 = scalar_lea.vmem %s6, 1
    %v1496 = vld [vmem:[%s1495] sm:$0x1]
    %v1497 = vsel %vm250, %v1491, 0.0
    %1498 = vadd.xlane.f32.xlu0 %v1497
    %v1499 = vpop.xlane.xlu0 %1498
    %v1500 = vsel %vm254, %v1492, 0.0
    %1501 = vadd.xlane.f32.xlu0 %v1500
    %v1502 = vpop.xlane.xlu0 %1501
    %v1503 = vmul.f32 %v1499, %v258
    %v1504 = vmul.f32 %v1502, %v258
    %v1505 = vsub.f32 %v1491, %v1503
    %v1506 = vsub.f32 %v1492, %v1504
    %v1507 = vmul.f32 %v1505, %v1505
    %v1508 = vmul.f32 %v1506, %v1506
    %v1509 = vsel %vm250, %v1507, 0.0
    %1510 = vadd.xlane.f32.xlu0 %v1509
    %v1511 = vpop.xlane.xlu0 %1510
    %v1512 = vsel %vm254, %v1508, 0.0
    %1513 = vadd.xlane.f32.xlu0 %v1512
    %v1514 = vpop.xlane.xlu0 %1513
    %v1515 = vmul.f32 %v1511, %v258
    %v1516 = vmul.f32 %v1514, %v258
    %v1517 = vadd.f32 %v1515, 1e-05
    %v1518 = vadd.f32 %v1516, 1e-05
    %v1519 = vrsqrt.pop %v1517
    %v1520 = vrsqrt.pop %v1518
    %v1521 = vmul.f32 %v1505, %v1519
    %v1522 = vmul.f32 %v1506, %v1520
    %v1524 = vlaneseq
    %v1525 = vshrl.u32 %v1524, 7
    %v1526 = vsub.s32 0, %v1525
    %v1527 = vrot.slane %v1494, %v1526
    %v1529 = vmul.f32 %v1521, %v1527
    %v1530 = vmul.f32 %v1522, %v1527
    %v1532 = vlaneseq
    %v1533 = vshrl.u32 %v1532, 7
    %v1534 = vsub.s32 0, %v1533
    %v1535 = vrot.slane %v1496, %v1534
    %v1537 = vadd.f32 %v1529, %v1535
    %v1538 = vadd.f32 %v1530, %v1535
    %v1539 = vpack.c.bf16 %v1538, %v1537
    %s1540 = scalar_lea.vmem %s7, 32
    %v1541 = vld [vmem:[%s1540] sm:$0xf]
    %v1542 = vld [vmem:[%s1540 + $0x4] sm:$0xf]
    %v1543 = vld [vmem:[%s1540 + $0x8] sm:$0xf]
    %v1544 = vld [vmem:[%s1540 + $0xc] sm:$0xf]
    %s1545 = scalar_lea.vmem %s8, 2
    %v1546 = vld [vmem:[%s1545] sm:$0x1]
    %v1548 = vlaneseq
    %v1549 = vshrl.u32 %v1548, 7
    %v1550 = vsub.s32 0, %v1549
    %v1551 = vrot.slane %v1546, %v1550
    %v1557 = vunpack.c.l.b16 %v1541
    %v1558 = vunpack.c.l.b16 %v1542
    %v1559 = vunpack.c.l.b16 %v1543
    %v1560 = vunpack.c.l.b16 %v1544
    %v1561 = vpack.c.b16 %v1558, %v1557
    %v1562 = vpack.c.b16 %v1560, %v1559
    %v1566 = vsel %vm250, %v1539, 0
    %1568 = vmatprep.subr.bf16.mxu0 0
    %1569 = vmatpush1.bf16.msra.mxu0 0
    %1570 = vmatprep.subr.bf16.mxu0 0
    %1571 = vmatpush1.bf16.msra.mxu0 0
    %1572 = vmatprep.subr.bf16.mxu0 0
    %1573 = vmatpush1.bf16.msra.mxu0 0
    %1574 = vmatprep.subr.bf16.mxu0 0
    %1575 = vmatpush1.bf16.msra.mxu0 0
    %1576 = vmatprep.subr.bf16.mxu0 0
    %1577 = vmatpush1.bf16.msra.mxu0 0
    %1578 = vmatprep.subr.bf16.mxu0 0
    %1579 = vmatpush1.bf16.msra.mxu0 0
    %1580 = vmatprep.subr.bf16.mxu0 0
    %1581 = vmatpush1.bf16.msra.mxu0 %v1562
    %1582 = vmatprep.subr.bf16.mxu0 0
    %1583 = vmatpush1.bf16.msra.mxu0 %v1561
    %1584 = vmatprep.subr.bf16.mxu0 0
    %1585 = vmatpush2.bf16.msra.mxu0 0
    %1586 = vmatprep.subr.bf16.mxu0 0
    %1587 = vmatpush2.bf16.msra.mxu0 0
    %1588 = vmatprep.subr.bf16.mxu0 0
    %1589 = vmatpush2.bf16.msra.mxu0 0
    %1590 = vmatprep.subr.bf16.mxu0 0
    %1591 = vmatpush2.bf16.msra.mxu0 0
    %1592 = vmatprep.subr.bf16.mxu0 0
    %1593 = vmatpush2.bf16.msra.mxu0 0
    %1594 = vmatprep.subr.bf16.mxu0 0
    %1595 = vmatpush2.bf16.msra.mxu0 0
    %1596 = vmatprep.subr.bf16.mxu0 0
    %1597 = vmatpush2.bf16.msra.mxu0 0
    %1598 = vmatprep.subr.bf16.mxu0 0
    %1599 = vmatpush2.bf16.msra.mxu0 0
    %1600 = vmatprep.mubr.bf16.mxu0 0
    %1601 = vmatmul.mubr.bf16.gmra.mxu0 %v1566
    %v1602 = vpop.f32.mrf.mxu0
    %v1603 = vadd.f32 %v1551, %v1602
    %v1604 = vpop.f32.mrf.mxu0
    %v1605 = vpop.f32.mrf.mxu0
    %v1606 = vadd.f32 %v1551, %v1605
    %v1607 = vpop.f32.mrf.mxu0
    %1608 = vdwg.mxu0
    %s1609 = scalar_lea.vmem %s9, 32
    %v1610 = vld [vmem:[%s1609] sm:$0xf]
    %v1611 = vld [vmem:[%s1609 + $0x4] sm:$0xf]
    %v1612 = vld [vmem:[%s1609 + $0x8] sm:$0xf]
    %v1613 = vld [vmem:[%s1609 + $0xc] sm:$0xf]
    %s1614 = scalar_lea.vmem %s10, 2
    %v1615 = vld [vmem:[%s1614] sm:$0x1]
    %v1617 = vlaneseq
    %v1618 = vshrl.u32 %v1617, 7
    %v1619 = vsub.s32 0, %v1618
    %v1620 = vrot.slane %v1615, %v1619
    %v1626 = vunpack.c.l.b16 %v1610
    %v1627 = vunpack.c.l.b16 %v1611
    %v1628 = vunpack.c.l.b16 %v1612
    %v1629 = vunpack.c.l.b16 %v1613
    %v1630 = vpack.c.b16 %v1627, %v1626
    %v1631 = vpack.c.b16 %v1629, %v1628
    %1634 = vmatprep.subr.bf16.mxu0 0
    %1635 = vmatpush1.bf16.msra.mxu0 0
    %1636 = vmatprep.subr.bf16.mxu0 0
    %1637 = vmatpush1.bf16.msra.mxu0 0
    %1638 = vmatprep.subr.bf16.mxu0 0
    %1639 = vmatpush1.bf16.msra.mxu0 0
    %1640 = vmatprep.subr.bf16.mxu0 0
    %1641 = vmatpush1.bf16.msra.mxu0 0
    %1642 = vmatprep.subr.bf16.mxu0 0
    %1643 = vmatpush1.bf16.msra.mxu0 0
    %1644 = vmatprep.subr.bf16.mxu0 0
    %1645 = vmatpush1.bf16.msra.mxu0 0
    %1646 = vmatprep.subr.bf16.mxu0 0
    %1647 = vmatpush1.bf16.msra.mxu0 %v1631
    %1648 = vmatprep.subr.bf16.mxu0 0
    %1649 = vmatpush1.bf16.msra.mxu0 %v1630
    %1650 = vmatprep.subr.bf16.mxu0 0
    %1651 = vmatpush2.bf16.msra.mxu0 0
    %1652 = vmatprep.subr.bf16.mxu0 0
    %1653 = vmatpush2.bf16.msra.mxu0 0
    %1654 = vmatprep.subr.bf16.mxu0 0
    %1655 = vmatpush2.bf16.msra.mxu0 0
    %1656 = vmatprep.subr.bf16.mxu0 0
    %1657 = vmatpush2.bf16.msra.mxu0 0
    %1658 = vmatprep.subr.bf16.mxu0 0
    %1659 = vmatpush2.bf16.msra.mxu0 0
    %1660 = vmatprep.subr.bf16.mxu0 0
    %1661 = vmatpush2.bf16.msra.mxu0 0
    %1662 = vmatprep.subr.bf16.mxu0 0
    %1663 = vmatpush2.bf16.msra.mxu0 0
    %1664 = vmatprep.subr.bf16.mxu0 0
    %1665 = vmatpush2.bf16.msra.mxu0 0
    %1666 = vmatprep.mubr.bf16.mxu0 0
    %1667 = vmatmul.mubr.bf16.gmra.mxu0 %v1566
    %v1668 = vpop.f32.mrf.mxu0
    %v1669 = vadd.f32 %v1620, %v1668
    %v1670 = vpop.f32.mrf.mxu0
    %v1671 = vpop.f32.mrf.mxu0
    %v1672 = vadd.f32 %v1620, %v1671
    %v1673 = vpop.f32.mrf.mxu0
    %1674 = vdwg.mxu0
    %s1675 = scalar_lea.vmem %s11, 32
    %v1676 = vld [vmem:[%s1675] sm:$0xf]
    %v1677 = vld [vmem:[%s1675 + $0x4] sm:$0xf]
    %v1678 = vld [vmem:[%s1675 + $0x8] sm:$0xf]
    %v1679 = vld [vmem:[%s1675 + $0xc] sm:$0xf]
    %s1680 = scalar_lea.vmem %s12, 2
    %v1681 = vld [vmem:[%s1680] sm:$0x1]
    %v1683 = vlaneseq
    %v1684 = vshrl.u32 %v1683, 7
    %v1685 = vsub.s32 0, %v1684
    %v1686 = vrot.slane %v1681, %v1685
    %v1692 = vunpack.c.l.b16 %v1676
    %v1693 = vunpack.c.l.b16 %v1677
    %v1694 = vunpack.c.l.b16 %v1678
    %v1695 = vunpack.c.l.b16 %v1679
    %v1696 = vpack.c.b16 %v1693, %v1692
    %v1697 = vpack.c.b16 %v1695, %v1694
    %1700 = vmatprep.subr.bf16.mxu0 0
    %1701 = vmatpush1.bf16.msra.mxu0 0
    %1702 = vmatprep.subr.bf16.mxu0 0
    %1703 = vmatpush1.bf16.msra.mxu0 0
    %1704 = vmatprep.subr.bf16.mxu0 0
    %1705 = vmatpush1.bf16.msra.mxu0 0
    %1706 = vmatprep.subr.bf16.mxu0 0
    %1707 = vmatpush1.bf16.msra.mxu0 0
    %1708 = vmatprep.subr.bf16.mxu0 0
    %1709 = vmatpush1.bf16.msra.mxu0 0
    %1710 = vmatprep.subr.bf16.mxu0 0
    %1711 = vmatpush1.bf16.msra.mxu0 0
    %1712 = vmatprep.subr.bf16.mxu0 0
    %1713 = vmatpush1.bf16.msra.mxu0 %v1697
    %1714 = vmatprep.subr.bf16.mxu0 0
    %1715 = vmatpush1.bf16.msra.mxu0 %v1696
    %1716 = vmatprep.subr.bf16.mxu0 0
    %1717 = vmatpush2.bf16.msra.mxu0 0
    %1718 = vmatprep.subr.bf16.mxu0 0
    %1719 = vmatpush2.bf16.msra.mxu0 0
    %1720 = vmatprep.subr.bf16.mxu0 0
    %1721 = vmatpush2.bf16.msra.mxu0 0
    %1722 = vmatprep.subr.bf16.mxu0 0
    %1723 = vmatpush2.bf16.msra.mxu0 0
    %1724 = vmatprep.subr.bf16.mxu0 0
    %1725 = vmatpush2.bf16.msra.mxu0 0
    %1726 = vmatprep.subr.bf16.mxu0 0
    %1727 = vmatpush2.bf16.msra.mxu0 0
    %1728 = vmatprep.subr.bf16.mxu0 0
    %1729 = vmatpush2.bf16.msra.mxu0 0
    %1730 = vmatprep.subr.bf16.mxu0 0
    %1731 = vmatpush2.bf16.msra.mxu0 0
    %1732 = vmatprep.mubr.bf16.mxu0 0
    %1733 = vmatmul.mubr.bf16.gmra.mxu0 %v1566
    %v1734 = vpop.f32.mrf.mxu0
    %v1735 = vadd.f32 %v1686, %v1734
    %v1736 = vpop.f32.mrf.mxu0
    %v1737 = vpop.f32.mrf.mxu0
    %v1738 = vadd.f32 %v1686, %v1737
    %v1739 = vpop.f32.mrf.mxu0
    %1740 = vdwg.mxu0
    %v1741 = vpack.c.bf16 %v1606, %v1603
    %v1742 = vpack.c.bf16 %v1672, %v1669
    %v1743 = vpack.c.bf16 %v1738, %v1735
    %v1745 = vsel %vm494, %v1741, 0
    %v1748 = vsel %vm494, %v1742, 0
    %1750 = vmatprep.subr.bf16.mxu0 0
    %1751 = vmatpush1.bf16.xpose.msra.mxu0 0
    %1752 = vmatprep.subr.bf16.mxu0 0
    %1753 = vmatpush1.bf16.xpose.msra.mxu0 0
    %1754 = vmatprep.subr.bf16.mxu0 0
    %1755 = vmatpush1.bf16.xpose.msra.mxu0 0
    %1756 = vmatprep.subr.bf16.mxu0 0
    %1757 = vmatpush1.bf16.xpose.msra.mxu0 0
    %1758 = vmatprep.subr.bf16.mxu0 0
    %1759 = vmatpush1.bf16.xpose.msra.mxu0 0
    %1760 = vmatprep.subr.bf16.mxu0 0
    %1761 = vmatpush1.bf16.xpose.msra.mxu0 0
    %1762 = vmatprep.subr.bf16.mxu0 0
    %1763 = vmatpush1.bf16.xpose.msra.mxu0 0
    %1764 = vmatprep.subr.bf16.mxu0 0
    %1765 = vmatpush1.bf16.xpose.msra.mxu0 %v1748
    %1766 = vmatprep.subr.bf16.mxu0 0
    %1767 = vmatpush2.bf16.xpose.msra.mxu0 0
    %1768 = vmatprep.subr.bf16.mxu0 0
    %1769 = vmatpush2.bf16.xpose.msra.mxu0 0
    %1770 = vmatprep.subr.bf16.mxu0 0
    %1771 = vmatpush2.bf16.xpose.msra.mxu0 0
    %1772 = vmatprep.subr.bf16.mxu0 0
    %1773 = vmatpush2.bf16.xpose.msra.mxu0 0
    %1774 = vmatprep.subr.bf16.mxu0 0
    %1775 = vmatpush2.bf16.xpose.msra.mxu0 0
    %1776 = vmatprep.subr.bf16.mxu0 0
    %1777 = vmatpush2.bf16.xpose.msra.mxu0 0
    %1778 = vmatprep.subr.bf16.mxu0 0
    %1779 = vmatpush2.bf16.xpose.msra.mxu0 0
    %1780 = vmatprep.subr.bf16.mxu0 0
    %1781 = vmatpush2.bf16.xpose.msra.mxu0 0
    %1782 = vmatprep.mubr.bf16.mxu0 0
    %1783 = vmatmul.mubr.bf16.gmra.mxu0 %v1745
    %v1784 = vpop.f32.mrf.mxu0
    %v1785 = vadd.f32 0.0, %v1784
    %v1786 = vpop.f32.mrf.mxu0
    %v1787 = vpop.f32.mrf.mxu0
    %v1788 = vpop.f32.mrf.mxu0
    %1789 = vdwg.mxu0
    %v1790 = vmul.f32 %v1785, 0.25
    %v1791 = vsel %vm542, %v1790, -inf
    %1792 = vmax.xlane.f32.xlu0 %v1791
    %v1793 = vpop.xlane.xlu0 %1792
    %v1794 = vsub.f32 %v1790, %v1793
    %v1795 = vmul.f32 %v1794, 1.442695
    %v1796 = vpow.pop %v1795
    %v1797 = vsel %vm542, %v1796, 0.0
    %1798 = vadd.xlane.f32.xlu0 %v1797
    %v1799 = vpop.xlane.xlu0 %1798
    %v1800 = vrcp.pop %v1799
    %v1801 = vmul.f32 %v1796, %v1800
    %s1802 = scalar_lea.vmem %s24, 32
    %1803 = vst.msk [vmem:[%s1802] sm:$0x1f] %vm542, %v1801
    %v1804 = vpack.c.bf16 %v1801, %v1801
    %v1806 = vsel %vm556, %v1804, 0
    %v1809 = vand.u32 %v1743, %v563
    %1811 = vmatprep.subr.bf16.mxu0 0
    %1812 = vmatpush1.bf16.msra.mxu0 0
    %1813 = vmatprep.subr.bf16.mxu0 0
    %1814 = vmatpush1.bf16.msra.mxu0 0
    %1815 = vmatprep.subr.bf16.mxu0 0
    %1816 = vmatpush1.bf16.msra.mxu0 0
    %1817 = vmatprep.subr.bf16.mxu0 0
    %1818 = vmatpush1.bf16.msra.mxu0 0
    %1819 = vmatprep.subr.bf16.mxu0 0
    %1820 = vmatpush1.bf16.msra.mxu0 0
    %1821 = vmatprep.subr.bf16.mxu0 0
    %1822 = vmatpush1.bf16.msra.mxu0 0
    %1823 = vmatprep.subr.bf16.mxu0 0
    %1824 = vmatpush1.bf16.msra.mxu0 0
    %1825 = vmatprep.subr.bf16.mxu0 0
    %1826 = vmatpush1.bf16.msra.mxu0 %v1809
    %1827 = vmatprep.subr.bf16.mxu0 0
    %1828 = vmatpush2.bf16.msra.mxu0 0
    %1829 = vmatprep.subr.bf16.mxu0 0
    %1830 = vmatpush2.bf16.msra.mxu0 0
    %1831 = vmatprep.subr.bf16.mxu0 0
    %1832 = vmatpush2.bf16.msra.mxu0 0
    %1833 = vmatprep.subr.bf16.mxu0 0
    %1834 = vmatpush2.bf16.msra.mxu0 0
    %1835 = vmatprep.subr.bf16.mxu0 0
    %1836 = vmatpush2.bf16.msra.mxu0 0
    %1837 = vmatprep.subr.bf16.mxu0 0
    %1838 = vmatpush2.bf16.msra.mxu0 0
    %1839 = vmatprep.subr.bf16.mxu0 0
    %1840 = vmatpush2.bf16.msra.mxu0 0
    %1841 = vmatprep.subr.bf16.mxu0 0
    %1842 = vmatpush2.bf16.msra.mxu0 0
    %1843 = vmatprep.mubr.bf16.mxu0 0
    %1844 = vmatmul.mubr.bf16.gmra.mxu0 %v1806
    %v1845 = vpop.f32.mrf.mxu0
    %v1846 = vadd.f32 0.0, %v1845
    %v1847 = vpop.f32.mrf.mxu0
    %v1848 = vpop.f32.mrf.mxu0
    %v1849 = vpop.f32.mrf.mxu0
    %1850 = vdwg.mxu0
    %v1851 = vshrl.u32 %v1741, 16
    %v1853 = vrot.slane %v1851, 2
    %v1854 = vshll.u32 %v1741, 16
    %v1856 = vrot.slane %v1854, 3
    %v1857 = vor.u32 %v1853, %v1856
    %v1858 = vshrl.u32 %v1742, 16
    %v1860 = vrot.slane %v1858, 2
    %v1861 = vshll.u32 %v1742, 16
    %v1863 = vrot.slane %v1861, 3
    %v1864 = vor.u32 %v1860, %v1863
    %v1866 = vsel %vm494, %v1857, 0
    %v1869 = vsel %vm494, %v1864, 0
    %1871 = vmatprep.subr.bf16.mxu0 0
    %1872 = vmatpush1.bf16.xpose.msra.mxu0 0
    %1873 = vmatprep.subr.bf16.mxu0 0
    %1874 = vmatpush1.bf16.xpose.msra.mxu0 0
    %1875 = vmatprep.subr.bf16.mxu0 0
    %1876 = vmatpush1.bf16.xpose.msra.mxu0 0
    %1877 = vmatprep.subr.bf16.mxu0 0
    %1878 = vmatpush1.bf16.xpose.msra.mxu0 0
    %1879 = vmatprep.subr.bf16.mxu0 0
    %1880 = vmatpush1.bf16.xpose.msra.mxu0 0
    %1881 = vmatprep.subr.bf16.mxu0 0
    %1882 = vmatpush1.bf16.xpose.msra.mxu0 0
    %1883 = vmatprep.subr.bf16.mxu0 0
    %1884 = vmatpush1.bf16.xpose.msra.mxu0 0
    %1885 = vmatprep.subr.bf16.mxu0 0
    %1886 = vmatpush1.bf16.xpose.msra.mxu0 %v1869
    %1887 = vmatprep.subr.bf16.mxu0 0
    %1888 = vmatpush2.bf16.xpose.msra.mxu0 0
    %1889 = vmatprep.subr.bf16.mxu0 0
    %1890 = vmatpush2.bf16.xpose.msra.mxu0 0
    %1891 = vmatprep.subr.bf16.mxu0 0
    %1892 = vmatpush2.bf16.xpose.msra.mxu0 0
    %1893 = vmatprep.subr.bf16.mxu0 0
    %1894 = vmatpush2.bf16.xpose.msra.mxu0 0
    %1895 = vmatprep.subr.bf16.mxu0 0
    %1896 = vmatpush2.bf16.xpose.msra.mxu0 0
    %1897 = vmatprep.subr.bf16.mxu0 0
    %1898 = vmatpush2.bf16.xpose.msra.mxu0 0
    %1899 = vmatprep.subr.bf16.mxu0 0
    %1900 = vmatpush2.bf16.xpose.msra.mxu0 0
    %1901 = vmatprep.subr.bf16.mxu0 0
    %1902 = vmatpush2.bf16.xpose.msra.mxu0 0
    %1903 = vmatprep.mubr.bf16.mxu0 0
    %1904 = vmatmul.mubr.bf16.gmra.mxu0 %v1866
    %v1905 = vpop.f32.mrf.mxu0
    %v1906 = vadd.f32 0.0, %v1905
    %v1907 = vpop.f32.mrf.mxu0
    %v1908 = vpop.f32.mrf.mxu0
    %v1909 = vpop.f32.mrf.mxu0
    %1910 = vdwg.mxu0
    %v1911 = vmul.f32 %v1906, 0.25
    %v1912 = vsel %vm542, %v1911, -inf
    %1913 = vmax.xlane.f32.xlu0 %v1912
    %v1914 = vpop.xlane.xlu0 %1913
    %v1915 = vsub.f32 %v1911, %v1914
    %v1916 = vmul.f32 %v1915, 1.442695
    %v1917 = vpow.pop %v1916
    %v1918 = vsel %vm542, %v1917, 0.0
    %1919 = vadd.xlane.f32.xlu0 %v1918
    %v1920 = vpop.xlane.xlu0 %1919
    %v1921 = vrcp.pop %v1920
    %v1922 = vmul.f32 %v1917, %v1921
    %s1923 = scalar_lea.vmem %s24, 48
    %1924 = vst.msk [vmem:[%s1923] sm:$0x1f] %vm542, %v1922
    %v1925 = vpack.c.bf16 %v1922, %v1922
    %v1926 = vshrl.u32 %v1743, 16
    %v1928 = vrot.slane %v1926, 2
    %v1929 = vshll.u32 %v1743, 16
    %v1931 = vrot.slane %v1929, 3
    %v1932 = vor.u32 %v1928, %v1931
    %v1934 = vsel %vm556, %v1925, 0
    %v1937 = vand.u32 %v1932, %v563
    %1939 = vmatprep.subr.bf16.mxu0 0
    %1940 = vmatpush1.bf16.msra.mxu0 0
    %1941 = vmatprep.subr.bf16.mxu0 0
    %1942 = vmatpush1.bf16.msra.mxu0 0
    %1943 = vmatprep.subr.bf16.mxu0 0
    %1944 = vmatpush1.bf16.msra.mxu0 0
    %1945 = vmatprep.subr.bf16.mxu0 0
    %1946 = vmatpush1.bf16.msra.mxu0 0
    %1947 = vmatprep.subr.bf16.mxu0 0
    %1948 = vmatpush1.bf16.msra.mxu0 0
    %1949 = vmatprep.subr.bf16.mxu0 0
    %1950 = vmatpush1.bf16.msra.mxu0 0
    %1951 = vmatprep.subr.bf16.mxu0 0
    %1952 = vmatpush1.bf16.msra.mxu0 0
    %1953 = vmatprep.subr.bf16.mxu0 0
    %1954 = vmatpush1.bf16.msra.mxu0 %v1937
    %1955 = vmatprep.subr.bf16.mxu0 0
    %1956 = vmatpush2.bf16.msra.mxu0 0
    %1957 = vmatprep.subr.bf16.mxu0 0
    %1958 = vmatpush2.bf16.msra.mxu0 0
    %1959 = vmatprep.subr.bf16.mxu0 0
    %1960 = vmatpush2.bf16.msra.mxu0 0
    %1961 = vmatprep.subr.bf16.mxu0 0
    %1962 = vmatpush2.bf16.msra.mxu0 0
    %1963 = vmatprep.subr.bf16.mxu0 0
    %1964 = vmatpush2.bf16.msra.mxu0 0
    %1965 = vmatprep.subr.bf16.mxu0 0
    %1966 = vmatpush2.bf16.msra.mxu0 0
    %1967 = vmatprep.subr.bf16.mxu0 0
    %1968 = vmatpush2.bf16.msra.mxu0 0
    %1969 = vmatprep.subr.bf16.mxu0 0
    %1970 = vmatpush2.bf16.msra.mxu0 0
    %1971 = vmatprep.mubr.bf16.mxu0 0
    %1972 = vmatmul.mubr.bf16.gmra.mxu0 %v1934
    %v1973 = vpop.f32.mrf.mxu0
    %v1974 = vadd.f32 0.0, %v1973
    %v1975 = vpop.f32.mrf.mxu0
    %v1976 = vpop.f32.mrf.mxu0
    %v1977 = vpop.f32.mrf.mxu0
    %1978 = vdwg.mxu0
    %v1980 = vrot.slane %v1974, 3
    %v1982 = vsel %vm738, %v1846, %v1980
    %v1983 = vpack.c.bf16 %v1980, %v1982
    %s1984 = scalar_lea.vmem %s13, 16
    %v1985 = vld [vmem:[%s1984] sm:$0xf]
    %v1986 = vld [vmem:[%s1984 + $0x4] sm:$0xf]
    %s1987 = scalar_lea.vmem %s7, 48
    %v1988 = vld [vmem:[%s1987] sm:$0xf]
    %v1989 = vld [vmem:[%s1987 + $0x4] sm:$0xf]
    %v1990 = vld [vmem:[%s1987 + $0x8] sm:$0xf]
    %v1991 = vld [vmem:[%s1987 + $0xc] sm:$0xf]
    %s1992 = scalar_lea.vmem %s8, 3
    %v1993 = vld [vmem:[%s1992] sm:$0x1]
    %v1995 = vlaneseq
    %v1996 = vshrl.u32 %v1995, 7
    %v1997 = vsub.s32 0, %v1996
    %v1998 = vrot.slane %v1993, %v1997
    %v2004 = vunpack.c.l.b16 %v1988
    %v2005 = vunpack.c.l.b16 %v1989
    %v2006 = vunpack.c.l.b16 %v1990
    %v2007 = vunpack.c.l.b16 %v1991
    %v2008 = vpack.c.b16 %v2005, %v2004
    %v2009 = vpack.c.b16 %v2007, %v2006
    %2012 = vmatprep.subr.bf16.mxu0 0
    %2013 = vmatpush1.bf16.msra.mxu0 0
    %2014 = vmatprep.subr.bf16.mxu0 0
    %2015 = vmatpush1.bf16.msra.mxu0 0
    %2016 = vmatprep.subr.bf16.mxu0 0
    %2017 = vmatpush1.bf16.msra.mxu0 0
    %2018 = vmatprep.subr.bf16.mxu0 0
    %2019 = vmatpush1.bf16.msra.mxu0 0
    %2020 = vmatprep.subr.bf16.mxu0 0
    %2021 = vmatpush1.bf16.msra.mxu0 0
    %2022 = vmatprep.subr.bf16.mxu0 0
    %2023 = vmatpush1.bf16.msra.mxu0 0
    %2024 = vmatprep.subr.bf16.mxu0 0
    %2025 = vmatpush1.bf16.msra.mxu0 %v2009
    %2026 = vmatprep.subr.bf16.mxu0 0
    %2027 = vmatpush1.bf16.msra.mxu0 %v2008
    %2028 = vmatprep.subr.bf16.mxu0 0
    %2029 = vmatpush2.bf16.msra.mxu0 0
    %2030 = vmatprep.subr.bf16.mxu0 0
    %2031 = vmatpush2.bf16.msra.mxu0 0
    %2032 = vmatprep.subr.bf16.mxu0 0
    %2033 = vmatpush2.bf16.msra.mxu0 0
    %2034 = vmatprep.subr.bf16.mxu0 0
    %2035 = vmatpush2.bf16.msra.mxu0 0
    %2036 = vmatprep.subr.bf16.mxu0 0
    %2037 = vmatpush2.bf16.msra.mxu0 0
    %2038 = vmatprep.subr.bf16.mxu0 0
    %2039 = vmatpush2.bf16.msra.mxu0 0
    %2040 = vmatprep.subr.bf16.mxu0 0
    %2041 = vmatpush2.bf16.msra.mxu0 0
    %2042 = vmatprep.subr.bf16.mxu0 0
    %2043 = vmatpush2.bf16.msra.mxu0 0
    %2044 = vmatprep.mubr.bf16.mxu0 0
    %2045 = vmatmul.mubr.bf16.gmra.mxu0 %v1566
    %v2046 = vpop.f32.mrf.mxu0
    %v2047 = vadd.f32 %v1998, %v2046
    %v2048 = vpop.f32.mrf.mxu0
    %v2049 = vpop.f32.mrf.mxu0
    %v2050 = vadd.f32 %v1998, %v2049
    %v2051 = vpop.f32.mrf.mxu0
    %2052 = vdwg.mxu0
    %s2053 = scalar_lea.vmem %s9, 48
    %v2054 = vld [vmem:[%s2053] sm:$0xf]
    %v2055 = vld [vmem:[%s2053 + $0x4] sm:$0xf]
    %v2056 = vld [vmem:[%s2053 + $0x8] sm:$0xf]
    %v2057 = vld [vmem:[%s2053 + $0xc] sm:$0xf]
    %s2058 = scalar_lea.vmem %s10, 3
    %v2059 = vld [vmem:[%s2058] sm:$0x1]
    %v2061 = vlaneseq
    %v2062 = vshrl.u32 %v2061, 7
    %v2063 = vsub.s32 0, %v2062
    %v2064 = vrot.slane %v2059, %v2063
    %v2070 = vunpack.c.l.b16 %v2054
    %v2071 = vunpack.c.l.b16 %v2055
    %v2072 = vunpack.c.l.b16 %v2056
    %v2073 = vunpack.c.l.b16 %v2057
    %v2074 = vpack.c.b16 %v2071, %v2070
    %v2075 = vpack.c.b16 %v2073, %v2072
    %2078 = vmatprep.subr.bf16.mxu0 0
    %2079 = vmatpush1.bf16.msra.mxu0 0
    %2080 = vmatprep.subr.bf16.mxu0 0
    %2081 = vmatpush1.bf16.msra.mxu0 0
    %2082 = vmatprep.subr.bf16.mxu0 0
    %2083 = vmatpush1.bf16.msra.mxu0 0
    %2084 = vmatprep.subr.bf16.mxu0 0
    %2085 = vmatpush1.bf16.msra.mxu0 0
    %2086 = vmatprep.subr.bf16.mxu0 0
    %2087 = vmatpush1.bf16.msra.mxu0 0
    %2088 = vmatprep.subr.bf16.mxu0 0
    %2089 = vmatpush1.bf16.msra.mxu0 0
    %2090 = vmatprep.subr.bf16.mxu0 0
    %2091 = vmatpush1.bf16.msra.mxu0 %v2075
    %2092 = vmatprep.subr.bf16.mxu0 0
    %2093 = vmatpush1.bf16.msra.mxu0 %v2074
    %2094 = vmatprep.subr.bf16.mxu0 0
    %2095 = vmatpush2.bf16.msra.mxu0 0
    %2096 = vmatprep.subr.bf16.mxu0 0
    %2097 = vmatpush2.bf16.msra.mxu0 0
    %2098 = vmatprep.subr.bf16.mxu0 0
    %2099 = vmatpush2.bf16.msra.mxu0 0
    %2100 = vmatprep.subr.bf16.mxu0 0
    %2101 = vmatpush2.bf16.msra.mxu0 0
    %2102 = vmatprep.subr.bf16.mxu0 0
    %2103 = vmatpush2.bf16.msra.mxu0 0
    %2104 = vmatprep.subr.bf16.mxu0 0
    %2105 = vmatpush2.bf16.msra.mxu0 0
    %2106 = vmatprep.subr.bf16.mxu0 0
    %2107 = vmatpush2.bf16.msra.mxu0 0
    %2108 = vmatprep.subr.bf16.mxu0 0
    %2109 = vmatpush2.bf16.msra.mxu0 0
    %2110 = vmatprep.mubr.bf16.mxu0 0
    %2111 = vmatmul.mubr.bf16.gmra.mxu0 %v1566
    %v2112 = vpop.f32.mrf.mxu0
    %v2113 = vadd.f32 %v2064, %v2112
    %v2114 = vpop.f32.mrf.mxu0
    %v2115 = vpop.f32.mrf.mxu0
    %v2116 = vadd.f32 %v2064, %v2115
    %v2117 = vpop.f32.mrf.mxu0
    %2118 = vdwg.mxu0
    %s2119 = scalar_lea.vmem %s11, 48
    %v2120 = vld [vmem:[%s2119] sm:$0xf]
    %v2121 = vld [vmem:[%s2119 + $0x4] sm:$0xf]
    %v2122 = vld [vmem:[%s2119 + $0x8] sm:$0xf]
    %v2123 = vld [vmem:[%s2119 + $0xc] sm:$0xf]
    %s2124 = scalar_lea.vmem %s12, 3
    %v2125 = vld [vmem:[%s2124] sm:$0x1]
    %v2127 = vlaneseq
    %v2128 = vshrl.u32 %v2127, 7
    %v2129 = vsub.s32 0, %v2128
    %v2130 = vrot.slane %v2125, %v2129
    %v2136 = vunpack.c.l.b16 %v2120
    %v2137 = vunpack.c.l.b16 %v2121
    %v2138 = vunpack.c.l.b16 %v2122
    %v2139 = vunpack.c.l.b16 %v2123
    %v2140 = vpack.c.b16 %v2137, %v2136
    %v2141 = vpack.c.b16 %v2139, %v2138
    %2144 = vmatprep.subr.bf16.mxu0 0
    %2145 = vmatpush1.bf16.msra.mxu0 0
    %2146 = vmatprep.subr.bf16.mxu0 0
    %2147 = vmatpush1.bf16.msra.mxu0 0
    %2148 = vmatprep.subr.bf16.mxu0 0
    %2149 = vmatpush1.bf16.msra.mxu0 0
    %2150 = vmatprep.subr.bf16.mxu0 0
    %2151 = vmatpush1.bf16.msra.mxu0 0
    %2152 = vmatprep.subr.bf16.mxu0 0
    %2153 = vmatpush1.bf16.msra.mxu0 0
    %2154 = vmatprep.subr.bf16.mxu0 0
    %2155 = vmatpush1.bf16.msra.mxu0 0
    %2156 = vmatprep.subr.bf16.mxu0 0
    %2157 = vmatpush1.bf16.msra.mxu0 %v2141
    %2158 = vmatprep.subr.bf16.mxu0 0
    %2159 = vmatpush1.bf16.msra.mxu0 %v2140
    %2160 = vmatprep.subr.bf16.mxu0 0
    %2161 = vmatpush2.bf16.msra.mxu0 0
    %2162 = vmatprep.subr.bf16.mxu0 0
    %2163 = vmatpush2.bf16.msra.mxu0 0
    %2164 = vmatprep.subr.bf16.mxu0 0
    %2165 = vmatpush2.bf16.msra.mxu0 0
    %2166 = vmatprep.subr.bf16.mxu0 0
    %2167 = vmatpush2.bf16.msra.mxu0 0
    %2168 = vmatprep.subr.bf16.mxu0 0
    %2169 = vmatpush2.bf16.msra.mxu0 0
    %2170 = vmatprep.subr.bf16.mxu0 0
    %2171 = vmatpush2.bf16.msra.mxu0 0
    %2172 = vmatprep.subr.bf16.mxu0 0
    %2173 = vmatpush2.bf16.msra.mxu0 0
    %2174 = vmatprep.subr.bf16.mxu0 0
    %2175 = vmatpush2.bf16.msra.mxu0 0
    %2176 = vmatprep.mubr.bf16.mxu0 0
    %2177 = vmatmul.mubr.bf16.gmra.mxu0 %v1566
    %v2178 = vpop.f32.mrf.mxu0
    %v2179 = vadd.f32 %v2130, %v2178
    %v2180 = vpop.f32.mrf.mxu0
    %v2181 = vpop.f32.mrf.mxu0
    %v2182 = vadd.f32 %v2130, %v2181
    %v2183 = vpop.f32.mrf.mxu0
    %2184 = vdwg.mxu0
    %v2185 = vpack.c.bf16 %v2050, %v2047
    %v2186 = vpack.c.bf16 %v2116, %v2113
    %v2187 = vpack.c.bf16 %v2182, %v2179
    %v2189 = vsel %vm494, %v2185, 0
    %v2192 = vsel %vm494, %v2186, 0
    %2194 = vmatprep.subr.bf16.mxu0 0
    %2195 = vmatpush1.bf16.xpose.msra.mxu0 0
    %2196 = vmatprep.subr.bf16.mxu0 0
    %2197 = vmatpush1.bf16.xpose.msra.mxu0 0
    %2198 = vmatprep.subr.bf16.mxu0 0
    %2199 = vmatpush1.bf16.xpose.msra.mxu0 0
    %2200 = vmatprep.subr.bf16.mxu0 0
    %2201 = vmatpush1.bf16.xpose.msra.mxu0 0
    %2202 = vmatprep.subr.bf16.mxu0 0
    %2203 = vmatpush1.bf16.xpose.msra.mxu0 0
    %2204 = vmatprep.subr.bf16.mxu0 0
    %2205 = vmatpush1.bf16.xpose.msra.mxu0 0
    %2206 = vmatprep.subr.bf16.mxu0 0
    %2207 = vmatpush1.bf16.xpose.msra.mxu0 0
    %2208 = vmatprep.subr.bf16.mxu0 0
    %2209 = vmatpush1.bf16.xpose.msra.mxu0 %v2192
    %2210 = vmatprep.subr.bf16.mxu0 0
    %2211 = vmatpush2.bf16.xpose.msra.mxu0 0
    %2212 = vmatprep.subr.bf16.mxu0 0
    %2213 = vmatpush2.bf16.xpose.msra.mxu0 0
    %2214 = vmatprep.subr.bf16.mxu0 0
    %2215 = vmatpush2.bf16.xpose.msra.mxu0 0
    %2216 = vmatprep.subr.bf16.mxu0 0
    %2217 = vmatpush2.bf16.xpose.msra.mxu0 0
    %2218 = vmatprep.subr.bf16.mxu0 0
    %2219 = vmatpush2.bf16.xpose.msra.mxu0 0
    %2220 = vmatprep.subr.bf16.mxu0 0
    %2221 = vmatpush2.bf16.xpose.msra.mxu0 0
    %2222 = vmatprep.subr.bf16.mxu0 0
    %2223 = vmatpush2.bf16.xpose.msra.mxu0 0
    %2224 = vmatprep.subr.bf16.mxu0 0
    %2225 = vmatpush2.bf16.xpose.msra.mxu0 0
    %2226 = vmatprep.mubr.bf16.mxu0 0
    %2227 = vmatmul.mubr.bf16.gmra.mxu0 %v2189
    %v2228 = vpop.f32.mrf.mxu0
    %v2229 = vadd.f32 0.0, %v2228
    %v2230 = vpop.f32.mrf.mxu0
    %v2231 = vpop.f32.mrf.mxu0
    %v2232 = vpop.f32.mrf.mxu0
    %2233 = vdwg.mxu0
    %v2234 = vmul.f32 %v2229, 0.25
    %v2235 = vsel %vm542, %v2234, -inf
    %2236 = vmax.xlane.f32.xlu0 %v2235
    %v2237 = vpop.xlane.xlu0 %2236
    %v2238 = vsub.f32 %v2234, %v2237
    %v2239 = vmul.f32 %v2238, 1.442695
    %v2240 = vpow.pop %v2239
    %v2241 = vsel %vm542, %v2240, 0.0
    %2242 = vadd.xlane.f32.xlu0 %v2241
    %v2243 = vpop.xlane.xlu0 %2242
    %v2244 = vrcp.pop %v2243
    %v2245 = vmul.f32 %v2240, %v2244
    %s2246 = scalar_lea.vmem %s24, 40
    %2247 = vst.msk [vmem:[%s2246] sm:$0x1f] %vm542, %v2245
    %v2248 = vpack.c.bf16 %v2245, %v2245
    %v2250 = vsel %vm556, %v2248, 0
    %v2253 = vand.u32 %v2187, %v563
    %2255 = vmatprep.subr.bf16.mxu0 0
    %2256 = vmatpush1.bf16.msra.mxu0 0
    %2257 = vmatprep.subr.bf16.mxu0 0
    %2258 = vmatpush1.bf16.msra.mxu0 0
    %2259 = vmatprep.subr.bf16.mxu0 0
    %2260 = vmatpush1.bf16.msra.mxu0 0
    %2261 = vmatprep.subr.bf16.mxu0 0
    %2262 = vmatpush1.bf16.msra.mxu0 0
    %2263 = vmatprep.subr.bf16.mxu0 0
    %2264 = vmatpush1.bf16.msra.mxu0 0
    %2265 = vmatprep.subr.bf16.mxu0 0
    %2266 = vmatpush1.bf16.msra.mxu0 0
    %2267 = vmatprep.subr.bf16.mxu0 0
    %2268 = vmatpush1.bf16.msra.mxu0 0
    %2269 = vmatprep.subr.bf16.mxu0 0
    %2270 = vmatpush1.bf16.msra.mxu0 %v2253
    %2271 = vmatprep.subr.bf16.mxu0 0
    %2272 = vmatpush2.bf16.msra.mxu0 0
    %2273 = vmatprep.subr.bf16.mxu0 0
    %2274 = vmatpush2.bf16.msra.mxu0 0
    %2275 = vmatprep.subr.bf16.mxu0 0
    %2276 = vmatpush2.bf16.msra.mxu0 0
    %2277 = vmatprep.subr.bf16.mxu0 0
    %2278 = vmatpush2.bf16.msra.mxu0 0
    %2279 = vmatprep.subr.bf16.mxu0 0
    %2280 = vmatpush2.bf16.msra.mxu0 0
    %2281 = vmatprep.subr.bf16.mxu0 0
    %2282 = vmatpush2.bf16.msra.mxu0 0
    %2283 = vmatprep.subr.bf16.mxu0 0
    %2284 = vmatpush2.bf16.msra.mxu0 0
    %2285 = vmatprep.subr.bf16.mxu0 0
    %2286 = vmatpush2.bf16.msra.mxu0 0
    %2287 = vmatprep.mubr.bf16.mxu0 0
    %2288 = vmatmul.mubr.bf16.gmra.mxu0 %v2250
    %v2289 = vpop.f32.mrf.mxu0
    %v2290 = vadd.f32 0.0, %v2289
    %v2291 = vpop.f32.mrf.mxu0
    %v2292 = vpop.f32.mrf.mxu0
    %v2293 = vpop.f32.mrf.mxu0
    %2294 = vdwg.mxu0
    %v2295 = vshrl.u32 %v2185, 16
    %v2297 = vrot.slane %v2295, 2
    %v2298 = vshll.u32 %v2185, 16
    %v2300 = vrot.slane %v2298, 3
    %v2301 = vor.u32 %v2297, %v2300
    %v2302 = vshrl.u32 %v2186, 16
    %v2304 = vrot.slane %v2302, 2
    %v2305 = vshll.u32 %v2186, 16
    %v2307 = vrot.slane %v2305, 3
    %v2308 = vor.u32 %v2304, %v2307
    %v2310 = vsel %vm494, %v2301, 0
    %v2313 = vsel %vm494, %v2308, 0
    %2315 = vmatprep.subr.bf16.mxu0 0
    %2316 = vmatpush1.bf16.xpose.msra.mxu0 0
    %2317 = vmatprep.subr.bf16.mxu0 0
    %2318 = vmatpush1.bf16.xpose.msra.mxu0 0
    %2319 = vmatprep.subr.bf16.mxu0 0
    %2320 = vmatpush1.bf16.xpose.msra.mxu0 0
    %2321 = vmatprep.subr.bf16.mxu0 0
    %2322 = vmatpush1.bf16.xpose.msra.mxu0 0
    %2323 = vmatprep.subr.bf16.mxu0 0
    %2324 = vmatpush1.bf16.xpose.msra.mxu0 0
    %2325 = vmatprep.subr.bf16.mxu0 0
    %2326 = vmatpush1.bf16.xpose.msra.mxu0 0
    %2327 = vmatprep.subr.bf16.mxu0 0
    %2328 = vmatpush1.bf16.xpose.msra.mxu0 0
    %2329 = vmatprep.subr.bf16.mxu0 0
    %2330 = vmatpush1.bf16.xpose.msra.mxu0 %v2313
    %2331 = vmatprep.subr.bf16.mxu0 0
    %2332 = vmatpush2.bf16.xpose.msra.mxu0 0
    %2333 = vmatprep.subr.bf16.mxu0 0
    %2334 = vmatpush2.bf16.xpose.msra.mxu0 0
    %2335 = vmatprep.subr.bf16.mxu0 0
    %2336 = vmatpush2.bf16.xpose.msra.mxu0 0
    %2337 = vmatprep.subr.bf16.mxu0 0
    %2338 = vmatpush2.bf16.xpose.msra.mxu0 0
    %2339 = vmatprep.subr.bf16.mxu0 0
    %2340 = vmatpush2.bf16.xpose.msra.mxu0 0
    %2341 = vmatprep.subr.bf16.mxu0 0
    %2342 = vmatpush2.bf16.xpose.msra.mxu0 0
    %2343 = vmatprep.subr.bf16.mxu0 0
    %2344 = vmatpush2.bf16.xpose.msra.mxu0 0
    %2345 = vmatprep.subr.bf16.mxu0 0
    %2346 = vmatpush2.bf16.xpose.msra.mxu0 0
    %2347 = vmatprep.mubr.bf16.mxu0 0
    %2348 = vmatmul.mubr.bf16.gmra.mxu0 %v2310
    %v2349 = vpop.f32.mrf.mxu0
    %v2350 = vadd.f32 0.0, %v2349
    %v2351 = vpop.f32.mrf.mxu0
    %v2352 = vpop.f32.mrf.mxu0
    %v2353 = vpop.f32.mrf.mxu0
    %2354 = vdwg.mxu0
    %v2355 = vmul.f32 %v2350, 0.25
    %v2356 = vsel %vm542, %v2355, -inf
    %2357 = vmax.xlane.f32.xlu0 %v2356
    %v2358 = vpop.xlane.xlu0 %2357
    %v2359 = vsub.f32 %v2355, %v2358
    %v2360 = vmul.f32 %v2359, 1.442695
    %v2361 = vpow.pop %v2360
    %v2362 = vsel %vm542, %v2361, 0.0
    %2363 = vadd.xlane.f32.xlu0 %v2362
    %v2364 = vpop.xlane.xlu0 %2363
    %v2365 = vrcp.pop %v2364
    %v2366 = vmul.f32 %v2361, %v2365
    %s2367 = scalar_lea.vmem %s24, 56
    %2368 = vst.msk [vmem:[%s2367] sm:$0x1f] %vm542, %v2366
    %v2369 = vpack.c.bf16 %v2366, %v2366
    %v2370 = vshrl.u32 %v2187, 16
    %v2372 = vrot.slane %v2370, 2
    %v2373 = vshll.u32 %v2187, 16
    %v2375 = vrot.slane %v2373, 3
    %v2376 = vor.u32 %v2372, %v2375
    %v2378 = vsel %vm556, %v2369, 0
    %v2381 = vand.u32 %v2376, %v563
    %2383 = vmatprep.subr.bf16.mxu0 0
    %2384 = vmatpush1.bf16.msra.mxu0 0
    %2385 = vmatprep.subr.bf16.mxu0 0
    %2386 = vmatpush1.bf16.msra.mxu0 0
    %2387 = vmatprep.subr.bf16.mxu0 0
    %2388 = vmatpush1.bf16.msra.mxu0 0
    %2389 = vmatprep.subr.bf16.mxu0 0
    %2390 = vmatpush1.bf16.msra.mxu0 0
    %2391 = vmatprep.subr.bf16.mxu0 0
    %2392 = vmatpush1.bf16.msra.mxu0 0
    %2393 = vmatprep.subr.bf16.mxu0 0
    %2394 = vmatpush1.bf16.msra.mxu0 0
    %2395 = vmatprep.subr.bf16.mxu0 0
    %2396 = vmatpush1.bf16.msra.mxu0 0
    %2397 = vmatprep.subr.bf16.mxu0 0
    %2398 = vmatpush1.bf16.msra.mxu0 %v2381
    %2399 = vmatprep.subr.bf16.mxu0 0
    %2400 = vmatpush2.bf16.msra.mxu0 0
    %2401 = vmatprep.subr.bf16.mxu0 0
    %2402 = vmatpush2.bf16.msra.mxu0 0
    %2403 = vmatprep.subr.bf16.mxu0 0
    %2404 = vmatpush2.bf16.msra.mxu0 0
    %2405 = vmatprep.subr.bf16.mxu0 0
    %2406 = vmatpush2.bf16.msra.mxu0 0
    %2407 = vmatprep.subr.bf16.mxu0 0
    %2408 = vmatpush2.bf16.msra.mxu0 0
    %2409 = vmatprep.subr.bf16.mxu0 0
    %2410 = vmatpush2.bf16.msra.mxu0 0
    %2411 = vmatprep.subr.bf16.mxu0 0
    %2412 = vmatpush2.bf16.msra.mxu0 0
    %2413 = vmatprep.subr.bf16.mxu0 0
    %2414 = vmatpush2.bf16.msra.mxu0 0
    %2415 = vmatprep.mubr.bf16.mxu0 0
    %2416 = vmatmul.mubr.bf16.gmra.mxu0 %v2378
    %v2417 = vpop.f32.mrf.mxu0
    %v2418 = vadd.f32 0.0, %v2417
    %v2419 = vpop.f32.mrf.mxu0
    %v2420 = vpop.f32.mrf.mxu0
    %v2421 = vpop.f32.mrf.mxu0
    %2422 = vdwg.mxu0
    %v2424 = vrot.slane %v2418, 3
    %v2426 = vsel %vm738, %v2290, %v2424
    %v2427 = vpack.c.bf16 %v2424, %v2426
    %s2428 = scalar_lea.vmem %s13, 24
    %v2429 = vld [vmem:[%s2428] sm:$0xf]
    %v2430 = vld [vmem:[%s2428 + $0x4] sm:$0xf]
    %v2433 = vunpack.c.l.b16 %v2429
    %v2434 = vunpack.c.l.b16 %v2430
    %v2435 = vpack.c.b16 %v2434, %v2433
    %v2438 = vsel %vm494, %v2427, 0
    %2440 = vmatprep.subr.bf16.mxu0 0
    %2441 = vmatpush1.bf16.msra.mxu0 0
    %2442 = vmatprep.subr.bf16.mxu0 0
    %2443 = vmatpush1.bf16.msra.mxu0 0
    %2444 = vmatprep.subr.bf16.mxu0 0
    %2445 = vmatpush1.bf16.msra.mxu0 0
    %2446 = vmatprep.subr.bf16.mxu0 0
    %2447 = vmatpush1.bf16.msra.mxu0 0
    %2448 = vmatprep.subr.bf16.mxu0 0
    %2449 = vmatpush1.bf16.msra.mxu0 0
    %2450 = vmatprep.subr.bf16.mxu0 0
    %2451 = vmatpush1.bf16.msra.mxu0 0
    %2452 = vmatprep.subr.bf16.mxu0 0
    %2453 = vmatpush1.bf16.msra.mxu0 0
    %2454 = vmatprep.subr.bf16.mxu0 0
    %2455 = vmatpush1.bf16.msra.mxu0 %v2435
    %2456 = vmatprep.subr.bf16.mxu0 0
    %2457 = vmatpush2.bf16.msra.mxu0 0
    %2458 = vmatprep.subr.bf16.mxu0 0
    %2459 = vmatpush2.bf16.msra.mxu0 0
    %2460 = vmatprep.subr.bf16.mxu0 0
    %2461 = vmatpush2.bf16.msra.mxu0 0
    %2462 = vmatprep.subr.bf16.mxu0 0
    %2463 = vmatpush2.bf16.msra.mxu0 0
    %2464 = vmatprep.subr.bf16.mxu0 0
    %2465 = vmatpush2.bf16.msra.mxu0 0
    %2466 = vmatprep.subr.bf16.mxu0 0
    %2467 = vmatpush2.bf16.msra.mxu0 0
    %2468 = vmatprep.subr.bf16.mxu0 0
    %2469 = vmatpush2.bf16.msra.mxu0 0
    %2470 = vmatprep.subr.bf16.mxu0 0
    %2471 = vmatpush2.bf16.msra.mxu0 0
    %2472 = vmatprep.mubr.bf16.mxu0 0
    %2473 = vmatmul.mubr.bf16.gmra.mxu0 %v2438
    %v2474 = vpop.f32.mrf.mxu0
    %v2475 = vadd.f32 0.0, %v2474
    %v2476 = vpop.f32.mrf.mxu0
    %v2477 = vpop.f32.mrf.mxu0
    %v2478 = vadd.f32 0.0, %v2477
    %v2479 = vpop.f32.mrf.mxu0
    %2480 = vdwg.mxu0
    %v2483 = vunpack.c.l.b16 %v1985
    %v2484 = vunpack.c.l.b16 %v1986
    %v2485 = vpack.c.b16 %v2484, %v2483
    %v2488 = vsel %vm494, %v1983, 0
    %2490 = vmatprep.subr.bf16.mxu0 0
    %2491 = vmatpush1.bf16.msra.mxu0 0
    %2492 = vmatprep.subr.bf16.mxu0 0
    %2493 = vmatpush1.bf16.msra.mxu0 0
    %2494 = vmatprep.subr.bf16.mxu0 0
    %2495 = vmatpush1.bf16.msra.mxu0 0
    %2496 = vmatprep.subr.bf16.mxu0 0
    %2497 = vmatpush1.bf16.msra.mxu0 0
    %2498 = vmatprep.subr.bf16.mxu0 0
    %2499 = vmatpush1.bf16.msra.mxu0 0
    %2500 = vmatprep.subr.bf16.mxu0 0
    %2501 = vmatpush1.bf16.msra.mxu0 0
    %2502 = vmatprep.subr.bf16.mxu0 0
    %2503 = vmatpush1.bf16.msra.mxu0 0
    %2504 = vmatprep.subr.bf16.mxu0 0
    %2505 = vmatpush1.bf16.msra.mxu0 %v2485
    %2506 = vmatprep.subr.bf16.mxu0 0
    %2507 = vmatpush2.bf16.msra.mxu0 0
    %2508 = vmatprep.subr.bf16.mxu0 0
    %2509 = vmatpush2.bf16.msra.mxu0 0
    %2510 = vmatprep.subr.bf16.mxu0 0
    %2511 = vmatpush2.bf16.msra.mxu0 0
    %2512 = vmatprep.subr.bf16.mxu0 0
    %2513 = vmatpush2.bf16.msra.mxu0 0
    %2514 = vmatprep.subr.bf16.mxu0 0
    %2515 = vmatpush2.bf16.msra.mxu0 0
    %2516 = vmatprep.subr.bf16.mxu0 0
    %2517 = vmatpush2.bf16.msra.mxu0 0
    %2518 = vmatprep.subr.bf16.mxu0 0
    %2519 = vmatpush2.bf16.msra.mxu0 0
    %2520 = vmatprep.subr.bf16.mxu0 0
    %2521 = vmatpush2.bf16.msra.mxu0 0
    %2522 = vmatprep.mubr.bf16.mxu0 0
    %2523 = vmatmul.mubr.bf16.gmra.mxu0 %v2488
    %v2524 = vpop.f32.mrf.mxu0
    %v2525 = vadd.f32 %v2475, %v2524
    %v2526 = vpop.f32.mrf.mxu0
    %v2527 = vpop.f32.mrf.mxu0
    %v2528 = vadd.f32 %v2478, %v2527
    %v2529 = vpop.f32.mrf.mxu0
    %2530 = vdwg.mxu0
    %s2531 = scalar_lea.vmem %s14, 1
    %v2532 = vld [vmem:[%s2531] sm:$0x1]
    %v2534 = vlaneseq
    %v2535 = vshrl.u32 %v2534, 7
    %v2536 = vsub.s32 0, %v2535
    %v2537 = vrot.slane %v2532, %v2536
    %v2539 = vadd.f32 %v2525, %v2537
    %v2540 = vadd.f32 %v2528, %v2537
    %v2541 = vadd.f32 %v2539, %v1491
    %v2542 = vadd.f32 %v2540, %v1492
    %v2543 = vsel %vm250, %v2541, 0.0
    %2544 = vadd.xlane.f32.xlu0 %v2543
    %v2545 = vpop.xlane.xlu0 %2544
    %v2546 = vsel %vm254, %v2542, 0.0
    %2547 = vadd.xlane.f32.xlu0 %v2546
    %v2548 = vpop.xlane.xlu0 %2547
    %v2549 = vmul.f32 %v2545, %v258
    %v2550 = vmul.f32 %v2548, %v258
    %v2551 = vsub.f32 %v2541, %v2549
    %v2552 = vsub.f32 %v2542, %v2550
    %v2553 = vmul.f32 %v2551, %v2551
    %v2554 = vmul.f32 %v2552, %v2552
    %v2555 = vsel %vm250, %v2553, 0.0
    %2556 = vadd.xlane.f32.xlu0 %v2555
    %v2557 = vpop.xlane.xlu0 %2556
    %v2558 = vsel %vm254, %v2554, 0.0
    %2559 = vadd.xlane.f32.xlu0 %v2558
    %v2560 = vpop.xlane.xlu0 %2559
    %v2561 = vmul.f32 %v2557, %v258
    %v2562 = vmul.f32 %v2560, %v258
    %v2563 = vadd.f32 %v2561, 1e-05
    %v2564 = vadd.f32 %v2562, 1e-05
    %v2565 = vrsqrt.pop %v2563
    %v2566 = vrsqrt.pop %v2564
    %v2567 = vmul.f32 %v2551, %v2565
    %v2568 = vmul.f32 %v2552, %v2566
    %v2569 = vmul.f32 %v2567, %v1527
    %v2570 = vmul.f32 %v2568, %v1527
    %v2571 = vadd.f32 %v2569, %v1535
    %v2572 = vadd.f32 %v2570, %v1535
    %v2573 = vpack.c.bf16 %v2572, %v2571
    %s2574 = scalar_lea.vmem %s15, 16
    %v2575 = vld [vmem:[%s2574] sm:$0xf]
    %v2576 = vld [vmem:[%s2574 + $0x4] sm:$0xf]
    %v2577 = vld [vmem:[%s2574 + $0x8] sm:$0xf]
    %v2578 = vld [vmem:[%s2574 + $0xc] sm:$0xf]
    %s2579 = scalar_lea.vmem %s16, 1
    %v2580 = vld [vmem:[%s2579] sm:$0x1]
    %v2582 = vlaneseq
    %v2583 = vshrl.u32 %v2582, 7
    %v2584 = vsub.s32 0, %v2583
    %v2585 = vrot.slane %v2580, %v2584
    %v2591 = vunpack.c.l.b16 %v2575
    %v2592 = vunpack.c.l.b16 %v2576
    %v2593 = vunpack.c.l.b16 %v2577
    %v2594 = vunpack.c.l.b16 %v2578
    %v2595 = vpack.c.b16 %v2592, %v2591
    %v2596 = vpack.c.b16 %v2594, %v2593
    %v2600 = vsel %vm250, %v2573, 0
    %2602 = vmatprep.subr.bf16.mxu0 0
    %2603 = vmatpush1.bf16.msra.mxu0 0
    %2604 = vmatprep.subr.bf16.mxu0 0
    %2605 = vmatpush1.bf16.msra.mxu0 0
    %2606 = vmatprep.subr.bf16.mxu0 0
    %2607 = vmatpush1.bf16.msra.mxu0 0
    %2608 = vmatprep.subr.bf16.mxu0 0
    %2609 = vmatpush1.bf16.msra.mxu0 0
    %2610 = vmatprep.subr.bf16.mxu0 0
    %2611 = vmatpush1.bf16.msra.mxu0 0
    %2612 = vmatprep.subr.bf16.mxu0 0
    %2613 = vmatpush1.bf16.msra.mxu0 0
    %2614 = vmatprep.subr.bf16.mxu0 0
    %2615 = vmatpush1.bf16.msra.mxu0 %v2596
    %2616 = vmatprep.subr.bf16.mxu0 0
    %2617 = vmatpush1.bf16.msra.mxu0 %v2595
    %2618 = vmatprep.subr.bf16.mxu0 0
    %2619 = vmatpush2.bf16.msra.mxu0 0
    %2620 = vmatprep.subr.bf16.mxu0 0
    %2621 = vmatpush2.bf16.msra.mxu0 0
    %2622 = vmatprep.subr.bf16.mxu0 0
    %2623 = vmatpush2.bf16.msra.mxu0 0
    %2624 = vmatprep.subr.bf16.mxu0 0
    %2625 = vmatpush2.bf16.msra.mxu0 0
    %2626 = vmatprep.subr.bf16.mxu0 0
    %2627 = vmatpush2.bf16.msra.mxu0 0
    %2628 = vmatprep.subr.bf16.mxu0 0
    %2629 = vmatpush2.bf16.msra.mxu0 0
    %2630 = vmatprep.subr.bf16.mxu0 0
    %2631 = vmatpush2.bf16.msra.mxu0 0
    %2632 = vmatprep.subr.bf16.mxu0 0
    %2633 = vmatpush2.bf16.msra.mxu0 0
    %2634 = vmatprep.mubr.bf16.mxu0 0
    %2635 = vmatmul.mubr.bf16.gmra.mxu0 %v2600
    %v2636 = vpop.f32.mrf.mxu0
    %v2637 = vadd.f32 %v2585, %v2636
    %v2638 = vpop.f32.mrf.mxu0
    %v2639 = vpop.f32.mrf.mxu0
    %v2640 = vadd.f32 %v2585, %v2639
    %v2641 = vpop.f32.mrf.mxu0
    %2642 = vdwg.mxu0
    %v2643 = vmul.f32 %v2637, 0.5
    %v2644 = vmul.f32 %v2640, 0.5
    %v2645 = vmul.f32 %v2637, %v1398
    %v2646 = vmul.f32 %v2640, %v1398
    %v2647 = verf.f32.pop %v2645
    %v2648 = verf.f32.pop %v2646
    %v2649 = vadd.f32 %v2647, 1.0
    %v2650 = vadd.f32 %v2648, 1.0
    %v2651 = vmul.f32 %v2643, %v2649
    %v2652 = vmul.f32 %v2644, %v2650
    %v2653 = vpack.c.bf16 %v2652, %v2651
    %s2654 = scalar_lea.vmem %s17, 32
    %v2655 = vld [vmem:[%s2654] sm:$0xf]
    %v2656 = vld [vmem:[%s2654 + $0x4] sm:$0xf]
    %v2657 = vld [vmem:[%s2654 + $0x8] sm:$0xf]
    %v2658 = vld [vmem:[%s2654 + $0xc] sm:$0xf]
    %v2659 = vld [vmem:[%s2654 + $0x10] sm:$0xf]
    %v2660 = vld [vmem:[%s2654 + $0x14] sm:$0xf]
    %v2661 = vld [vmem:[%s2654 + $0x18] sm:$0xf]
    %v2662 = vld [vmem:[%s2654 + $0x1c] sm:$0xf]
    %s2663 = scalar_lea.vmem %s18, 1
    %v2664 = vld [vmem:[%s2663] sm:$0x1]
    %v2666 = vlaneseq
    %v2667 = vshrl.u32 %v2666, 7
    %v2668 = vsub.s32 0, %v2667
    %v2669 = vrot.slane %v2664, %v2668
    %v2679 = vunpack.c.l.b16 %v2655
    %v2680 = vunpack.c.l.b16 %v2656
    %v2681 = vunpack.c.l.b16 %v2657
    %v2682 = vunpack.c.l.b16 %v2658
    %v2683 = vunpack.c.l.b16 %v2659
    %v2684 = vunpack.c.l.b16 %v2660
    %v2685 = vunpack.c.l.b16 %v2661
    %v2686 = vunpack.c.l.b16 %v2662
    %v2687 = vpack.c.b16 %v2680, %v2679
    %v2688 = vpack.c.b16 %v2682, %v2681
    %v2689 = vpack.c.b16 %v2684, %v2683
    %v2690 = vpack.c.b16 %v2686, %v2685
    %v2696 = vsel %vm185, %v2653, 0
    %2698 = vmatprep.subr.bf16.mxu0 0
    %2699 = vmatpush1.bf16.msra.mxu0 0
    %2700 = vmatprep.subr.bf16.mxu0 0
    %2701 = vmatpush1.bf16.msra.mxu0 0
    %2702 = vmatprep.subr.bf16.mxu0 0
    %2703 = vmatpush1.bf16.msra.mxu0 0
    %2704 = vmatprep.subr.bf16.mxu0 0
    %2705 = vmatpush1.bf16.msra.mxu0 0
    %2706 = vmatprep.subr.bf16.mxu0 0
    %2707 = vmatpush1.bf16.msra.mxu0 %v2690
    %2708 = vmatprep.subr.bf16.mxu0 0
    %2709 = vmatpush1.bf16.msra.mxu0 %v2689
    %2710 = vmatprep.subr.bf16.mxu0 0
    %2711 = vmatpush1.bf16.msra.mxu0 %v2688
    %2712 = vmatprep.subr.bf16.mxu0 0
    %2713 = vmatpush1.bf16.msra.mxu0 %v2687
    %2714 = vmatprep.subr.bf16.mxu0 0
    %2715 = vmatpush2.bf16.msra.mxu0 0
    %2716 = vmatprep.subr.bf16.mxu0 0
    %2717 = vmatpush2.bf16.msra.mxu0 0
    %2718 = vmatprep.subr.bf16.mxu0 0
    %2719 = vmatpush2.bf16.msra.mxu0 0
    %2720 = vmatprep.subr.bf16.mxu0 0
    %2721 = vmatpush2.bf16.msra.mxu0 0
    %2722 = vmatprep.subr.bf16.mxu0 0
    %2723 = vmatpush2.bf16.msra.mxu0 0
    %2724 = vmatprep.subr.bf16.mxu0 0
    %2725 = vmatpush2.bf16.msra.mxu0 0
    %2726 = vmatprep.subr.bf16.mxu0 0
    %2727 = vmatpush2.bf16.msra.mxu0 0
    %2728 = vmatprep.subr.bf16.mxu0 0
    %2729 = vmatpush2.bf16.msra.mxu0 0
    %2730 = vmatprep.mubr.bf16.mxu0 0
    %2731 = vmatmul.mubr.bf16.gmra.mxu0 %v2696
    %v2732 = vpop.f32.mrf.mxu0
    %v2733 = vadd.f32 %v2669, %v2732
    %v2734 = vpop.f32.mrf.mxu0
    %v2735 = vpop.f32.mrf.mxu0
    %v2736 = vpop.f32.mrf.mxu0
    %2737 = vdwg.mxu0
    %v2738 = vadd.f32 %v2733, %v2541
    %v2740 = vrot.slane %v2738, 4
    %vm2742 = vcmask 1040384
    %v2743 = vsel %vm2742, %v2738, %v2740
    %v2744 = vld [vmem:[%s19] sm:$0x1]
    %v2745 = vld [vmem:[%s20] sm:$0x1]
    %v2746 = vsel %vm254, %v2743, 0.0
    %2747 = vadd.xlane.f32.xlu0 %v2746
    %v2748 = vpop.xlane.xlu0 %2747
    %v2749 = vmul.f32 %v2748, %v258
    %v2750 = vsub.f32 %v2743, %v2749
    %v2751 = vmul.f32 %v2750, %v2750
    %v2752 = vsel %vm254, %v2751, 0.0
    %2753 = vadd.xlane.f32.xlu0 %v2752
    %v2754 = vpop.xlane.xlu0 %2753
    %v2755 = vmul.f32 %v2754, %v258
    %v2756 = vadd.f32 %v2755, 1e-05
    %v2757 = vrsqrt.pop %v2756
    %v2758 = vmul.f32 %v2750, %v2757
    %v2760 = vlaneseq
    %v2761 = vshrl.u32 %v2760, 7
    %v2762 = vsub.s32 0, %v2761
    %v2763 = vrot.slane %v2744, %v2762
    %v2765 = vmul.f32 %v2758, %v2763
    %v2767 = vlaneseq
    %v2768 = vshrl.u32 %v2767, 7
    %v2769 = vsub.s32 0, %v2768
    %v2770 = vrot.slane %v2745, %v2769
    %v2772 = vadd.f32 %v2765, %v2770
    %v2773 = vpack.c.bf16 %v2772, %v2772
    %v2774 = vld [vmem:[%s21] sm:$0xf]
    %v2775 = vld [vmem:[%s21 + $0x4] sm:$0xf]
    %v2776 = vld [vmem:[%s21 + $0x8] sm:$0xf]
    %v2777 = vld [vmem:[%s21 + $0xc] sm:$0xf]
    %v2778 = vld [vmem:[%s22] sm:$0x1]
    %v2780 = vlaneseq
    %v2781 = vshrl.u32 %v2780, 7
    %v2782 = vsub.s32 0, %v2781
    %v2783 = vrot.slane %v2778, %v2782
    %v2789 = vunpack.c.l.b16 %v2774
    %v2790 = vunpack.c.l.b16 %v2775
    %v2791 = vunpack.c.l.b16 %v2776
    %v2792 = vunpack.c.l.b16 %v2777
    %v2793 = vpack.c.b16 %v2790, %v2789
    %v2794 = vpack.c.b16 %v2792, %v2791
    %v2798 = vsel %vm250, %v2773, 0
    %2800 = vmatprep.subr.bf16.mxu0 0
    %2801 = vmatpush1.bf16.msra.mxu0 0
    %2802 = vmatprep.subr.bf16.mxu0 0
    %2803 = vmatpush1.bf16.msra.mxu0 0
    %2804 = vmatprep.subr.bf16.mxu0 0
    %2805 = vmatpush1.bf16.msra.mxu0 0
    %2806 = vmatprep.subr.bf16.mxu0 0
    %2807 = vmatpush1.bf16.msra.mxu0 0
    %2808 = vmatprep.subr.bf16.mxu0 0
    %2809 = vmatpush1.bf16.msra.mxu0 0
    %2810 = vmatprep.subr.bf16.mxu0 0
    %2811 = vmatpush1.bf16.msra.mxu0 0
    %2812 = vmatprep.subr.bf16.mxu0 0
    %2813 = vmatpush1.bf16.msra.mxu0 %v2794
    %2814 = vmatprep.subr.bf16.mxu0 0
    %2815 = vmatpush1.bf16.msra.mxu0 %v2793
    %2816 = vmatprep.subr.bf16.mxu0 0
    %2817 = vmatpush2.bf16.msra.mxu0 0
    %2818 = vmatprep.subr.bf16.mxu0 0
    %2819 = vmatpush2.bf16.msra.mxu0 0
    %2820 = vmatprep.subr.bf16.mxu0 0
    %2821 = vmatpush2.bf16.msra.mxu0 0
    %2822 = vmatprep.subr.bf16.mxu0 0
    %2823 = vmatpush2.bf16.msra.mxu0 0
    %2824 = vmatprep.subr.bf16.mxu0 0
    %2825 = vmatpush2.bf16.msra.mxu0 0
    %2826 = vmatprep.subr.bf16.mxu0 0
    %2827 = vmatpush2.bf16.msra.mxu0 0
    %2828 = vmatprep.subr.bf16.mxu0 0
    %2829 = vmatpush2.bf16.msra.mxu0 0
    %2830 = vmatprep.subr.bf16.mxu0 0
    %2831 = vmatpush2.bf16.msra.mxu0 0
    %2832 = vmatprep.mubr.bf16.mxu0 0
    %2833 = vmatmul.mubr.bf16.gmra.mxu0 %v2798
    %v2834 = vpop.f32.mrf.mxu0
    %v2835 = vadd.f32 %v2783, %v2834
    %v2836 = vpop.f32.mrf.mxu0
    %v2837 = vpop.f32.mrf.mxu0
    %v2838 = vpop.f32.mrf.mxu0
    %2839 = vdwg.mxu0
    %vm2840 = vcmask 74752
    %2841 = vst.msk [vmem:[#allocation3] sm:$0x3] %vm2840, %v2835
    // Predicated region
    $region94: #{vit_forward.1} parent=1 // pred_check
      _
    $region95: #{vit_forward.1} parent=1 // pred_check_branch
      %2843 = sbr.rel (0) target = $region97
    $region96: #{vit_forward.1} parent=1 // pred_region
      %s2845 = ssub.s32 32, 32
      %2846 = vsyncadd [#allocation4], %s2845
      %s2848 = sshll.u32 [#allocation3], 4
      %s2849 = int_to_ptr.vmem [resolvable:$true] %s2848
      %2851 = dma.vmem_to_hbm [thread:$0]  %s2849, 32, %s23, [#allocation4]
    $region97: #{vit_forward.1} parent=1 // pred_fallthru
      _
    // Predicated region
    $region98: #{vit_forward.1} parent=1 // pred_check
      _
    $region99: #{vit_forward.1} parent=1 // pred_check_branch
      %2853 = sbr.rel (0) target = $region101
    $region100: #{vit_forward.1} parent=1 // pred_region
      _
    $region101: #{vit_forward.1} parent=1 // pred_fallthru
      _
    // Predicated region
    $region102: #{vit_forward.1} parent=1 // pred_check
      _
    $region103: #{vit_forward.1} parent=1 // pred_check_branch
      %2855 = sbr.rel (0) target = $region105
    $region104: #{vit_forward.1} parent=1 // pred_region
      %2856 = dma.done [#allocation4], 32
    $region105: #{vit_forward.1} parent=1 // pred_fallthru
      _
    // Predicated region
    $region106: #{vit_forward.1} parent=1 // pred_check
      _
    $region107: #{vit_forward.1} parent=1 // pred_check_branch
      %2858 = sbr.rel (0) target = $region109
    $region108: #{vit_forward.1} parent=1 // pred_region
      _
    $region109: #{vit_forward.1} parent=1 // pred_fallthru
      _
    %2859 = vsyncpa [#allocation4], 1

</llo_original>
